<compile_context>
chip_gen: v7x
topology: tpu7x:2x2x1
jax: 0.10.0
libtpu: 0.0.40
codegen_flags: <defaults>
</compile_context>

<pallas_src>
import functools
import math

import jax
import jax.numpy as jnp
from jax.experimental import pallas as pl
from jax.experimental.pallas import tpu as pltpu

_EPS = 1e-7


def _atan(x):
    # arctan via Cephes reduction + degree-7 odd polynomial (|err| ~ 1e-7); sign-folded
    # so negative inputs are handled. (lax.atan has no guaranteed Mosaic lowering.)
    sgn = jnp.where(x < 0.0, -1.0, 1.0)
    a = jnp.abs(x)
    big = a > 2.414213562373095          # tan(3*pi/8)
    mid = a > 0.4142135623730950         # tan(pi/8)
    t = jnp.where(
        big, -pl.reciprocal(jnp.maximum(a, 1e-20), approx=True),
        jnp.where(mid, (a - 1.0) * pl.reciprocal(a + 1.0, approx=True), a))
    y = jnp.where(big, jnp.float32(math.pi / 2),
                  jnp.where(mid, jnp.float32(math.pi / 4), jnp.float32(0.0)))
    z = t * t
    p = ((8.05374449538e-2 * z - 1.38776856032e-1) * z + 1.99777106478e-1) * z \
        - 3.33329491539e-1
    return sgn * (y + t + t * z * p)


def _sum_to_11(x):
    # (S, L) -> (1, 1): sublane reduce then lane reduce.
    return jnp.sum(jnp.sum(x, axis=0, keepdims=True), axis=1, keepdims=True)


def _bbox_loss_kernel(boxes_ref, anc_ref, w_ref, *rest, reg_max, use_dfl):
    if use_dfl:
        pd_ref, liou_ref, ldfl_ref = rest
    else:
        (liou_ref,) = rest
        pd_ref = ldfl_ref = None

    @pl.when(pl.program_id(1) == 0)
    def _init():
        liou_ref[...] = jnp.zeros_like(liou_ref)
        if use_dfl:
            ldfl_ref[...] = jnp.zeros_like(ldfl_ref)

    w = w_ref[0]                                           # (TG, 128) fg-masked weight

    px, py, pw, ph = boxes_ref[0], boxes_ref[1], boxes_ref[2], boxes_ref[3]
    t0, t1, t2, t3 = boxes_ref[4], boxes_ref[5], boxes_ref[6], boxes_ref[7]

    # ---------------- CIoU (bbox_iou, xywh=True, CIoU=True) ----------------
    pwh, phh, twh, thh = pw * 0.5, ph * 0.5, t2 * 0.5, t3 * 0.5
    b1x1, b1x2, b1y1, b1y2 = px - pwh, px + pwh, py - phh, py + phh
    b2x1, b2x2, b2y1, b2y2 = t0 - twh, t0 + twh, t1 - thh, t1 + thh

    iw = jnp.maximum(jnp.minimum(b1x2, b2x2) - jnp.maximum(b1x1, b2x1), 0.0)
    ih = jnp.maximum(jnp.minimum(b1y2, b2y2) - jnp.maximum(b1y1, b2y1), 0.0)
    inter = iw * ih
    union = pw * ph + t2 * t3 - inter + _EPS
    iou = inter * pl.reciprocal(union, approx=True)

    cw = jnp.maximum(b1x2, b2x2) - jnp.minimum(b1x1, b2x1)
    ch = jnp.maximum(b1y2, b2y2) - jnp.minimum(b1y1, b2y1)
    c2 = cw * cw + ch * ch + _EPS
    rho2 = (jnp.square(b2x1 + b2x2 - b1x1 - b1x2) +
            jnp.square(b2y1 + b2y2 - b1y1 - b1y2)) * 0.25
    # clamp heights so zero (padded / background) boxes never produce NaN (NaN*0 = NaN)
    r_t = t2 * pl.reciprocal(jnp.maximum(t3, _EPS), approx=True)
    r_p = pw * pl.reciprocal(jnp.maximum(ph, _EPS), approx=True)
    v = (4.0 / (math.pi ** 2)) * jnp.square(_atan(r_t) - _atan(r_p))
    alpha = v * pl.reciprocal(jnp.maximum(v - iou + (1.0 + _EPS), _EPS), approx=True)
    ciou = iou - (rho2 * pl.reciprocal(c2, approx=True) + v * alpha)

    liou_ref[...] += _sum_to_11((1.0 - ciou) * w)

    if not use_dfl:
        return

    # ---------------- DFL ----------------
    R = reg_max + 1
    ax, ay = anc_ref[0], anc_ref[1]
    hi = reg_max - 0.01
    # bbox2dist (target box reused as xyxy, mirroring the torch code)
    ltrb = (jnp.clip(ax - t0, 0.0, hi), jnp.clip(ay - t1, 0.0, hi),
            jnp.clip(t2 - ax, 0.0, hi), jnp.clip(t3 - ay, 0.0, hi))

    dfl = jnp.zeros_like(w)
    for s in range(4):                                     # static unroll over sides
        d = ltrb[s]
        tl = jnp.floor(d)
        tli = tl.astype(jnp.int32)
        wl = (tl + 1.0) - d
        wr = 1.0 - wl
        # log-sum-exp over the R bins of this side (bins are on the untiled leading axis)
        mx = pd_ref[s * R].astype(jnp.float32)
        for r in range(1, R):
            mx = jnp.maximum(mx, pd_ref[s * R + r].astype(jnp.float32))
        se = jnp.zeros_like(mx)
        psel = jnp.zeros_like(mx)
        for r in range(R):
            lg = pd_ref[s * R + r].astype(jnp.float32)
            se = se + jnp.exp(lg - mx)
            # fused weighted one-hot gather: wl*logit[tl] + wr*logit[tl+1]
            coef = jnp.where(tli == r, wl, 0.0)
            if r > 0:
                coef = coef + jnp.where(tli == r - 1, wr, 0.0)
            psel = psel + lg * coef
        lse = jnp.log(se) + mx
        dfl = dfl + (lse - psel)                           # = wl*ce_tl + wr*ce_tr summed
    dfl = dfl * 0.25                                       # mean over the 4 sides

    ldfl_ref[...] += _sum_to_11(dfl * w)


class BboxLossPallas:
    """Pallas-TPU implementation of ultralytics BboxLoss.forward."""

    def __init__(self, reg_max, use_dfl=False, *, tile_n=2048, num_cores=2,
                 dfl_dtype=jnp.bfloat16):
        assert tile_n % 2048 == 0, "tile_n must be a multiple of 2048"
        self.reg_max = reg_max
        self.use_dfl = use_dfl
        self.tile_n = tile_n          # anchors per grid step (lanes)
        self.num_cores = num_cores    # leading 'parallel' axis (2 TCs on v7x, no-op on 1-TC)
        self.dfl_dtype = dfl_dtype    # bf16 halves HBM traffic of the largest operand

    def __call__(self, pred_dist, pred_bboxes, anchor_points, target_bboxes,
                 target_scores, target_scores_sum, fg_mask):
        f32 = jnp.float32
        B, A, _ = pred_bboxes.shape
        N = B * A
        R = self.reg_max + 1
        T, NC = self.tile_n, self.num_cores
        Npad = -(-N // (NC * T)) * (NC * T)
        G, TG = Npad // 128, T // 128
        n_inner = (Npad // T) // NC
        pad = Npad - N

        def prep(x, dtype=f32):       # (N, c) -> (c, G, 128), zero-padded anchors
            x = jnp.pad(x.astype(dtype), ((0, pad), (0, 0)))
            return x.T.reshape(x.shape[1], G, 128)

        boxes = prep(jnp.concatenate([pred_bboxes.reshape(N, 4),
                                      target_bboxes.reshape(N, 4)], axis=1))
        anc = prep(jnp.broadcast_to(anchor_points[None], (B, A, 2)).reshape(N, 2))
        # pre-reduce target_scores and fold in fg_mask -> single (1, N) weight plane
        weight = prep((target_scores.astype(f32).sum(-1) *
                       fg_mask.astype(f32)).reshape(N, 1))

        lane_idx = lambda c, i: (0, c * n_inner + i, 0)
        out_idx = lambda c, i: (c, 0, 0)
        in_specs = [pl.BlockSpec((8, TG, 128), lane_idx),
                    pl.BlockSpec((2, TG, 128), lane_idx),
                    pl.BlockSpec((1, TG, 128), lane_idx)]
        inputs = [boxes, anc, weight]
        out_shape = [jax.ShapeDtypeStruct((NC, 1, 1), f32)]
        out_specs = [pl.BlockSpec((None, 1, 1), out_idx)]

        if self.use_dfl:
            # TODO(synk): if the detection head already emits channel-major (B, 4R, ...)
            # activations, plumb that layout straight in and skip this HBM transpose.
            pd = prep(pred_dist.reshape(N, 4 * R), dtype=self.dfl_dtype)  # (4R, G, 128)
            in_specs.append(pl.BlockSpec((4 * R, TG, 128), lane_idx))
            inputs.append(pd)
            out_shape.append(jax.ShapeDtypeStruct((NC, 1, 1), f32))
            out_specs.append(pl.BlockSpec((None, 1, 1), out_idx))

        outs = pl.pallas_call(
            functools.partial(_bbox_loss_kernel, reg_max=self.reg_max,
                              use_dfl=self.use_dfl),
            out_shape=tuple(out_shape),
            grid=(NC, n_inner),
            in_specs=in_specs,
            out_specs=tuple(out_specs),
            compiler_params=pltpu.CompilerParams(
                dimension_semantics=("parallel", "arbitrary")),
        )(*inputs)

        tss = jnp.asarray(target_scores_sum, f32)
        loss_iou = jnp.sum(outs[0]) / tss
        loss_dfl = jnp.sum(outs[1]) / tss if self.use_dfl else jnp.asarray(0.0, f32)
        return loss_iou, loss_dfl


# ---------------- pure-JAX reference (mirrors the torch code) ----------------
def _reference(pred_dist, pred_bboxes, anchor_points, target_bboxes,
               target_scores, tss, fg_mask, reg_max):
    eps = 1e-7
    B, A, _ = pred_bboxes.shape
    m = fg_mask.astype(jnp.float32)
    weight = target_scores.sum(-1)

    x1, y1, w1, h1 = jnp.split(pred_bboxes, 4, axis=-1)
    x2, y2, w2, h2 = jnp.split(target_bboxes, 4, axis=-1)
    w1_, h1_, w2_, h2_ = w1 / 2, h1 / 2, w2 / 2, h2 / 2
    b1x1, b1x2, b1y1, b1y2 = x1 - w1_, x1 + w1_, y1 - h1_, y1 + h1_
    b2x1, b2x2, b2y1, b2y2 = x2 - w2_, x2 + w2_, y2 - h2_, y2 + h2_
    inter = jnp.maximum(jnp.minimum(b1x2, b2x2) - jnp.maximum(b1x1, b2x1), 0) * \
            jnp.maximum(jnp.minimum(b1y2, b2y2) - jnp.maximum(b1y1, b2y1), 0)
    union = w1 * h1 + w2 * h2 - inter + eps
    iou = inter / union
    cw = jnp.maximum(b1x2, b2x2) - jnp.minimum(b1x1, b2x1)
    ch = jnp.maximum(b1y2, b2y2) - jnp.minimum(b1y1, b2y1)
    c2 = cw ** 2 + ch ** 2 + eps
    rho2 = ((b2x1 + b2x2 - b1x1 - b1x2) ** 2 + (b2y1 + b2y2 - b1y1 - b1y2) ** 2) / 4
    v = (4 / math.pi ** 2) * (jnp.arctan(w2 / h2) - jnp.arctan(w1 / h1)) ** 2
    alpha = v / (v - iou + (1 + eps))
    ciou = (iou - (rho2 / c2 + v * alpha))[..., 0]
    loss_iou = jnp.sum((1.0 - ciou) * weight * m) / tss

    R = reg_max + 1
    x1y1, x2y2 = jnp.split(target_bboxes, 2, axis=-1)
    ltrb = jnp.clip(jnp.concatenate([anchor_points[None] - x1y1,
                                     x2y2 - anchor_points[None]], -1),
                    0.0, reg_max - 0.01)
    tl = jnp.floor(ltrb)
    wl = tl + 1 - ltrb
    wr = 1 - wl
    logits = pred_dist.reshape(B, A, 4, R)
    logp = jax.nn.log_softmax(logits, axis=-1)
    tli = tl.astype(jnp.int32)
    ce_tl = -jnp.take_along_axis(logp, tli[..., None], axis=-1)[..., 0]
    ce_tr = -jnp.take_along_axis(logp, tli[..., None] + 1, axis=-1)[..., 0]
    dfl = jnp.mean(ce_tl * wl + ce_tr * wr, axis=-1)
    loss_dfl = jnp.sum(dfl * weight * m) / tss
    return loss_iou, loss_dfl


if __name__ == "__main__":
    key = jax.random.PRNGKey(0)
    B, A, nc, reg_max = 2, 2200, 8, 16          # N = 4400 -> padded to 8192 (2 cores x 2 tiles)
    ks = jax.random.split(key, 8)

    pred_xy = jax.random.uniform(ks[0], (B, A, 2), minval=0.0, maxval=16.0)
    pred_wh = jax.random.uniform(ks[1], (B, A, 2), minval=1.0, maxval=8.0)
    pred_bboxes = jnp.concatenate([pred_xy, pred_wh], -1)

    tgt_xy = jax.random.uniform(ks[2], (B, A, 2), minval=0.0, maxval=16.0)
    tgt_wh = jax.random.uniform(ks[3], (B, A, 2), minval=1.0, maxval=8.0)
    target_bboxes = jnp.concatenate([tgt_xy, tgt_wh], -1)

    anchor_points = jax.random.uniform(ks[4], (A, 2), minval=0.0, maxval=16.0)
    target_scores = jax.random.uniform(ks[5], (B, A, nc))
    fg_mask = jax.random.uniform(ks[6], (B, A)) > 0.5
    target_scores_sum = jnp.maximum(target_scores.sum(), 1.0)
    pred_dist = jax.random.normal(ks[7], (B, A, 4 * (reg_max + 1)))

    loss_fn = BboxLossPallas(reg_max, use_dfl=True)
    loss_iou, loss_dfl = loss_fn(pred_dist, pred_bboxes, anchor_points, target_bboxes,
                                 target_scores, target_scores_sum, fg_mask)
    jax.block_until_ready((loss_iou, loss_dfl))

    ref_iou, ref_dfl = _reference(pred_dist, pred_bboxes, anchor_points, target_bboxes,
                                  target_scores, target_scores_sum, fg_mask, reg_max)
    assert bool(jnp.allclose(loss_iou, ref_iou, rtol=2e-2, atol=2e-3)), (loss_iou, ref_iou)
    assert bool(jnp.allclose(loss_dfl, ref_dfl, rtol=2e-2, atol=2e-3)), (loss_dfl, ref_dfl)

    # use_dfl=False variant: skips the pred_dist DMA and the whole DFL section.
    loss_fn2 = BboxLossPallas(reg_max, use_dfl=False)
    iou2, dfl2 = loss_fn2(pred_dist, pred_bboxes, anchor_points, target_bboxes,
                          target_scores, target_scores_sum, fg_mask)
    jax.block_until_ready((iou2, dfl2))
    assert bool(jnp.allclose(iou2, ref_iou, rtol=2e-2, atol=2e-3)), (iou2, ref_iou)
    assert float(dfl2) == 0.0

    print("KERNEL_OK")
</pallas_src>

<mosaic_0001>
module attributes {stable_mosaic.version = 11 : i64} {
  func.func @_bbox_loss_kernel(%arg0: i32, %arg1: i32, %arg2: memref<8x16x128xf32, #tpu.memory_space<vmem>>, %arg3: memref<2x16x128xf32, #tpu.memory_space<vmem>>, %arg4: memref<1x16x128xf32, #tpu.memory_space<vmem>>, %arg5: memref<68x16x128xbf16, #tpu.memory_space<vmem>>, %arg6: memref<1x1x1xf32, #tpu.memory_space<vmem>>, %arg7: memref<1x1x1xf32, #tpu.memory_space<vmem>>) attributes {dimension_semantics = [#tpu.dimension_semantics<parallel>, #tpu.dimension_semantics<arbitrary>], iteration_bounds = array<i64: 2, 2>, scalar_prefetch = 0 : i64, scratch_operands = 0 : i64, tpu.core_type = #tpu.core_type<tc>, window_params = [{transform_indices = @transform_0, window_bounds = array<i64: 8, 16, 128>}, {transform_indices = @transform_1, window_bounds = array<i64: 2, 16, 128>}, {transform_indices = @transform_2, window_bounds = array<i64: 1, 16, 128>}, {transform_indices = @transform_3, window_bounds = array<i64: 68, 16, 128>}, {transform_indices = @transform_4, window_bounds = array<i64: 1, 1, 1>}, {transform_indices = @transform_5, window_bounds = array<i64: 1, 1, 1>}]} {
    %c0_i32 = arith.constant 0 : i32
    %0 = arith.cmpi eq, %arg1, %c0_i32 : i32
    %1 = arith.extui %0 : i1 to i32
    %c0_i32_0 = arith.constant 0 : i32
    %2 = arith.cmpi ne, %1, %c0_i32_0 : i32
    scf.if %2 {
      %cst_710 = arith.constant 0.000000e+00 : f32
      %1697 = vector.broadcast %cst_710 : f32 to vector<1x1xf32>
      %c0_711 = arith.constant 0 : index
      %c0_712 = arith.constant 0 : index
      %c0_713 = arith.constant 0 : index
      %1698 = vector.load %arg6[%c0_711, %c0_712, %c0_713] : memref<1x1x1xf32, #tpu.memory_space<vmem>>, vector<1x1x1xf32>
      %1699 = vector.shape_cast %1698 : vector<1x1x1xf32> to vector<1x1xf32>
      %1700 = vector.shape_cast %1697 : vector<1x1xf32> to vector<1x1x1xf32>
      tpu.vector_store %arg6[%c0_711, %c0_712, %c0_713], %1700 {strides = array<i32>} : memref<1x1x1xf32, #tpu.memory_space<vmem>>, vector<1x1x1xf32>,
      %cst_714 = arith.constant 0.000000e+00 : f32
      %1701 = vector.broadcast %cst_714 : f32 to vector<1x1xf32>
      %c0_715 = arith.constant 0 : index
      %c0_716 = arith.constant 0 : index
      %c0_717 = arith.constant 0 : index
      %1702 = vector.load %arg7[%c0_715, %c0_716, %c0_717] : memref<1x1x1xf32, #tpu.memory_space<vmem>>, vector<1x1x1xf32>
      %1703 = vector.shape_cast %1702 : vector<1x1x1xf32> to vector<1x1xf32>
      %1704 = vector.shape_cast %1701 : vector<1x1xf32> to vector<1x1x1xf32>
      tpu.vector_store %arg7[%c0_715, %c0_716, %c0_717], %1704 {strides = array<i32>} : memref<1x1x1xf32, #tpu.memory_space<vmem>>, vector<1x1x1xf32>,
    } else {
    }
    %c0 = arith.constant 0 : index
    %c0_1 = arith.constant 0 : index
    %c0_2 = arith.constant 0 : index
    %3 = vector.load %arg4[%c0, %c0_1, %c0_2] : memref<1x16x128xf32, #tpu.memory_space<vmem>>, vector<1x16x128xf32>
    %4 = vector.shape_cast %3 : vector<1x16x128xf32> to vector<16x128xf32>
    %c0_3 = arith.constant 0 : index
    %c0_4 = arith.constant 0 : index
    %c0_5 = arith.constant 0 : index
    %5 = vector.load %arg2[%c0_3, %c0_4, %c0_5] : memref<8x16x128xf32, #tpu.memory_space<vmem>>, vector<1x16x128xf32>
    %6 = vector.shape_cast %5 : vector<1x16x128xf32> to vector<16x128xf32>
    %c1 = arith.constant 1 : index
    %c0_6 = arith.constant 0 : index
    %c0_7 = arith.constant 0 : index
    %7 = vector.load %arg2[%c1, %c0_6, %c0_7] : memref<8x16x128xf32, #tpu.memory_space<vmem>>, vector<1x16x128xf32>
    %8 = vector.shape_cast %7 : vector<1x16x128xf32> to vector<16x128xf32>
    %c2 = arith.constant 2 : index
    %c0_8 = arith.constant 0 : index
    %c0_9 = arith.constant 0 : index
    %9 = vector.load %arg2[%c2, %c0_8, %c0_9] : memref<8x16x128xf32, #tpu.memory_space<vmem>>, vector<1x16x128xf32>
    %10 = vector.shape_cast %9 : vector<1x16x128xf32> to vector<16x128xf32>
    %c3 = arith.constant 3 : index
    %c0_10 = arith.constant 0 : index
    %c0_11 = arith.constant 0 : index
    %11 = vector.load %arg2[%c3, %c0_10, %c0_11] : memref<8x16x128xf32, #tpu.memory_space<vmem>>, vector<1x16x128xf32>
    %12 = vector.shape_cast %11 : vector<1x16x128xf32> to vector<16x128xf32>
    %c4 = arith.constant 4 : index
    %c0_12 = arith.constant 0 : index
    %c0_13 = arith.constant 0 : index
    %13 = vector.load %arg2[%c4, %c0_12, %c0_13] : memref<8x16x128xf32, #tpu.memory_space<vmem>>, vector<1x16x128xf32>
    %14 = vector.shape_cast %13 : vector<1x16x128xf32> to vector<16x128xf32>
    %c5 = arith.constant 5 : index
    %c0_14 = arith.constant 0 : index
    %c0_15 = arith.constant 0 : index
    %15 = vector.load %arg2[%c5, %c0_14, %c0_15] : memref<8x16x128xf32, #tpu.memory_space<vmem>>, vector<1x16x128xf32>
    %16 = vector.shape_cast %15 : vector<1x16x128xf32> to vector<16x128xf32>
    %c6 = arith.constant 6 : index
    %c0_16 = arith.constant 0 : index
    %c0_17 = arith.constant 0 : index
    %17 = vector.load %arg2[%c6, %c0_16, %c0_17] : memref<8x16x128xf32, #tpu.memory_space<vmem>>, vector<1x16x128xf32>
    %18 = vector.shape_cast %17 : vector<1x16x128xf32> to vector<16x128xf32>
    %c7 = arith.constant 7 : index
    %c0_18 = arith.constant 0 : index
    %c0_19 = arith.constant 0 : index
    %19 = vector.load %arg2[%c7, %c0_18, %c0_19] : memref<8x16x128xf32, #tpu.memory_space<vmem>>, vector<1x16x128xf32>
    %20 = vector.shape_cast %19 : vector<1x16x128xf32> to vector<16x128xf32>
    %cst = arith.constant 5.000000e-01 : f32
    %21 = vector.broadcast %cst : f32 to vector<16x128xf32>
    %22 = arith.mulf %10, %21 : vector<16x128xf32>
    %cst_20 = arith.constant 5.000000e-01 : f32
    %23 = vector.broadcast %cst_20 : f32 to vector<16x128xf32>
    %24 = arith.mulf %12, %23 : vector<16x128xf32>
    %cst_21 = arith.constant 5.000000e-01 : f32
    %25 = vector.broadcast %cst_21 : f32 to vector<16x128xf32>
    %26 = arith.mulf %18, %25 : vector<16x128xf32>
    %cst_22 = arith.constant 5.000000e-01 : f32
    %27 = vector.broadcast %cst_22 : f32 to vector<16x128xf32>
    %28 = arith.mulf %20, %27 : vector<16x128xf32>
    %29 = arith.subf %6, %22 : vector<16x128xf32>
    %30 = arith.addf %6, %22 : vector<16x128xf32>
    %31 = arith.subf %8, %24 : vector<16x128xf32>
    %32 = arith.addf %8, %24 : vector<16x128xf32>
    %33 = arith.subf %14, %26 : vector<16x128xf32>
    %34 = arith.addf %14, %26 : vector<16x128xf32>
    %35 = arith.subf %16, %28 : vector<16x128xf32>
    %36 = arith.addf %16, %28 : vector<16x128xf32>
    %37 = arith.minimumf %30, %34 : vector<16x128xf32>
    %38 = arith.maximumf %29, %33 : vector<16x128xf32>
    %39 = arith.subf %37, %38 : vector<16x128xf32>
    %cst_23 = arith.constant 0.000000e+00 : f32
    %40 = vector.broadcast %cst_23 : f32 to vector<16x128xf32>
    %41 = arith.maximumf %39, %40 : vector<16x128xf32>
    %42 = arith.minimumf %32, %36 : vector<16x128xf32>
    %43 = arith.maximumf %31, %35 : vector<16x128xf32>
    %44 = arith.subf %42, %43 : vector<16x128xf32>
    %cst_24 = arith.constant 0.000000e+00 : f32
    %45 = vector.broadcast %cst_24 : f32 to vector<16x128xf32>
    %46 = arith.maximumf %44, %45 : vector<16x128xf32>
    %47 = arith.mulf %41, %46 : vector<16x128xf32>
    %48 = arith.mulf %10, %12 : vector<16x128xf32>
    %49 = arith.mulf %18, %20 : vector<16x128xf32>
    %50 = arith.addf %48, %49 : vector<16x128xf32>
    %51 = arith.subf %50, %47 : vector<16x128xf32>
    %cst_25 = arith.constant 1.000000e-07 : f32
    %52 = vector.broadcast %cst_25 : f32 to vector<16x128xf32>
    %53 = arith.addf %51, %52 : vector<16x128xf32>
    %54 = tpu.reciprocal %53 {approx = true} : vector<16x128xf32> -> vector<16x128xf32>
    %55 = arith.mulf %47, %54 : vector<16x128xf32>
    %56 = arith.maximumf %30, %34 : vector<16x128xf32>
    %57 = arith.minimumf %29, %33 : vector<16x128xf32>
    %58 = arith.subf %56, %57 : vector<16x128xf32>
    %59 = arith.maximumf %32, %36 : vector<16x128xf32>
    %60 = arith.minimumf %31, %35 : vector<16x128xf32>
    %61 = arith.subf %59, %60 : vector<16x128xf32>
    %62 = arith.mulf %58, %58 : vector<16x128xf32>
    %63 = arith.mulf %61, %61 : vector<16x128xf32>
    %64 = arith.addf %62, %63 : vector<16x128xf32>
    %cst_26 = arith.constant 1.000000e-07 : f32
    %65 = vector.broadcast %cst_26 : f32 to vector<16x128xf32>
    %66 = arith.addf %64, %65 : vector<16x128xf32>
    %67 = arith.addf %33, %34 : vector<16x128xf32>
    %68 = arith.subf %67, %29 : vector<16x128xf32>
    %69 = arith.subf %68, %30 : vector<16x128xf32>
    %70 = arith.mulf %69, %69 : vector<16x128xf32>
    %71 = arith.addf %35, %36 : vector<16x128xf32>
    %72 = arith.subf %71, %31 : vector<16x128xf32>
    %73 = arith.subf %72, %32 : vector<16x128xf32>
    %74 = arith.mulf %73, %73 : vector<16x128xf32>
    %75 = arith.addf %70, %74 : vector<16x128xf32>
    %cst_27 = arith.constant 2.500000e-01 : f32
    %76 = vector.broadcast %cst_27 : f32 to vector<16x128xf32>
    %77 = arith.mulf %75, %76 : vector<16x128xf32>
    %cst_28 = arith.constant 1.000000e-07 : f32
    %78 = vector.broadcast %cst_28 : f32 to vector<16x128xf32>
    %79 = arith.maximumf %20, %78 : vector<16x128xf32>
    %80 = tpu.reciprocal %79 {approx = true} : vector<16x128xf32> -> vector<16x128xf32>
    %81 = arith.mulf %18, %80 : vector<16x128xf32>
    %cst_29 = arith.constant 1.000000e-07 : f32
    %82 = vector.broadcast %cst_29 : f32 to vector<16x128xf32>
    %83 = arith.maximumf %12, %82 : vector<16x128xf32>
    %84 = tpu.reciprocal %83 {approx = true} : vector<16x128xf32> -> vector<16x128xf32>
    %85 = arith.mulf %10, %84 : vector<16x128xf32>
    %cst_30 = arith.constant 0.000000e+00 : f32
    %86 = vector.broadcast %cst_30 : f32 to vector<16x128xf32>
    %87 = arith.cmpf olt, %81, %86 : vector<16x128xf32>
    %cst_31 = arith.constant -1.000000e+00 : f32
    %cst_32 = arith.constant 1.000000e+00 : f32
    %88 = vector.broadcast %cst_31 : f32 to vector<16x128xf32>
    %89 = vector.broadcast %cst_32 : f32 to vector<16x128xf32>
    %90 = arith.select %87, %88, %89 : vector<16x128xi1>, vector<16x128xf32>
    %91 = math.absf %81 : vector<16x128xf32>
    %cst_33 = arith.constant 2.41421366 : f32
    %92 = vector.broadcast %cst_33 : f32 to vector<16x128xf32>
    %93 = arith.cmpf ogt, %91, %92 : vector<16x128xf32>
    %cst_34 = arith.constant 0.414213568 : f32
    %94 = vector.broadcast %cst_34 : f32 to vector<16x128xf32>
    %95 = arith.cmpf ogt, %91, %94 : vector<16x128xf32>
    %cst_35 = arith.constant 9.99999968E-21 : f32
    %96 = vector.broadcast %cst_35 : f32 to vector<16x128xf32>
    %97 = arith.maximumf %91, %96 : vector<16x128xf32>
    %98 = tpu.reciprocal %97 {approx = true} : vector<16x128xf32> -> vector<16x128xf32>
    %cst_36 = arith.constant 0.000000e+00 : f32
    %99 = vector.broadcast %cst_36 : f32 to vector<16x128xf32>
    %100 = arith.subf %99, %98 : vector<16x128xf32>
    %cst_37 = arith.constant 1.000000e+00 : f32
    %101 = vector.broadcast %cst_37 : f32 to vector<16x128xf32>
    %102 = arith.subf %91, %101 : vector<16x128xf32>
    %cst_38 = arith.constant 1.000000e+00 : f32
    %103 = vector.broadcast %cst_38 : f32 to vector<16x128xf32>
    %104 = arith.addf %91, %103 : vector<16x128xf32>
    %105 = tpu.reciprocal %104 {approx = true} : vector<16x128xf32> -> vector<16x128xf32>
    %106 = arith.mulf %102, %105 : vector<16x128xf32>
    %107 = arith.select %95, %106, %91 : vector<16x128xi1>, vector<16x128xf32>
    %108 = arith.select %93, %100, %107 : vector<16x128xi1>, vector<16x128xf32>
    %cst_39 = arith.constant 0.785398185 : f32
    %cst_40 = arith.constant 0.000000e+00 : f32
    %109 = vector.broadcast %cst_39 : f32 to vector<16x128xf32>
    %110 = vector.broadcast %cst_40 : f32 to vector<16x128xf32>
    %111 = arith.select %95, %109, %110 : vector<16x128xi1>, vector<16x128xf32>
    %cst_41 = arith.constant 1.57079637 : f32
    %112 = vector.broadcast %cst_41 : f32 to vector<16x128xf32>
    %113 = arith.select %93, %112, %111 : vector<16x128xi1>, vector<16x128xf32>
    %114 = arith.mulf %108, %108 : vector<16x128xf32>
    %cst_42 = arith.constant 0.0805374458 : f32
    %115 = vector.broadcast %cst_42 : f32 to vector<16x128xf32>
    %116 = arith.mulf %115, %114 : vector<16x128xf32>
    %cst_43 = arith.constant 0.138776854 : f32
    %117 = vector.broadcast %cst_43 : f32 to vector<16x128xf32>
    %118 = arith.subf %116, %117 : vector<16x128xf32>
    %119 = arith.mulf %118, %114 : vector<16x128xf32>
    %cst_44 = arith.constant 0.199777111 : f32
    %120 = vector.broadcast %cst_44 : f32 to vector<16x128xf32>
    %121 = arith.addf %119, %120 : vector<16x128xf32>
    %122 = arith.mulf %121, %114 : vector<16x128xf32>
    %cst_45 = arith.constant 0.333329499 : f32
    %123 = vector.broadcast %cst_45 : f32 to vector<16x128xf32>
    %124 = arith.subf %122, %123 : vector<16x128xf32>
    %125 = arith.addf %113, %108 : vector<16x128xf32>
    %126 = arith.mulf %108, %114 : vector<16x128xf32>
    %127 = arith.mulf %126, %124 : vector<16x128xf32>
    %128 = arith.addf %125, %127 : vector<16x128xf32>
    %129 = arith.mulf %90, %128 : vector<16x128xf32>
    %cst_46 = arith.constant 0.000000e+00 : f32
    %130 = vector.broadcast %cst_46 : f32 to vector<16x128xf32>
    %131 = arith.cmpf olt, %85, %130 : vector<16x128xf32>
    %cst_47 = arith.constant -1.000000e+00 : f32
    %cst_48 = arith.constant 1.000000e+00 : f32
    %132 = vector.broadcast %cst_47 : f32 to vector<16x128xf32>
    %133 = vector.broadcast %cst_48 : f32 to vector<16x128xf32>
    %134 = arith.select %131, %132, %133 : vector<16x128xi1>, vector<16x128xf32>
    %135 = math.absf %85 : vector<16x128xf32>
    %cst_49 = arith.constant 2.41421366 : f32
    %136 = vector.broadcast %cst_49 : f32 to vector<16x128xf32>
    %137 = arith.cmpf ogt, %135, %136 : vector<16x128xf32>
    %cst_50 = arith.constant 0.414213568 : f32
    %138 = vector.broadcast %cst_50 : f32 to vector<16x128xf32>
    %139 = arith.cmpf ogt, %135, %138 : vector<16x128xf32>
    %cst_51 = arith.constant 9.99999968E-21 : f32
    %140 = vector.broadcast %cst_51 : f32 to vector<16x128xf32>
    %141 = arith.maximumf %135, %140 : vector<16x128xf32>
    %142 = tpu.reciprocal %141 {approx = true} : vector<16x128xf32> -> vector<16x128xf32>
    %cst_52 = arith.constant 0.000000e+00 : f32
    %143 = vector.broadcast %cst_52 : f32 to vector<16x128xf32>
    %144 = arith.subf %143, %142 : vector<16x128xf32>
    %cst_53 = arith.constant 1.000000e+00 : f32
    %145 = vector.broadcast %cst_53 : f32 to vector<16x128xf32>
    %146 = arith.subf %135, %145 : vector<16x128xf32>
    %cst_54 = arith.constant 1.000000e+00 : f32
    %147 = vector.broadcast %cst_54 : f32 to vector<16x128xf32>
    %148 = arith.addf %135, %147 : vector<16x128xf32>
    %149 = tpu.reciprocal %148 {approx = true} : vector<16x128xf32> -> vector<16x128xf32>
    %150 = arith.mulf %146, %149 : vector<16x128xf32>
    %151 = arith.select %139, %150, %135 : vector<16x128xi1>, vector<16x128xf32>
    %152 = arith.select %137, %144, %151 : vector<16x128xi1>, vector<16x128xf32>
    %cst_55 = arith.constant 0.785398185 : f32
    %cst_56 = arith.constant 0.000000e+00 : f32
    %153 = vector.broadcast %cst_55 : f32 to vector<16x128xf32>
    %154 = vector.broadcast %cst_56 : f32 to vector<16x128xf32>
    %155 = arith.select %139, %153, %154 : vector<16x128xi1>, vector<16x128xf32>
    %cst_57 = arith.constant 1.57079637 : f32
    %156 = vector.broadcast %cst_57 : f32 to vector<16x128xf32>
    %157 = arith.select %137, %156, %155 : vector<16x128xi1>, vector<16x128xf32>
    %158 = arith.mulf %152, %152 : vector<16x128xf32>
    %cst_58 = arith.constant 0.0805374458 : f32
    %159 = vector.broadcast %cst_58 : f32 to vector<16x128xf32>
    %160 = arith.mulf %159, %158 : vector<16x128xf32>
    %cst_59 = arith.constant 0.138776854 : f32
    %161 = vector.broadcast %cst_59 : f32 to vector<16x128xf32>
    %162 = arith.subf %160, %161 : vector<16x128xf32>
    %163 = arith.mulf %162, %158 : vector<16x128xf32>
    %cst_60 = arith.constant 0.199777111 : f32
    %164 = vector.broadcast %cst_60 : f32 to vector<16x128xf32>
    %165 = arith.addf %163, %164 : vector<16x128xf32>
    %166 = arith.mulf %165, %158 : vector<16x128xf32>
    %cst_61 = arith.constant 0.333329499 : f32
    %167 = vector.broadcast %cst_61 : f32 to vector<16x128xf32>
    %168 = arith.subf %166, %167 : vector<16x128xf32>
    %169 = arith.addf %157, %152 : vector<16x128xf32>
    %170 = arith.mulf %152, %158 : vector<16x128xf32>
    %171 = arith.mulf %170, %168 : vector<16x128xf32>
    %172 = arith.addf %169, %171 : vector<16x128xf32>
    %173 = arith.mulf %134, %172 : vector<16x128xf32>
    %174 = arith.subf %129, %173 : vector<16x128xf32>
    %175 = arith.mulf %174, %174 : vector<16x128xf32>
    %cst_62 = arith.constant 0.405284733 : f32
    %176 = vector.broadcast %cst_62 : f32 to vector<16x128xf32>
    %177 = arith.mulf %176, %175 : vector<16x128xf32>
    %178 = arith.subf %177, %55 : vector<16x128xf32>
    %cst_63 = arith.constant 1.00000012 : f32
    %179 = vector.broadcast %cst_63 : f32 to vector<16x128xf32>
    %180 = arith.addf %178, %179 : vector<16x128xf32>
    %cst_64 = arith.constant 1.000000e-07 : f32
    %181 = vector.broadcast %cst_64 : f32 to vector<16x128xf32>
    %182 = arith.maximumf %180, %181 : vector<16x128xf32>
    %183 = tpu.reciprocal %182 {approx = true} : vector<16x128xf32> -> vector<16x128xf32>
    %184 = arith.mulf %177, %183 : vector<16x128xf32>
    %185 = tpu.reciprocal %66 {approx = true} : vector<16x128xf32> -> vector<16x128xf32>
    %186 = arith.mulf %77, %185 : vector<16x128xf32>
    %187 = arith.mulf %177, %184 : vector<16x128xf32>
    %188 = arith.addf %186, %187 : vector<16x128xf32>
    %189 = arith.subf %55, %188 : vector<16x128xf32>
    %c0_65 = arith.constant 0 : index
    %c0_66 = arith.constant 0 : index
    %c0_67 = arith.constant 0 : index
    %190 = vector.load %arg6[%c0_65, %c0_66, %c0_67] : memref<1x1x1xf32, #tpu.memory_space<vmem>>, vector<1x1x1xf32>
    %191 = vector.shape_cast %190 : vector<1x1x1xf32> to vector<1x1xf32>
    %cst_68 = arith.constant 1.000000e+00 : f32
    %192 = vector.broadcast %cst_68 : f32 to vector<16x128xf32>
    %193 = arith.subf %192, %189 : vector<16x128xf32>
    %194 = arith.mulf %193, %4 : vector<16x128xf32>
    %cst_69 = arith.constant dense<0.000000e+00> : vector<128xf32>
    %195 = vector.multi_reduction <add>, %194, %cst_69 [0] : vector<16x128xf32> to vector<128xf32>
    %196 = vector.shape_cast %195 : vector<128xf32> to vector<1x128xf32>
    %cst_70 = arith.constant dense<0.000000e+00> : vector<1xf32>
    %197 = vector.multi_reduction <add>, %196, %cst_70 [1] : vector<1x128xf32> to vector<1xf32>
    %198 = vector.shape_cast %197 : vector<1xf32> to vector<1x1xf32>
    %199 = arith.addf %191, %198 : vector<1x1xf32>
    %c0_71 = arith.constant 0 : index
    %c0_72 = arith.constant 0 : index
    %c0_73 = arith.constant 0 : index
    %200 = vector.load %arg6[%c0_71, %c0_72, %c0_73] : memref<1x1x1xf32, #tpu.memory_space<vmem>>, vector<1x1x1xf32>
    %201 = vector.shape_cast %200 : vector<1x1x1xf32> to vector<1x1xf32>
    %202 = vector.shape_cast %199 : vector<1x1xf32> to vector<1x1x1xf32>
    tpu.vector_store %arg6[%c0_71, %c0_72, %c0_73], %202 {strides = array<i32>} : memref<1x1x1xf32, #tpu.memory_space<vmem>>, vector<1x1x1xf32>,
    %c0_74 = arith.constant 0 : index
    %c0_75 = arith.constant 0 : index
    %c0_76 = arith.constant 0 : index
    %203 = vector.load %arg3[%c0_74, %c0_75, %c0_76] : memref<2x16x128xf32, #tpu.memory_space<vmem>>, vector<1x16x128xf32>
    %204 = vector.shape_cast %203 : vector<1x16x128xf32> to vector<16x128xf32>
    %c1_77 = arith.constant 1 : index
    %c0_78 = arith.constant 0 : index
    %c0_79 = arith.constant 0 : index
    %205 = vector.load %arg3[%c1_77, %c0_78, %c0_79] : memref<2x16x128xf32, #tpu.memory_space<vmem>>, vector<1x16x128xf32>
    %206 = vector.shape_cast %205 : vector<1x16x128xf32> to vector<16x128xf32>
    %207 = arith.subf %204, %14 : vector<16x128xf32>
    %cst_80 = arith.constant 0.000000e+00 : f32
    %cst_81 = arith.constant 1.599000e+01 : f32
    %208 = vector.broadcast %cst_80 : f32 to vector<16x128xf32>
    %209 = arith.maximumf %208, %207 : vector<16x128xf32>
    %210 = vector.broadcast %cst_81 : f32 to vector<16x128xf32>
    %211 = arith.minimumf %210, %209 : vector<16x128xf32>
    %212 = arith.subf %206, %16 : vector<16x128xf32>
    %cst_82 = arith.constant 0.000000e+00 : f32
    %cst_83 = arith.constant 1.599000e+01 : f32
    %213 = vector.broadcast %cst_82 : f32 to vector<16x128xf32>
    %214 = arith.maximumf %213, %212 : vector<16x128xf32>
    %215 = vector.broadcast %cst_83 : f32 to vector<16x128xf32>
    %216 = arith.minimumf %215, %214 : vector<16x128xf32>
    %217 = arith.subf %18, %204 : vector<16x128xf32>
    %cst_84 = arith.constant 0.000000e+00 : f32
    %cst_85 = arith.constant 1.599000e+01 : f32
    %218 = vector.broadcast %cst_84 : f32 to vector<16x128xf32>
    %219 = arith.maximumf %218, %217 : vector<16x128xf32>
    %220 = vector.broadcast %cst_85 : f32 to vector<16x128xf32>
    %221 = arith.minimumf %220, %219 : vector<16x128xf32>
    %222 = arith.subf %20, %206 : vector<16x128xf32>
    %cst_86 = arith.constant 0.000000e+00 : f32
    %cst_87 = arith.constant 1.599000e+01 : f32
    %223 = vector.broadcast %cst_86 : f32 to vector<16x128xf32>
    %224 = arith.maximumf %223, %222 : vector<16x128xf32>
    %225 = vector.broadcast %cst_87 : f32 to vector<16x128xf32>
    %226 = arith.minimumf %225, %224 : vector<16x128xf32>
    %cst_88 = arith.constant 0.000000e+00 : f32
    %227 = vector.broadcast %cst_88 : f32 to vector<16x128xf32>
    %228 = math.floor %211 : vector<16x128xf32>
    %229 = arith.fptosi %228 : vector<16x128xf32> to vector<16x128xi32>
    %cst_89 = arith.constant 1.000000e+00 : f32
    %230 = vector.broadcast %cst_89 : f32 to vector<16x128xf32>
    %231 = arith.addf %228, %230 : vector<16x128xf32>
    %232 = arith.subf %231, %211 : vector<16x128xf32>
    %cst_90 = arith.constant 1.000000e+00 : f32
    %233 = vector.broadcast %cst_90 : f32 to vector<16x128xf32>
    %234 = arith.subf %233, %232 : vector<16x128xf32>
    %c0_91 = arith.constant 0 : index
    %c0_92 = arith.constant 0 : index
    %c0_93 = arith.constant 0 : index
    %235 = vector.load %arg5[%c0_91, %c0_92, %c0_93] : memref<68x16x128xbf16, #tpu.memory_space<vmem>>, vector<1x16x128xbf16>
    %236 = vector.shape_cast %235 : vector<1x16x128xbf16> to vector<16x128xbf16>
    %237 = arith.extf %236 : vector<16x128xbf16> to vector<16x128xf32>
    %c1_94 = arith.constant 1 : index
    %c0_95 = arith.constant 0 : index
    %c0_96 = arith.constant 0 : index
    %238 = vector.load %arg5[%c1_94, %c0_95, %c0_96] : memref<68x16x128xbf16, #tpu.memory_space<vmem>>, vector<1x16x128xbf16>
    %239 = vector.shape_cast %238 : vector<1x16x128xbf16> to vector<16x128xbf16>
    %240 = arith.extf %239 : vector<16x128xbf16> to vector<16x128xf32>
    %241 = arith.maximumf %237, %240 : vector<16x128xf32>
    %c2_97 = arith.constant 2 : index
    %c0_98 = arith.constant 0 : index
    %c0_99 = arith.constant 0 : index
    %242 = vector.load %arg5[%c2_97, %c0_98, %c0_99] : memref<68x16x128xbf16, #tpu.memory_space<vmem>>, vector<1x16x128xbf16>
    %243 = vector.shape_cast %242 : vector<1x16x128xbf16> to vector<16x128xbf16>
    %244 = arith.extf %243 : vector<16x128xbf16> to vector<16x128xf32>
    %245 = arith.maximumf %241, %244 : vector<16x128xf32>
    %c3_100 = arith.constant 3 : index
    %c0_101 = arith.constant 0 : index
    %c0_102 = arith.constant 0 : index
    %246 = vector.load %arg5[%c3_100, %c0_101, %c0_102] : memref<68x16x128xbf16, #tpu.memory_space<vmem>>, vector<1x16x128xbf16>
    %247 = vector.shape_cast %246 : vector<1x16x128xbf16> to vector<16x128xbf16>
    %248 = arith.extf %247 : vector<16x128xbf16> to vector<16x128xf32>
    %249 = arith.maximumf %245, %248 : vector<16x128xf32>
    %c4_103 = arith.constant 4 : index
    %c0_104 = arith.constant 0 : index
    %c0_105 = arith.constant 0 : index
    %250 = vector.load %arg5[%c4_103, %c0_104, %c0_105] : memref<68x16x128xbf16, #tpu.memory_space<vmem>>, vector<1x16x128xbf16>
    %251 = vector.shape_cast %250 : vector<1x16x128xbf16> to vector<16x128xbf16>
    %252 = arith.extf %251 : vector<16x128xbf16> to vector<16x128xf32>
    %253 = arith.maximumf %249, %252 : vector<16x128xf32>
    %c5_106 = arith.constant 5 : index
    %c0_107 = arith.constant 0 : index
    %c0_108 = arith.constant 0 : index
    %254 = vector.load %arg5[%c5_106, %c0_107, %c0_108] : memref<68x16x128xbf16, #tpu.memory_space<vmem>>, vector<1x16x128xbf16>
    %255 = vector.shape_cast %254 : vector<1x16x128xbf16> to vector<16x128xbf16>
    %256 = arith.extf %255 : vector<16x128xbf16> to vector<16x128xf32>
    %257 = arith.maximumf %253, %256 : vector<16x128xf32>
    %c6_109 = arith.constant 6 : index
    %c0_110 = arith.constant 0 : index
    %c0_111 = arith.constant 0 : index
    %258 = vector.load %arg5[%c6_109, %c0_110, %c0_111] : memref<68x16x128xbf16, #tpu.memory_space<vmem>>, vector<1x16x128xbf16>
    %259 = vector.shape_cast %258 : vector<1x16x128xbf16> to vector<16x128xbf16>
    %260 = arith.extf %259 : vector<16x128xbf16> to vector<16x128xf32>
    %261 = arith.maximumf %257, %260 : vector<16x128xf32>
    %c7_112 = arith.constant 7 : index
    %c0_113 = arith.constant 0 : index
    %c0_114 = arith.constant 0 : index
    %262 = vector.load %arg5[%c7_112, %c0_113, %c0_114] : memref<68x16x128xbf16, #tpu.memory_space<vmem>>, vector<1x16x128xbf16>
    %263 = vector.shape_cast %262 : vector<1x16x128xbf16> to vector<16x128xbf16>
    %264 = arith.extf %263 : vector<16x128xbf16> to vector<16x128xf32>
    %265 = arith.maximumf %261, %264 : vector<16x128xf32>
    %c8 = arith.constant 8 : index
    %c0_115 = arith.constant 0 : index
    %c0_116 = arith.constant 0 : index
    %266 = vector.load %arg5[%c8, %c0_115, %c0_116] : memref<68x16x128xbf16, #tpu.memory_space<vmem>>, vector<1x16x128xbf16>
    %267 = vector.shape_cast %266 : vector<1x16x128xbf16> to vector<16x128xbf16>
    %268 = arith.extf %267 : vector<16x128xbf16> to vector<16x128xf32>
    %269 = arith.maximumf %265, %268 : vector<16x128xf32>
    %c9 = arith.constant 9 : index
    %c0_117 = arith.constant 0 : index
    %c0_118 = arith.constant 0 : index
    %270 = vector.load %arg5[%c9, %c0_117, %c0_118] : memref<68x16x128xbf16, #tpu.memory_space<vmem>>, vector<1x16x128xbf16>
    %271 = vector.shape_cast %270 : vector<1x16x128xbf16> to vector<16x128xbf16>
    %272 = arith.extf %271 : vector<16x128xbf16> to vector<16x128xf32>
    %273 = arith.maximumf %269, %272 : vector<16x128xf32>
    %c10 = arith.constant 10 : index
    %c0_119 = arith.constant 0 : index
    %c0_120 = arith.constant 0 : index
    %274 = vector.load %arg5[%c10, %c0_119, %c0_120] : memref<68x16x128xbf16, #tpu.memory_space<vmem>>, vector<1x16x128xbf16>
    %275 = vector.shape_cast %274 : vector<1x16x128xbf16> to vector<16x128xbf16>
    %276 = arith.extf %275 : vector<16x128xbf16> to vector<16x128xf32>
    %277 = arith.maximumf %273, %276 : vector<16x128xf32>
    %c11 = arith.constant 11 : index
    %c0_121 = arith.constant 0 : index
    %c0_122 = arith.constant 0 : index
    %278 = vector.load %arg5[%c11, %c0_121, %c0_122] : memref<68x16x128xbf16, #tpu.memory_space<vmem>>, vector<1x16x128xbf16>
    %279 = vector.shape_cast %278 : vector<1x16x128xbf16> to vector<16x128xbf16>
    %280 = arith.extf %279 : vector<16x128xbf16> to vector<16x128xf32>
    %281 = arith.maximumf %277, %280 : vector<16x128xf32>
    %c12 = arith.constant 12 : index
    %c0_123 = arith.constant 0 : index
    %c0_124 = arith.constant 0 : index
    %282 = vector.load %arg5[%c12, %c0_123, %c0_124] : memref<68x16x128xbf16, #tpu.memory_space<vmem>>, vector<1x16x128xbf16>
    %283 = vector.shape_cast %282 : vector<1x16x128xbf16> to vector<16x128xbf16>
    %284 = arith.extf %283 : vector<16x128xbf16> to vector<16x128xf32>
    %285 = arith.maximumf %281, %284 : vector<16x128xf32>
    %c13 = arith.constant 13 : index
    %c0_125 = arith.constant 0 : index
    %c0_126 = arith.constant 0 : index
    %286 = vector.load %arg5[%c13, %c0_125, %c0_126] : memref<68x16x128xbf16, #tpu.memory_space<vmem>>, vector<1x16x128xbf16>
    %287 = vector.shape_cast %286 : vector<1x16x128xbf16> to vector<16x128xbf16>
    %288 = arith.extf %287 : vector<16x128xbf16> to vector<16x128xf32>
    %289 = arith.maximumf %285, %288 : vector<16x128xf32>
    %c14 = arith.constant 14 : index
    %c0_127 = arith.constant 0 : index
    %c0_128 = arith.constant 0 : index
    %290 = vector.load %arg5[%c14, %c0_127, %c0_128] : memref<68x16x128xbf16, #tpu.memory_space<vmem>>, vector<1x16x128xbf16>
    %291 = vector.shape_cast %290 : vector<1x16x128xbf16> to vector<16x128xbf16>
    %292 = arith.extf %291 : vector<16x128xbf16> to vector<16x128xf32>
    %293 = arith.maximumf %289, %292 : vector<16x128xf32>
    %c15 = arith.constant 15 : index
    %c0_129 = arith.constant 0 : index
    %c0_130 = arith.constant 0 : index
    %294 = vector.load %arg5[%c15, %c0_129, %c0_130] : memref<68x16x128xbf16, #tpu.memory_space<vmem>>, vector<1x16x128xbf16>
    %295 = vector.shape_cast %294 : vector<1x16x128xbf16> to vector<16x128xbf16>
    %296 = arith.extf %295 : vector<16x128xbf16> to vector<16x128xf32>
    %297 = arith.maximumf %293, %296 : vector<16x128xf32>
    %c16 = arith.constant 16 : index
    %c0_131 = arith.constant 0 : index
    %c0_132 = arith.constant 0 : index
    %298 = vector.load %arg5[%c16, %c0_131, %c0_132] : memref<68x16x128xbf16, #tpu.memory_space<vmem>>, vector<1x16x128xbf16>
    %299 = vector.shape_cast %298 : vector<1x16x128xbf16> to vector<16x128xbf16>
    %300 = arith.extf %299 : vector<16x128xbf16> to vector<16x128xf32>
    %301 = arith.maximumf %297, %300 : vector<16x128xf32>
    %cst_133 = arith.constant 0.000000e+00 : f32
    %302 = vector.broadcast %cst_133 : f32 to vector<16x128xf32>
    %cst_134 = arith.constant 0.000000e+00 : f32
    %303 = vector.broadcast %cst_134 : f32 to vector<16x128xf32>
    %c0_135 = arith.constant 0 : index
    %c0_136 = arith.constant 0 : index
    %c0_137 = arith.constant 0 : index
    %304 = vector.load %arg5[%c0_135, %c0_136, %c0_137] : memref<68x16x128xbf16, #tpu.memory_space<vmem>>, vector<1x16x128xbf16>
    %305 = vector.shape_cast %304 : vector<1x16x128xbf16> to vector<16x128xbf16>
    %306 = arith.extf %305 : vector<16x128xbf16> to vector<16x128xf32>
    %307 = arith.subf %306, %301 : vector<16x128xf32>
    %308 = math.exp %307 : vector<16x128xf32>
    %309 = arith.addf %302, %308 : vector<16x128xf32>
    %c0_i32_138 = arith.constant 0 : i32
    %310 = vector.broadcast %c0_i32_138 : i32 to vector<16x128xi32>
    %311 = arith.cmpi eq, %229, %310 : vector<16x128xi32>
    %cst_139 = arith.constant 0.000000e+00 : f32
    %312 = vector.broadcast %cst_139 : f32 to vector<16x128xf32>
    %313 = arith.select %311, %232, %312 : vector<16x128xi1>, vector<16x128xf32>
    %314 = arith.mulf %306, %313 : vector<16x128xf32>
    %315 = arith.addf %303, %314 : vector<16x128xf32>
    %c1_140 = arith.constant 1 : index
    %c0_141 = arith.constant 0 : index
    %c0_142 = arith.constant 0 : index
    %316 = vector.load %arg5[%c1_140, %c0_141, %c0_142] : memref<68x16x128xbf16, #tpu.memory_space<vmem>>, vector<1x16x128xbf16>
    %317 = vector.shape_cast %316 : vector<1x16x128xbf16> to vector<16x128xbf16>
    %318 = arith.extf %317 : vector<16x128xbf16> to vector<16x128xf32>
    %319 = arith.subf %318, %301 : vector<16x128xf32>
    %320 = math.exp %319 : vector<16x128xf32>
    %321 = arith.addf %309, %320 : vector<16x128xf32>
    %c1_i32 = arith.constant 1 : i32
    %322 = vector.broadcast %c1_i32 : i32 to vector<16x128xi32>
    %323 = arith.cmpi eq, %229, %322 : vector<16x128xi32>
    %cst_143 = arith.constant 0.000000e+00 : f32
    %324 = vector.broadcast %cst_143 : f32 to vector<16x128xf32>
    %325 = arith.select %323, %232, %324 : vector<16x128xi1>, vector<16x128xf32>
    %c0_i32_144 = arith.constant 0 : i32
    %326 = vector.broadcast %c0_i32_144 : i32 to vector<16x128xi32>
    %327 = arith.cmpi eq, %229, %326 : vector<16x128xi32>
    %cst_145 = arith.constant 0.000000e+00 : f32
    %328 = vector.broadcast %cst_145 : f32 to vector<16x128xf32>
    %329 = arith.select %327, %234, %328 : vector<16x128xi1>, vector<16x128xf32>
    %330 = arith.addf %325, %329 : vector<16x128xf32>
    %331 = arith.mulf %318, %330 : vector<16x128xf32>
    %332 = arith.addf %315, %331 : vector<16x128xf32>
    %c2_146 = arith.constant 2 : index
    %c0_147 = arith.constant 0 : index
    %c0_148 = arith.constant 0 : index
    %333 = vector.load %arg5[%c2_146, %c0_147, %c0_148] : memref<68x16x128xbf16, #tpu.memory_space<vmem>>, vector<1x16x128xbf16>
    %334 = vector.shape_cast %333 : vector<1x16x128xbf16> to vector<16x128xbf16>
    %335 = arith.extf %334 : vector<16x128xbf16> to vector<16x128xf32>
    %336 = arith.subf %335, %301 : vector<16x128xf32>
    %337 = math.exp %336 : vector<16x128xf32>
    %338 = arith.addf %321, %337 : vector<16x128xf32>
    %c2_i32 = arith.constant 2 : i32
    %339 = vector.broadcast %c2_i32 : i32 to vector<16x128xi32>
    %340 = arith.cmpi eq, %229, %339 : vector<16x128xi32>
    %cst_149 = arith.constant 0.000000e+00 : f32
    %341 = vector.broadcast %cst_149 : f32 to vector<16x128xf32>
    %342 = arith.select %340, %232, %341 : vector<16x128xi1>, vector<16x128xf32>
    %c1_i32_150 = arith.constant 1 : i32
    %343 = vector.broadcast %c1_i32_150 : i32 to vector<16x128xi32>
    %344 = arith.cmpi eq, %229, %343 : vector<16x128xi32>
    %cst_151 = arith.constant 0.000000e+00 : f32
    %345 = vector.broadcast %cst_151 : f32 to vector<16x128xf32>
    %346 = arith.select %344, %234, %345 : vector<16x128xi1>, vector<16x128xf32>
    %347 = arith.addf %342, %346 : vector<16x128xf32>
    %348 = arith.mulf %335, %347 : vector<16x128xf32>
    %349 = arith.addf %332, %348 : vector<16x128xf32>
    %c3_152 = arith.constant 3 : index
    %c0_153 = arith.constant 0 : index
    %c0_154 = arith.constant 0 : index
    %350 = vector.load %arg5[%c3_152, %c0_153, %c0_154] : memref<68x16x128xbf16, #tpu.memory_space<vmem>>, vector<1x16x128xbf16>
    %351 = vector.shape_cast %350 : vector<1x16x128xbf16> to vector<16x128xbf16>
    %352 = arith.extf %351 : vector<16x128xbf16> to vector<16x128xf32>
    %353 = arith.subf %352, %301 : vector<16x128xf32>
    %354 = math.exp %353 : vector<16x128xf32>
    %355 = arith.addf %338, %354 : vector<16x128xf32>
    %c3_i32 = arith.constant 3 : i32
    %356 = vector.broadcast %c3_i32 : i32 to vector<16x128xi32>
    %357 = arith.cmpi eq, %229, %356 : vector<16x128xi32>
    %cst_155 = arith.constant 0.000000e+00 : f32
    %358 = vector.broadcast %cst_155 : f32 to vector<16x128xf32>
    %359 = arith.select %357, %232, %358 : vector<16x128xi1>, vector<16x128xf32>
    %c2_i32_156 = arith.constant 2 : i32
    %360 = vector.broadcast %c2_i32_156 : i32 to vector<16x128xi32>
    %361 = arith.cmpi eq, %229, %360 : vector<16x128xi32>
    %cst_157 = arith.constant 0.000000e+00 : f32
    %362 = vector.broadcast %cst_157 : f32 to vector<16x128xf32>
    %363 = arith.select %361, %234, %362 : vector<16x128xi1>, vector<16x128xf32>
    %364 = arith.addf %359, %363 : vector<16x128xf32>
    %365 = arith.mulf %352, %364 : vector<16x128xf32>
    %366 = arith.addf %349, %365 : vector<16x128xf32>
    %c4_158 = arith.constant 4 : index
    %c0_159 = arith.constant 0 : index
    %c0_160 = arith.constant 0 : index
    %367 = vector.load %arg5[%c4_158, %c0_159, %c0_160] : memref<68x16x128xbf16, #tpu.memory_space<vmem>>, vector<1x16x128xbf16>
    %368 = vector.shape_cast %367 : vector<1x16x128xbf16> to vector<16x128xbf16>
    %369 = arith.extf %368 : vector<16x128xbf16> to vector<16x128xf32>
    %370 = arith.subf %369, %301 : vector<16x128xf32>
    %371 = math.exp %370 : vector<16x128xf32>
    %372 = arith.addf %355, %371 : vector<16x128xf32>
    %c4_i32 = arith.constant 4 : i32
    %373 = vector.broadcast %c4_i32 : i32 to vector<16x128xi32>
    %374 = arith.cmpi eq, %229, %373 : vector<16x128xi32>
    %cst_161 = arith.constant 0.000000e+00 : f32
    %375 = vector.broadcast %cst_161 : f32 to vector<16x128xf32>
    %376 = arith.select %374, %232, %375 : vector<16x128xi1>, vector<16x128xf32>
    %c3_i32_162 = arith.constant 3 : i32
    %377 = vector.broadcast %c3_i32_162 : i32 to vector<16x128xi32>
    %378 = arith.cmpi eq, %229, %377 : vector<16x128xi32>
    %cst_163 = arith.constant 0.000000e+00 : f32
    %379 = vector.broadcast %cst_163 : f32 to vector<16x128xf32>
    %380 = arith.select %378, %234, %379 : vector<16x128xi1>, vector<16x128xf32>
    %381 = arith.addf %376, %380 : vector<16x128xf32>
    %382 = arith.mulf %369, %381 : vector<16x128xf32>
    %383 = arith.addf %366, %382 : vector<16x128xf32>
    %c5_164 = arith.constant 5 : index
    %c0_165 = arith.constant 0 : index
    %c0_166 = arith.constant 0 : index
    %384 = vector.load %arg5[%c5_164, %c0_165, %c0_166] : memref<68x16x128xbf16, #tpu.memory_space<vmem>>, vector<1x16x128xbf16>
    %385 = vector.shape_cast %384 : vector<1x16x128xbf16> to vector<16x128xbf16>
    %386 = arith.extf %385 : vector<16x128xbf16> to vector<16x128xf32>
    %387 = arith.subf %386, %301 : vector<16x128xf32>
    %388 = math.exp %387 : vector<16x128xf32>
    %389 = arith.addf %372, %388 : vector<16x128xf32>
    %c5_i32 = arith.constant 5 : i32
    %390 = vector.broadcast %c5_i32 : i32 to vector<16x128xi32>
    %391 = arith.cmpi eq, %229, %390 : vector<16x128xi32>
    %cst_167 = arith.constant 0.000000e+00 : f32
    %392 = vector.broadcast %cst_167 : f32 to vector<16x128xf32>
    %393 = arith.select %391, %232, %392 : vector<16x128xi1>, vector<16x128xf32>
    %c4_i32_168 = arith.constant 4 : i32
    %394 = vector.broadcast %c4_i32_168 : i32 to vector<16x128xi32>
    %395 = arith.cmpi eq, %229, %394 : vector<16x128xi32>
    %cst_169 = arith.constant 0.000000e+00 : f32
    %396 = vector.broadcast %cst_169 : f32 to vector<16x128xf32>
    %397 = arith.select %395, %234, %396 : vector<16x128xi1>, vector<16x128xf32>
    %398 = arith.addf %393, %397 : vector<16x128xf32>
    %399 = arith.mulf %386, %398 : vector<16x128xf32>
    %400 = arith.addf %383, %399 : vector<16x128xf32>
    %c6_170 = arith.constant 6 : index
    %c0_171 = arith.constant 0 : index
    %c0_172 = arith.constant 0 : index
    %401 = vector.load %arg5[%c6_170, %c0_171, %c0_172] : memref<68x16x128xbf16, #tpu.memory_space<vmem>>, vector<1x16x128xbf16>
    %402 = vector.shape_cast %401 : vector<1x16x128xbf16> to vector<16x128xbf16>
    %403 = arith.extf %402 : vector<16x128xbf16> to vector<16x128xf32>
    %404 = arith.subf %403, %301 : vector<16x128xf32>
    %405 = math.exp %404 : vector<16x128xf32>
    %406 = arith.addf %389, %405 : vector<16x128xf32>
    %c6_i32 = arith.constant 6 : i32
    %407 = vector.broadcast %c6_i32 : i32 to vector<16x128xi32>
    %408 = arith.cmpi eq, %229, %407 : vector<16x128xi32>
    %cst_173 = arith.constant 0.000000e+00 : f32
    %409 = vector.broadcast %cst_173 : f32 to vector<16x128xf32>
    %410 = arith.select %408, %232, %409 : vector<16x128xi1>, vector<16x128xf32>
    %c5_i32_174 = arith.constant 5 : i32
    %411 = vector.broadcast %c5_i32_174 : i32 to vector<16x128xi32>
    %412 = arith.cmpi eq, %229, %411 : vector<16x128xi32>
    %cst_175 = arith.constant 0.000000e+00 : f32
    %413 = vector.broadcast %cst_175 : f32 to vector<16x128xf32>
    %414 = arith.select %412, %234, %413 : vector<16x128xi1>, vector<16x128xf32>
    %415 = arith.addf %410, %414 : vector<16x128xf32>
    %416 = arith.mulf %403, %415 : vector<16x128xf32>
    %417 = arith.addf %400, %416 : vector<16x128xf32>
    %c7_176 = arith.constant 7 : index
    %c0_177 = arith.constant 0 : index
    %c0_178 = arith.constant 0 : index
    %418 = vector.load %arg5[%c7_176, %c0_177, %c0_178] : memref<68x16x128xbf16, #tpu.memory_space<vmem>>, vector<1x16x128xbf16>
    %419 = vector.shape_cast %418 : vector<1x16x128xbf16> to vector<16x128xbf16>
    %420 = arith.extf %419 : vector<16x128xbf16> to vector<16x128xf32>
    %421 = arith.subf %420, %301 : vector<16x128xf32>
    %422 = math.exp %421 : vector<16x128xf32>
    %423 = arith.addf %406, %422 : vector<16x128xf32>
    %c7_i32 = arith.constant 7 : i32
    %424 = vector.broadcast %c7_i32 : i32 to vector<16x128xi32>
    %425 = arith.cmpi eq, %229, %424 : vector<16x128xi32>
    %cst_179 = arith.constant 0.000000e+00 : f32
    %426 = vector.broadcast %cst_179 : f32 to vector<16x128xf32>
    %427 = arith.select %425, %232, %426 : vector<16x128xi1>, vector<16x128xf32>
    %c6_i32_180 = arith.constant 6 : i32
    %428 = vector.broadcast %c6_i32_180 : i32 to vector<16x128xi32>
    %429 = arith.cmpi eq, %229, %428 : vector<16x128xi32>
    %cst_181 = arith.constant 0.000000e+00 : f32
    %430 = vector.broadcast %cst_181 : f32 to vector<16x128xf32>
    %431 = arith.select %429, %234, %430 : vector<16x128xi1>, vector<16x128xf32>
    %432 = arith.addf %427, %431 : vector<16x128xf32>
    %433 = arith.mulf %420, %432 : vector<16x128xf32>
    %434 = arith.addf %417, %433 : vector<16x128xf32>
    %c8_182 = arith.constant 8 : index
    %c0_183 = arith.constant 0 : index
    %c0_184 = arith.constant 0 : index
    %435 = vector.load %arg5[%c8_182, %c0_183, %c0_184] : memref<68x16x128xbf16, #tpu.memory_space<vmem>>, vector<1x16x128xbf16>
    %436 = vector.shape_cast %435 : vector<1x16x128xbf16> to vector<16x128xbf16>
    %437 = arith.extf %436 : vector<16x128xbf16> to vector<16x128xf32>
    %438 = arith.subf %437, %301 : vector<16x128xf32>
    %439 = math.exp %438 : vector<16x128xf32>
    %440 = arith.addf %423, %439 : vector<16x128xf32>
    %c8_i32 = arith.constant 8 : i32
    %441 = vector.broadcast %c8_i32 : i32 to vector<16x128xi32>
    %442 = arith.cmpi eq, %229, %441 : vector<16x128xi32>
    %cst_185 = arith.constant 0.000000e+00 : f32
    %443 = vector.broadcast %cst_185 : f32 to vector<16x128xf32>
    %444 = arith.select %442, %232, %443 : vector<16x128xi1>, vector<16x128xf32>
    %c7_i32_186 = arith.constant 7 : i32
    %445 = vector.broadcast %c7_i32_186 : i32 to vector<16x128xi32>
    %446 = arith.cmpi eq, %229, %445 : vector<16x128xi32>
    %cst_187 = arith.constant 0.000000e+00 : f32
    %447 = vector.broadcast %cst_187 : f32 to vector<16x128xf32>
    %448 = arith.select %446, %234, %447 : vector<16x128xi1>, vector<16x128xf32>
    %449 = arith.addf %444, %448 : vector<16x128xf32>
    %450 = arith.mulf %437, %449 : vector<16x128xf32>
    %451 = arith.addf %434, %450 : vector<16x128xf32>
    %c9_188 = arith.constant 9 : index
    %c0_189 = arith.constant 0 : index
    %c0_190 = arith.constant 0 : index
    %452 = vector.load %arg5[%c9_188, %c0_189, %c0_190] : memref<68x16x128xbf16, #tpu.memory_space<vmem>>, vector<1x16x128xbf16>
    %453 = vector.shape_cast %452 : vector<1x16x128xbf16> to vector<16x128xbf16>
    %454 = arith.extf %453 : vector<16x128xbf16> to vector<16x128xf32>
    %455 = arith.subf %454, %301 : vector<16x128xf32>
    %456 = math.exp %455 : vector<16x128xf32>
    %457 = arith.addf %440, %456 : vector<16x128xf32>
    %c9_i32 = arith.constant 9 : i32
    %458 = vector.broadcast %c9_i32 : i32 to vector<16x128xi32>
    %459 = arith.cmpi eq, %229, %458 : vector<16x128xi32>
    %cst_191 = arith.constant 0.000000e+00 : f32
    %460 = vector.broadcast %cst_191 : f32 to vector<16x128xf32>
    %461 = arith.select %459, %232, %460 : vector<16x128xi1>, vector<16x128xf32>
    %c8_i32_192 = arith.constant 8 : i32
    %462 = vector.broadcast %c8_i32_192 : i32 to vector<16x128xi32>
    %463 = arith.cmpi eq, %229, %462 : vector<16x128xi32>
    %cst_193 = arith.constant 0.000000e+00 : f32
    %464 = vector.broadcast %cst_193 : f32 to vector<16x128xf32>
    %465 = arith.select %463, %234, %464 : vector<16x128xi1>, vector<16x128xf32>
    %466 = arith.addf %461, %465 : vector<16x128xf32>
    %467 = arith.mulf %454, %466 : vector<16x128xf32>
    %468 = arith.addf %451, %467 : vector<16x128xf32>
    %c10_194 = arith.constant 10 : index
    %c0_195 = arith.constant 0 : index
    %c0_196 = arith.constant 0 : index
    %469 = vector.load %arg5[%c10_194, %c0_195, %c0_196] : memref<68x16x128xbf16, #tpu.memory_space<vmem>>, vector<1x16x128xbf16>
    %470 = vector.shape_cast %469 : vector<1x16x128xbf16> to vector<16x128xbf16>
    %471 = arith.extf %470 : vector<16x128xbf16> to vector<16x128xf32>
    %472 = arith.subf %471, %301 : vector<16x128xf32>
    %473 = math.exp %472 : vector<16x128xf32>
    %474 = arith.addf %457, %473 : vector<16x128xf32>
    %c10_i32 = arith.constant 10 : i32
    %475 = vector.broadcast %c10_i32 : i32 to vector<16x128xi32>
    %476 = arith.cmpi eq, %229, %475 : vector<16x128xi32>
    %cst_197 = arith.constant 0.000000e+00 : f32
    %477 = vector.broadcast %cst_197 : f32 to vector<16x128xf32>
    %478 = arith.select %476, %232, %477 : vector<16x128xi1>, vector<16x128xf32>
    %c9_i32_198 = arith.constant 9 : i32
    %479 = vector.broadcast %c9_i32_198 : i32 to vector<16x128xi32>
    %480 = arith.cmpi eq, %229, %479 : vector<16x128xi32>
    %cst_199 = arith.constant 0.000000e+00 : f32
    %481 = vector.broadcast %cst_199 : f32 to vector<16x128xf32>
    %482 = arith.select %480, %234, %481 : vector<16x128xi1>, vector<16x128xf32>
    %483 = arith.addf %478, %482 : vector<16x128xf32>
    %484 = arith.mulf %471, %483 : vector<16x128xf32>
    %485 = arith.addf %468, %484 : vector<16x128xf32>
    %c11_200 = arith.constant 11 : index
    %c0_201 = arith.constant 0 : index
    %c0_202 = arith.constant 0 : index
    %486 = vector.load %arg5[%c11_200, %c0_201, %c0_202] : memref<68x16x128xbf16, #tpu.memory_space<vmem>>, vector<1x16x128xbf16>
    %487 = vector.shape_cast %486 : vector<1x16x128xbf16> to vector<16x128xbf16>
    %488 = arith.extf %487 : vector<16x128xbf16> to vector<16x128xf32>
    %489 = arith.subf %488, %301 : vector<16x128xf32>
    %490 = math.exp %489 : vector<16x128xf32>
    %491 = arith.addf %474, %490 : vector<16x128xf32>
    %c11_i32 = arith.constant 11 : i32
    %492 = vector.broadcast %c11_i32 : i32 to vector<16x128xi32>
    %493 = arith.cmpi eq, %229, %492 : vector<16x128xi32>
    %cst_203 = arith.constant 0.000000e+00 : f32
    %494 = vector.broadcast %cst_203 : f32 to vector<16x128xf32>
    %495 = arith.select %493, %232, %494 : vector<16x128xi1>, vector<16x128xf32>
    %c10_i32_204 = arith.constant 10 : i32
    %496 = vector.broadcast %c10_i32_204 : i32 to vector<16x128xi32>
    %497 = arith.cmpi eq, %229, %496 : vector<16x128xi32>
    %cst_205 = arith.constant 0.000000e+00 : f32
    %498 = vector.broadcast %cst_205 : f32 to vector<16x128xf32>
    %499 = arith.select %497, %234, %498 : vector<16x128xi1>, vector<16x128xf32>
    %500 = arith.addf %495, %499 : vector<16x128xf32>
    %501 = arith.mulf %488, %500 : vector<16x128xf32>
    %502 = arith.addf %485, %501 : vector<16x128xf32>
    %c12_206 = arith.constant 12 : index
    %c0_207 = arith.constant 0 : index
    %c0_208 = arith.constant 0 : index
    %503 = vector.load %arg5[%c12_206, %c0_207, %c0_208] : memref<68x16x128xbf16, #tpu.memory_space<vmem>>, vector<1x16x128xbf16>
    %504 = vector.shape_cast %503 : vector<1x16x128xbf16> to vector<16x128xbf16>
    %505 = arith.extf %504 : vector<16x128xbf16> to vector<16x128xf32>
    %506 = arith.subf %505, %301 : vector<16x128xf32>
    %507 = math.exp %506 : vector<16x128xf32>
    %508 = arith.addf %491, %507 : vector<16x128xf32>
    %c12_i32 = arith.constant 12 : i32
    %509 = vector.broadcast %c12_i32 : i32 to vector<16x128xi32>
    %510 = arith.cmpi eq, %229, %509 : vector<16x128xi32>
    %cst_209 = arith.constant 0.000000e+00 : f32
    %511 = vector.broadcast %cst_209 : f32 to vector<16x128xf32>
    %512 = arith.select %510, %232, %511 : vector<16x128xi1>, vector<16x128xf32>
    %c11_i32_210 = arith.constant 11 : i32
    %513 = vector.broadcast %c11_i32_210 : i32 to vector<16x128xi32>
    %514 = arith.cmpi eq, %229, %513 : vector<16x128xi32>
    %cst_211 = arith.constant 0.000000e+00 : f32
    %515 = vector.broadcast %cst_211 : f32 to vector<16x128xf32>
    %516 = arith.select %514, %234, %515 : vector<16x128xi1>, vector<16x128xf32>
    %517 = arith.addf %512, %516 : vector<16x128xf32>
    %518 = arith.mulf %505, %517 : vector<16x128xf32>
    %519 = arith.addf %502, %518 : vector<16x128xf32>
    %c13_212 = arith.constant 13 : index
    %c0_213 = arith.constant 0 : index
    %c0_214 = arith.constant 0 : index
    %520 = vector.load %arg5[%c13_212, %c0_213, %c0_214] : memref<68x16x128xbf16, #tpu.memory_space<vmem>>, vector<1x16x128xbf16>
    %521 = vector.shape_cast %520 : vector<1x16x128xbf16> to vector<16x128xbf16>
    %522 = arith.extf %521 : vector<16x128xbf16> to vector<16x128xf32>
    %523 = arith.subf %522, %301 : vector<16x128xf32>
    %524 = math.exp %523 : vector<16x128xf32>
    %525 = arith.addf %508, %524 : vector<16x128xf32>
    %c13_i32 = arith.constant 13 : i32
    %526 = vector.broadcast %c13_i32 : i32 to vector<16x128xi32>
    %527 = arith.cmpi eq, %229, %526 : vector<16x128xi32>
    %cst_215 = arith.constant 0.000000e+00 : f32
    %528 = vector.broadcast %cst_215 : f32 to vector<16x128xf32>
    %529 = arith.select %527, %232, %528 : vector<16x128xi1>, vector<16x128xf32>
    %c12_i32_216 = arith.constant 12 : i32
    %530 = vector.broadcast %c12_i32_216 : i32 to vector<16x128xi32>
    %531 = arith.cmpi eq, %229, %530 : vector<16x128xi32>
    %cst_217 = arith.constant 0.000000e+00 : f32
    %532 = vector.broadcast %cst_217 : f32 to vector<16x128xf32>
    %533 = arith.select %531, %234, %532 : vector<16x128xi1>, vector<16x128xf32>
    %534 = arith.addf %529, %533 : vector<16x128xf32>
    %535 = arith.mulf %522, %534 : vector<16x128xf32>
    %536 = arith.addf %519, %535 : vector<16x128xf32>
    %c14_218 = arith.constant 14 : index
    %c0_219 = arith.constant 0 : index
    %c0_220 = arith.constant 0 : index
    %537 = vector.load %arg5[%c14_218, %c0_219, %c0_220] : memref<68x16x128xbf16, #tpu.memory_space<vmem>>, vector<1x16x128xbf16>
    %538 = vector.shape_cast %537 : vector<1x16x128xbf16> to vector<16x128xbf16>
    %539 = arith.extf %538 : vector<16x128xbf16> to vector<16x128xf32>
    %540 = arith.subf %539, %301 : vector<16x128xf32>
    %541 = math.exp %540 : vector<16x128xf32>
    %542 = arith.addf %525, %541 : vector<16x128xf32>
    %c14_i32 = arith.constant 14 : i32
    %543 = vector.broadcast %c14_i32 : i32 to vector<16x128xi32>
    %544 = arith.cmpi eq, %229, %543 : vector<16x128xi32>
    %cst_221 = arith.constant 0.000000e+00 : f32
    %545 = vector.broadcast %cst_221 : f32 to vector<16x128xf32>
    %546 = arith.select %544, %232, %545 : vector<16x128xi1>, vector<16x128xf32>
    %c13_i32_222 = arith.constant 13 : i32
    %547 = vector.broadcast %c13_i32_222 : i32 to vector<16x128xi32>
    %548 = arith.cmpi eq, %229, %547 : vector<16x128xi32>
    %cst_223 = arith.constant 0.000000e+00 : f32
    %549 = vector.broadcast %cst_223 : f32 to vector<16x128xf32>
    %550 = arith.select %548, %234, %549 : vector<16x128xi1>, vector<16x128xf32>
    %551 = arith.addf %546, %550 : vector<16x128xf32>
    %552 = arith.mulf %539, %551 : vector<16x128xf32>
    %553 = arith.addf %536, %552 : vector<16x128xf32>
    %c15_224 = arith.constant 15 : index
    %c0_225 = arith.constant 0 : index
    %c0_226 = arith.constant 0 : index
    %554 = vector.load %arg5[%c15_224, %c0_225, %c0_226] : memref<68x16x128xbf16, #tpu.memory_space<vmem>>, vector<1x16x128xbf16>
    %555 = vector.shape_cast %554 : vector<1x16x128xbf16> to vector<16x128xbf16>
    %556 = arith.extf %555 : vector<16x128xbf16> to vector<16x128xf32>
    %557 = arith.subf %556, %301 : vector<16x128xf32>
    %558 = math.exp %557 : vector<16x128xf32>
    %559 = arith.addf %542, %558 : vector<16x128xf32>
    %c15_i32 = arith.constant 15 : i32
    %560 = vector.broadcast %c15_i32 : i32 to vector<16x128xi32>
    %561 = arith.cmpi eq, %229, %560 : vector<16x128xi32>
    %cst_227 = arith.constant 0.000000e+00 : f32
    %562 = vector.broadcast %cst_227 : f32 to vector<16x128xf32>
    %563 = arith.select %561, %232, %562 : vector<16x128xi1>, vector<16x128xf32>
    %c14_i32_228 = arith.constant 14 : i32
    %564 = vector.broadcast %c14_i32_228 : i32 to vector<16x128xi32>
    %565 = arith.cmpi eq, %229, %564 : vector<16x128xi32>
    %cst_229 = arith.constant 0.000000e+00 : f32
    %566 = vector.broadcast %cst_229 : f32 to vector<16x128xf32>
    %567 = arith.select %565, %234, %566 : vector<16x128xi1>, vector<16x128xf32>
    %568 = arith.addf %563, %567 : vector<16x128xf32>
    %569 = arith.mulf %556, %568 : vector<16x128xf32>
    %570 = arith.addf %553, %569 : vector<16x128xf32>
    %c16_230 = arith.constant 16 : index
    %c0_231 = arith.constant 0 : index
    %c0_232 = arith.constant 0 : index
    %571 = vector.load %arg5[%c16_230, %c0_231, %c0_232] : memref<68x16x128xbf16, #tpu.memory_space<vmem>>, vector<1x16x128xbf16>
    %572 = vector.shape_cast %571 : vector<1x16x128xbf16> to vector<16x128xbf16>
    %573 = arith.extf %572 : vector<16x128xbf16> to vector<16x128xf32>
    %574 = arith.subf %573, %301 : vector<16x128xf32>
    %575 = math.exp %574 : vector<16x128xf32>
    %576 = arith.addf %559, %575 : vector<16x128xf32>
    %c16_i32 = arith.constant 16 : i32
    %577 = vector.broadcast %c16_i32 : i32 to vector<16x128xi32>
    %578 = arith.cmpi eq, %229, %577 : vector<16x128xi32>
    %cst_233 = arith.constant 0.000000e+00 : f32
    %579 = vector.broadcast %cst_233 : f32 to vector<16x128xf32>
    %580 = arith.select %578, %232, %579 : vector<16x128xi1>, vector<16x128xf32>
    %c15_i32_234 = arith.constant 15 : i32
    %581 = vector.broadcast %c15_i32_234 : i32 to vector<16x128xi32>
    %582 = arith.cmpi eq, %229, %581 : vector<16x128xi32>
    %cst_235 = arith.constant 0.000000e+00 : f32
    %583 = vector.broadcast %cst_235 : f32 to vector<16x128xf32>
    %584 = arith.select %582, %234, %583 : vector<16x128xi1>, vector<16x128xf32>
    %585 = arith.addf %580, %584 : vector<16x128xf32>
    %586 = arith.mulf %573, %585 : vector<16x128xf32>
    %587 = arith.addf %570, %586 : vector<16x128xf32>
    %588 = math.log %576 : vector<16x128xf32>
    %589 = arith.addf %588, %301 : vector<16x128xf32>
    %590 = arith.subf %589, %587 : vector<16x128xf32>
    %591 = arith.addf %227, %590 : vector<16x128xf32>
    %592 = math.floor %216 : vector<16x128xf32>
    %593 = arith.fptosi %592 : vector<16x128xf32> to vector<16x128xi32>
    %cst_236 = arith.constant 1.000000e+00 : f32
    %594 = vector.broadcast %cst_236 : f32 to vector<16x128xf32>
    %595 = arith.addf %592, %594 : vector<16x128xf32>
    %596 = arith.subf %595, %216 : vector<16x128xf32>
    %cst_237 = arith.constant 1.000000e+00 : f32
    %597 = vector.broadcast %cst_237 : f32 to vector<16x128xf32>
    %598 = arith.subf %597, %596 : vector<16x128xf32>
    %c17 = arith.constant 17 : index
    %c0_238 = arith.constant 0 : index
    %c0_239 = arith.constant 0 : index
    %599 = vector.load %arg5[%c17, %c0_238, %c0_239] : memref<68x16x128xbf16, #tpu.memory_space<vmem>>, vector<1x16x128xbf16>
    %600 = vector.shape_cast %599 : vector<1x16x128xbf16> to vector<16x128xbf16>
    %601 = arith.extf %600 : vector<16x128xbf16> to vector<16x128xf32>
    %c18 = arith.constant 18 : index
    %c0_240 = arith.constant 0 : index
    %c0_241 = arith.constant 0 : index
    %602 = vector.load %arg5[%c18, %c0_240, %c0_241] : memref<68x16x128xbf16, #tpu.memory_space<vmem>>, vector<1x16x128xbf16>
    %603 = vector.shape_cast %602 : vector<1x16x128xbf16> to vector<16x128xbf16>
    %604 = arith.extf %603 : vector<16x128xbf16> to vector<16x128xf32>
    %605 = arith.maximumf %601, %604 : vector<16x128xf32>
    %c19 = arith.constant 19 : index
    %c0_242 = arith.constant 0 : index
    %c0_243 = arith.constant 0 : index
    %606 = vector.load %arg5[%c19, %c0_242, %c0_243] : memref<68x16x128xbf16, #tpu.memory_space<vmem>>, vector<1x16x128xbf16>
    %607 = vector.shape_cast %606 : vector<1x16x128xbf16> to vector<16x128xbf16>
    %608 = arith.extf %607 : vector<16x128xbf16> to vector<16x128xf32>
    %609 = arith.maximumf %605, %608 : vector<16x128xf32>
    %c20 = arith.constant 20 : index
    %c0_244 = arith.constant 0 : index
    %c0_245 = arith.constant 0 : index
    %610 = vector.load %arg5[%c20, %c0_244, %c0_245] : memref<68x16x128xbf16, #tpu.memory_space<vmem>>, vector<1x16x128xbf16>
    %611 = vector.shape_cast %610 : vector<1x16x128xbf16> to vector<16x128xbf16>
    %612 = arith.extf %611 : vector<16x128xbf16> to vector<16x128xf32>
    %613 = arith.maximumf %609, %612 : vector<16x128xf32>
    %c21 = arith.constant 21 : index
    %c0_246 = arith.constant 0 : index
    %c0_247 = arith.constant 0 : index
    %614 = vector.load %arg5[%c21, %c0_246, %c0_247] : memref<68x16x128xbf16, #tpu.memory_space<vmem>>, vector<1x16x128xbf16>
    %615 = vector.shape_cast %614 : vector<1x16x128xbf16> to vector<16x128xbf16>
    %616 = arith.extf %615 : vector<16x128xbf16> to vector<16x128xf32>
    %617 = arith.maximumf %613, %616 : vector<16x128xf32>
    %c22 = arith.constant 22 : index
    %c0_248 = arith.constant 0 : index
    %c0_249 = arith.constant 0 : index
    %618 = vector.load %arg5[%c22, %c0_248, %c0_249] : memref<68x16x128xbf16, #tpu.memory_space<vmem>>, vector<1x16x128xbf16>
    %619 = vector.shape_cast %618 : vector<1x16x128xbf16> to vector<16x128xbf16>
    %620 = arith.extf %619 : vector<16x128xbf16> to vector<16x128xf32>
    %621 = arith.maximumf %617, %620 : vector<16x128xf32>
    %c23 = arith.constant 23 : index
    %c0_250 = arith.constant 0 : index
    %c0_251 = arith.constant 0 : index
    %622 = vector.load %arg5[%c23, %c0_250, %c0_251] : memref<68x16x128xbf16, #tpu.memory_space<vmem>>, vector<1x16x128xbf16>
    %623 = vector.shape_cast %622 : vector<1x16x128xbf16> to vector<16x128xbf16>
    %624 = arith.extf %623 : vector<16x128xbf16> to vector<16x128xf32>
    %625 = arith.maximumf %621, %624 : vector<16x128xf32>
    %c24 = arith.constant 24 : index
    %c0_252 = arith.constant 0 : index
    %c0_253 = arith.constant 0 : index
    %626 = vector.load %arg5[%c24, %c0_252, %c0_253] : memref<68x16x128xbf16, #tpu.memory_space<vmem>>, vector<1x16x128xbf16>
    %627 = vector.shape_cast %626 : vector<1x16x128xbf16> to vector<16x128xbf16>
    %628 = arith.extf %627 : vector<16x128xbf16> to vector<16x128xf32>
    %629 = arith.maximumf %625, %628 : vector<16x128xf32>
    %c25 = arith.constant 25 : index
    %c0_254 = arith.constant 0 : index
    %c0_255 = arith.constant 0 : index
    %630 = vector.load %arg5[%c25, %c0_254, %c0_255] : memref<68x16x128xbf16, #tpu.memory_space<vmem>>, vector<1x16x128xbf16>
    %631 = vector.shape_cast %630 : vector<1x16x128xbf16> to vector<16x128xbf16>
    %632 = arith.extf %631 : vector<16x128xbf16> to vector<16x128xf32>
    %633 = arith.maximumf %629, %632 : vector<16x128xf32>
    %c26 = arith.constant 26 : index
    %c0_256 = arith.constant 0 : index
    %c0_257 = arith.constant 0 : index
    %634 = vector.load %arg5[%c26, %c0_256, %c0_257] : memref<68x16x128xbf16, #tpu.memory_space<vmem>>, vector<1x16x128xbf16>
    %635 = vector.shape_cast %634 : vector<1x16x128xbf16> to vector<16x128xbf16>
    %636 = arith.extf %635 : vector<16x128xbf16> to vector<16x128xf32>
    %637 = arith.maximumf %633, %636 : vector<16x128xf32>
    %c27 = arith.constant 27 : index
    %c0_258 = arith.constant 0 : index
    %c0_259 = arith.constant 0 : index
    %638 = vector.load %arg5[%c27, %c0_258, %c0_259] : memref<68x16x128xbf16, #tpu.memory_space<vmem>>, vector<1x16x128xbf16>
    %639 = vector.shape_cast %638 : vector<1x16x128xbf16> to vector<16x128xbf16>
    %640 = arith.extf %639 : vector<16x128xbf16> to vector<16x128xf32>
    %641 = arith.maximumf %637, %640 : vector<16x128xf32>
    %c28 = arith.constant 28 : index
    %c0_260 = arith.constant 0 : index
    %c0_261 = arith.constant 0 : index
    %642 = vector.load %arg5[%c28, %c0_260, %c0_261] : memref<68x16x128xbf16, #tpu.memory_space<vmem>>, vector<1x16x128xbf16>
    %643 = vector.shape_cast %642 : vector<1x16x128xbf16> to vector<16x128xbf16>
    %644 = arith.extf %643 : vector<16x128xbf16> to vector<16x128xf32>
    %645 = arith.maximumf %641, %644 : vector<16x128xf32>
    %c29 = arith.constant 29 : index
    %c0_262 = arith.constant 0 : index
    %c0_263 = arith.constant 0 : index
    %646 = vector.load %arg5[%c29, %c0_262, %c0_263] : memref<68x16x128xbf16, #tpu.memory_space<vmem>>, vector<1x16x128xbf16>
    %647 = vector.shape_cast %646 : vector<1x16x128xbf16> to vector<16x128xbf16>
    %648 = arith.extf %647 : vector<16x128xbf16> to vector<16x128xf32>
    %649 = arith.maximumf %645, %648 : vector<16x128xf32>
    %c30 = arith.constant 30 : index
    %c0_264 = arith.constant 0 : index
    %c0_265 = arith.constant 0 : index
    %650 = vector.load %arg5[%c30, %c0_264, %c0_265] : memref<68x16x128xbf16, #tpu.memory_space<vmem>>, vector<1x16x128xbf16>
    %651 = vector.shape_cast %650 : vector<1x16x128xbf16> to vector<16x128xbf16>
    %652 = arith.extf %651 : vector<16x128xbf16> to vector<16x128xf32>
    %653 = arith.maximumf %649, %652 : vector<16x128xf32>
    %c31 = arith.constant 31 : index
    %c0_266 = arith.constant 0 : index
    %c0_267 = arith.constant 0 : index
    %654 = vector.load %arg5[%c31, %c0_266, %c0_267] : memref<68x16x128xbf16, #tpu.memory_space<vmem>>, vector<1x16x128xbf16>
    %655 = vector.shape_cast %654 : vector<1x16x128xbf16> to vector<16x128xbf16>
    %656 = arith.extf %655 : vector<16x128xbf16> to vector<16x128xf32>
    %657 = arith.maximumf %653, %656 : vector<16x128xf32>
    %c32 = arith.constant 32 : index
    %c0_268 = arith.constant 0 : index
    %c0_269 = arith.constant 0 : index
    %658 = vector.load %arg5[%c32, %c0_268, %c0_269] : memref<68x16x128xbf16, #tpu.memory_space<vmem>>, vector<1x16x128xbf16>
    %659 = vector.shape_cast %658 : vector<1x16x128xbf16> to vector<16x128xbf16>
    %660 = arith.extf %659 : vector<16x128xbf16> to vector<16x128xf32>
    %661 = arith.maximumf %657, %660 : vector<16x128xf32>
    %c33 = arith.constant 33 : index
    %c0_270 = arith.constant 0 : index
    %c0_271 = arith.constant 0 : index
    %662 = vector.load %arg5[%c33, %c0_270, %c0_271] : memref<68x16x128xbf16, #tpu.memory_space<vmem>>, vector<1x16x128xbf16>
    %663 = vector.shape_cast %662 : vector<1x16x128xbf16> to vector<16x128xbf16>
    %664 = arith.extf %663 : vector<16x128xbf16> to vector<16x128xf32>
    %665 = arith.maximumf %661, %664 : vector<16x128xf32>
    %cst_272 = arith.constant 0.000000e+00 : f32
    %666 = vector.broadcast %cst_272 : f32 to vector<16x128xf32>
    %cst_273 = arith.constant 0.000000e+00 : f32
    %667 = vector.broadcast %cst_273 : f32 to vector<16x128xf32>
    %c17_274 = arith.constant 17 : index
    %c0_275 = arith.constant 0 : index
    %c0_276 = arith.constant 0 : index
    %668 = vector.load %arg5[%c17_274, %c0_275, %c0_276] : memref<68x16x128xbf16, #tpu.memory_space<vmem>>, vector<1x16x128xbf16>
    %669 = vector.shape_cast %668 : vector<1x16x128xbf16> to vector<16x128xbf16>
    %670 = arith.extf %669 : vector<16x128xbf16> to vector<16x128xf32>
    %671 = arith.subf %670, %665 : vector<16x128xf32>
    %672 = math.exp %671 : vector<16x128xf32>
    %673 = arith.addf %666, %672 : vector<16x128xf32>
    %c0_i32_277 = arith.constant 0 : i32
    %674 = vector.broadcast %c0_i32_277 : i32 to vector<16x128xi32>
    %675 = arith.cmpi eq, %593, %674 : vector<16x128xi32>
    %cst_278 = arith.constant 0.000000e+00 : f32
    %676 = vector.broadcast %cst_278 : f32 to vector<16x128xf32>
    %677 = arith.select %675, %596, %676 : vector<16x128xi1>, vector<16x128xf32>
    %678 = arith.mulf %670, %677 : vector<16x128xf32>
    %679 = arith.addf %667, %678 : vector<16x128xf32>
    %c18_279 = arith.constant 18 : index
    %c0_280 = arith.constant 0 : index
    %c0_281 = arith.constant 0 : index
    %680 = vector.load %arg5[%c18_279, %c0_280, %c0_281] : memref<68x16x128xbf16, #tpu.memory_space<vmem>>, vector<1x16x128xbf16>
    %681 = vector.shape_cast %680 : vector<1x16x128xbf16> to vector<16x128xbf16>
    %682 = arith.extf %681 : vector<16x128xbf16> to vector<16x128xf32>
    %683 = arith.subf %682, %665 : vector<16x128xf32>
    %684 = math.exp %683 : vector<16x128xf32>
    %685 = arith.addf %673, %684 : vector<16x128xf32>
    %c1_i32_282 = arith.constant 1 : i32
    %686 = vector.broadcast %c1_i32_282 : i32 to vector<16x128xi32>
    %687 = arith.cmpi eq, %593, %686 : vector<16x128xi32>
    %cst_283 = arith.constant 0.000000e+00 : f32
    %688 = vector.broadcast %cst_283 : f32 to vector<16x128xf32>
    %689 = arith.select %687, %596, %688 : vector<16x128xi1>, vector<16x128xf32>
    %c0_i32_284 = arith.constant 0 : i32
    %690 = vector.broadcast %c0_i32_284 : i32 to vector<16x128xi32>
    %691 = arith.cmpi eq, %593, %690 : vector<16x128xi32>
    %cst_285 = arith.constant 0.000000e+00 : f32
    %692 = vector.broadcast %cst_285 : f32 to vector<16x128xf32>
    %693 = arith.select %691, %598, %692 : vector<16x128xi1>, vector<16x128xf32>
    %694 = arith.addf %689, %693 : vector<16x128xf32>
    %695 = arith.mulf %682, %694 : vector<16x128xf32>
    %696 = arith.addf %679, %695 : vector<16x128xf32>
    %c19_286 = arith.constant 19 : index
    %c0_287 = arith.constant 0 : index
    %c0_288 = arith.constant 0 : index
    %697 = vector.load %arg5[%c19_286, %c0_287, %c0_288] : memref<68x16x128xbf16, #tpu.memory_space<vmem>>, vector<1x16x128xbf16>
    %698 = vector.shape_cast %697 : vector<1x16x128xbf16> to vector<16x128xbf16>
    %699 = arith.extf %698 : vector<16x128xbf16> to vector<16x128xf32>
    %700 = arith.subf %699, %665 : vector<16x128xf32>
    %701 = math.exp %700 : vector<16x128xf32>
    %702 = arith.addf %685, %701 : vector<16x128xf32>
    %c2_i32_289 = arith.constant 2 : i32
    %703 = vector.broadcast %c2_i32_289 : i32 to vector<16x128xi32>
    %704 = arith.cmpi eq, %593, %703 : vector<16x128xi32>
    %cst_290 = arith.constant 0.000000e+00 : f32
    %705 = vector.broadcast %cst_290 : f32 to vector<16x128xf32>
    %706 = arith.select %704, %596, %705 : vector<16x128xi1>, vector<16x128xf32>
    %c1_i32_291 = arith.constant 1 : i32
    %707 = vector.broadcast %c1_i32_291 : i32 to vector<16x128xi32>
    %708 = arith.cmpi eq, %593, %707 : vector<16x128xi32>
    %cst_292 = arith.constant 0.000000e+00 : f32
    %709 = vector.broadcast %cst_292 : f32 to vector<16x128xf32>
    %710 = arith.select %708, %598, %709 : vector<16x128xi1>, vector<16x128xf32>
    %711 = arith.addf %706, %710 : vector<16x128xf32>
    %712 = arith.mulf %699, %711 : vector<16x128xf32>
    %713 = arith.addf %696, %712 : vector<16x128xf32>
    %c20_293 = arith.constant 20 : index
    %c0_294 = arith.constant 0 : index
    %c0_295 = arith.constant 0 : index
    %714 = vector.load %arg5[%c20_293, %c0_294, %c0_295] : memref<68x16x128xbf16, #tpu.memory_space<vmem>>, vector<1x16x128xbf16>
    %715 = vector.shape_cast %714 : vector<1x16x128xbf16> to vector<16x128xbf16>
    %716 = arith.extf %715 : vector<16x128xbf16> to vector<16x128xf32>
    %717 = arith.subf %716, %665 : vector<16x128xf32>
    %718 = math.exp %717 : vector<16x128xf32>
    %719 = arith.addf %702, %718 : vector<16x128xf32>
    %c3_i32_296 = arith.constant 3 : i32
    %720 = vector.broadcast %c3_i32_296 : i32 to vector<16x128xi32>
    %721 = arith.cmpi eq, %593, %720 : vector<16x128xi32>
    %cst_297 = arith.constant 0.000000e+00 : f32
    %722 = vector.broadcast %cst_297 : f32 to vector<16x128xf32>
    %723 = arith.select %721, %596, %722 : vector<16x128xi1>, vector<16x128xf32>
    %c2_i32_298 = arith.constant 2 : i32
    %724 = vector.broadcast %c2_i32_298 : i32 to vector<16x128xi32>
    %725 = arith.cmpi eq, %593, %724 : vector<16x128xi32>
    %cst_299 = arith.constant 0.000000e+00 : f32
    %726 = vector.broadcast %cst_299 : f32 to vector<16x128xf32>
    %727 = arith.select %725, %598, %726 : vector<16x128xi1>, vector<16x128xf32>
    %728 = arith.addf %723, %727 : vector<16x128xf32>
    %729 = arith.mulf %716, %728 : vector<16x128xf32>
    %730 = arith.addf %713, %729 : vector<16x128xf32>
    %c21_300 = arith.constant 21 : index
    %c0_301 = arith.constant 0 : index
    %c0_302 = arith.constant 0 : index
    %731 = vector.load %arg5[%c21_300, %c0_301, %c0_302] : memref<68x16x128xbf16, #tpu.memory_space<vmem>>, vector<1x16x128xbf16>
    %732 = vector.shape_cast %731 : vector<1x16x128xbf16> to vector<16x128xbf16>
    %733 = arith.extf %732 : vector<16x128xbf16> to vector<16x128xf32>
    %734 = arith.subf %733, %665 : vector<16x128xf32>
    %735 = math.exp %734 : vector<16x128xf32>
    %736 = arith.addf %719, %735 : vector<16x128xf32>
    %c4_i32_303 = arith.constant 4 : i32
    %737 = vector.broadcast %c4_i32_303 : i32 to vector<16x128xi32>
    %738 = arith.cmpi eq, %593, %737 : vector<16x128xi32>
    %cst_304 = arith.constant 0.000000e+00 : f32
    %739 = vector.broadcast %cst_304 : f32 to vector<16x128xf32>
    %740 = arith.select %738, %596, %739 : vector<16x128xi1>, vector<16x128xf32>
    %c3_i32_305 = arith.constant 3 : i32
    %741 = vector.broadcast %c3_i32_305 : i32 to vector<16x128xi32>
    %742 = arith.cmpi eq, %593, %741 : vector<16x128xi32>
    %cst_306 = arith.constant 0.000000e+00 : f32
    %743 = vector.broadcast %cst_306 : f32 to vector<16x128xf32>
    %744 = arith.select %742, %598, %743 : vector<16x128xi1>, vector<16x128xf32>
    %745 = arith.addf %740, %744 : vector<16x128xf32>
    %746 = arith.mulf %733, %745 : vector<16x128xf32>
    %747 = arith.addf %730, %746 : vector<16x128xf32>
    %c22_307 = arith.constant 22 : index
    %c0_308 = arith.constant 0 : index
    %c0_309 = arith.constant 0 : index
    %748 = vector.load %arg5[%c22_307, %c0_308, %c0_309] : memref<68x16x128xbf16, #tpu.memory_space<vmem>>, vector<1x16x128xbf16>
    %749 = vector.shape_cast %748 : vector<1x16x128xbf16> to vector<16x128xbf16>
    %750 = arith.extf %749 : vector<16x128xbf16> to vector<16x128xf32>
    %751 = arith.subf %750, %665 : vector<16x128xf32>
    %752 = math.exp %751 : vector<16x128xf32>
    %753 = arith.addf %736, %752 : vector<16x128xf32>
    %c5_i32_310 = arith.constant 5 : i32
    %754 = vector.broadcast %c5_i32_310 : i32 to vector<16x128xi32>
    %755 = arith.cmpi eq, %593, %754 : vector<16x128xi32>
    %cst_311 = arith.constant 0.000000e+00 : f32
    %756 = vector.broadcast %cst_311 : f32 to vector<16x128xf32>
    %757 = arith.select %755, %596, %756 : vector<16x128xi1>, vector<16x128xf32>
    %c4_i32_312 = arith.constant 4 : i32
    %758 = vector.broadcast %c4_i32_312 : i32 to vector<16x128xi32>
    %759 = arith.cmpi eq, %593, %758 : vector<16x128xi32>
    %cst_313 = arith.constant 0.000000e+00 : f32
    %760 = vector.broadcast %cst_313 : f32 to vector<16x128xf32>
    %761 = arith.select %759, %598, %760 : vector<16x128xi1>, vector<16x128xf32>
    %762 = arith.addf %757, %761 : vector<16x128xf32>
    %763 = arith.mulf %750, %762 : vector<16x128xf32>
    %764 = arith.addf %747, %763 : vector<16x128xf32>
    %c23_314 = arith.constant 23 : index
    %c0_315 = arith.constant 0 : index
    %c0_316 = arith.constant 0 : index
    %765 = vector.load %arg5[%c23_314, %c0_315, %c0_316] : memref<68x16x128xbf16, #tpu.memory_space<vmem>>, vector<1x16x128xbf16>
    %766 = vector.shape_cast %765 : vector<1x16x128xbf16> to vector<16x128xbf16>
    %767 = arith.extf %766 : vector<16x128xbf16> to vector<16x128xf32>
    %768 = arith.subf %767, %665 : vector<16x128xf32>
    %769 = math.exp %768 : vector<16x128xf32>
    %770 = arith.addf %753, %769 : vector<16x128xf32>
    %c6_i32_317 = arith.constant 6 : i32
    %771 = vector.broadcast %c6_i32_317 : i32 to vector<16x128xi32>
    %772 = arith.cmpi eq, %593, %771 : vector<16x128xi32>
    %cst_318 = arith.constant 0.000000e+00 : f32
    %773 = vector.broadcast %cst_318 : f32 to vector<16x128xf32>
    %774 = arith.select %772, %596, %773 : vector<16x128xi1>, vector<16x128xf32>
    %c5_i32_319 = arith.constant 5 : i32
    %775 = vector.broadcast %c5_i32_319 : i32 to vector<16x128xi32>
    %776 = arith.cmpi eq, %593, %775 : vector<16x128xi32>
    %cst_320 = arith.constant 0.000000e+00 : f32
    %777 = vector.broadcast %cst_320 : f32 to vector<16x128xf32>
    %778 = arith.select %776, %598, %777 : vector<16x128xi1>, vector<16x128xf32>
    %779 = arith.addf %774, %778 : vector<16x128xf32>
    %780 = arith.mulf %767, %779 : vector<16x128xf32>
    %781 = arith.addf %764, %780 : vector<16x128xf32>
    %c24_321 = arith.constant 24 : index
    %c0_322 = arith.constant 0 : index
    %c0_323 = arith.constant 0 : index
    %782 = vector.load %arg5[%c24_321, %c0_322, %c0_323] : memref<68x16x128xbf16, #tpu.memory_space<vmem>>, vector<1x16x128xbf16>
    %783 = vector.shape_cast %782 : vector<1x16x128xbf16> to vector<16x128xbf16>
    %784 = arith.extf %783 : vector<16x128xbf16> to vector<16x128xf32>
    %785 = arith.subf %784, %665 : vector<16x128xf32>
    %786 = math.exp %785 : vector<16x128xf32>
    %787 = arith.addf %770, %786 : vector<16x128xf32>
    %c7_i32_324 = arith.constant 7 : i32
    %788 = vector.broadcast %c7_i32_324 : i32 to vector<16x128xi32>
    %789 = arith.cmpi eq, %593, %788 : vector<16x128xi32>
    %cst_325 = arith.constant 0.000000e+00 : f32
    %790 = vector.broadcast %cst_325 : f32 to vector<16x128xf32>
    %791 = arith.select %789, %596, %790 : vector<16x128xi1>, vector<16x128xf32>
    %c6_i32_326 = arith.constant 6 : i32
    %792 = vector.broadcast %c6_i32_326 : i32 to vector<16x128xi32>
    %793 = arith.cmpi eq, %593, %792 : vector<16x128xi32>
    %cst_327 = arith.constant 0.000000e+00 : f32
    %794 = vector.broadcast %cst_327 : f32 to vector<16x128xf32>
    %795 = arith.select %793, %598, %794 : vector<16x128xi1>, vector<16x128xf32>
    %796 = arith.addf %791, %795 : vector<16x128xf32>
    %797 = arith.mulf %784, %796 : vector<16x128xf32>
    %798 = arith.addf %781, %797 : vector<16x128xf32>
    %c25_328 = arith.constant 25 : index
    %c0_329 = arith.constant 0 : index
    %c0_330 = arith.constant 0 : index
    %799 = vector.load %arg5[%c25_328, %c0_329, %c0_330] : memref<68x16x128xbf16, #tpu.memory_space<vmem>>, vector<1x16x128xbf16>
    %800 = vector.shape_cast %799 : vector<1x16x128xbf16> to vector<16x128xbf16>
    %801 = arith.extf %800 : vector<16x128xbf16> to vector<16x128xf32>
    %802 = arith.subf %801, %665 : vector<16x128xf32>
    %803 = math.exp %802 : vector<16x128xf32>
    %804 = arith.addf %787, %803 : vector<16x128xf32>
    %c8_i32_331 = arith.constant 8 : i32
    %805 = vector.broadcast %c8_i32_331 : i32 to vector<16x128xi32>
    %806 = arith.cmpi eq, %593, %805 : vector<16x128xi32>
    %cst_332 = arith.constant 0.000000e+00 : f32
    %807 = vector.broadcast %cst_332 : f32 to vector<16x128xf32>
    %808 = arith.select %806, %596, %807 : vector<16x128xi1>, vector<16x128xf32>
    %c7_i32_333 = arith.constant 7 : i32
    %809 = vector.broadcast %c7_i32_333 : i32 to vector<16x128xi32>
    %810 = arith.cmpi eq, %593, %809 : vector<16x128xi32>
    %cst_334 = arith.constant 0.000000e+00 : f32
    %811 = vector.broadcast %cst_334 : f32 to vector<16x128xf32>
    %812 = arith.select %810, %598, %811 : vector<16x128xi1>, vector<16x128xf32>
    %813 = arith.addf %808, %812 : vector<16x128xf32>
    %814 = arith.mulf %801, %813 : vector<16x128xf32>
    %815 = arith.addf %798, %814 : vector<16x128xf32>
    %c26_335 = arith.constant 26 : index
    %c0_336 = arith.constant 0 : index
    %c0_337 = arith.constant 0 : index
    %816 = vector.load %arg5[%c26_335, %c0_336, %c0_337] : memref<68x16x128xbf16, #tpu.memory_space<vmem>>, vector<1x16x128xbf16>
    %817 = vector.shape_cast %816 : vector<1x16x128xbf16> to vector<16x128xbf16>
    %818 = arith.extf %817 : vector<16x128xbf16> to vector<16x128xf32>
    %819 = arith.subf %818, %665 : vector<16x128xf32>
    %820 = math.exp %819 : vector<16x128xf32>
    %821 = arith.addf %804, %820 : vector<16x128xf32>
    %c9_i32_338 = arith.constant 9 : i32
    %822 = vector.broadcast %c9_i32_338 : i32 to vector<16x128xi32>
    %823 = arith.cmpi eq, %593, %822 : vector<16x128xi32>
    %cst_339 = arith.constant 0.000000e+00 : f32
    %824 = vector.broadcast %cst_339 : f32 to vector<16x128xf32>
    %825 = arith.select %823, %596, %824 : vector<16x128xi1>, vector<16x128xf32>
    %c8_i32_340 = arith.constant 8 : i32
    %826 = vector.broadcast %c8_i32_340 : i32 to vector<16x128xi32>
    %827 = arith.cmpi eq, %593, %826 : vector<16x128xi32>
    %cst_341 = arith.constant 0.000000e+00 : f32
    %828 = vector.broadcast %cst_341 : f32 to vector<16x128xf32>
    %829 = arith.select %827, %598, %828 : vector<16x128xi1>, vector<16x128xf32>
    %830 = arith.addf %825, %829 : vector<16x128xf32>
    %831 = arith.mulf %818, %830 : vector<16x128xf32>
    %832 = arith.addf %815, %831 : vector<16x128xf32>
    %c27_342 = arith.constant 27 : index
    %c0_343 = arith.constant 0 : index
    %c0_344 = arith.constant 0 : index
    %833 = vector.load %arg5[%c27_342, %c0_343, %c0_344] : memref<68x16x128xbf16, #tpu.memory_space<vmem>>, vector<1x16x128xbf16>
    %834 = vector.shape_cast %833 : vector<1x16x128xbf16> to vector<16x128xbf16>
    %835 = arith.extf %834 : vector<16x128xbf16> to vector<16x128xf32>
    %836 = arith.subf %835, %665 : vector<16x128xf32>
    %837 = math.exp %836 : vector<16x128xf32>
    %838 = arith.addf %821, %837 : vector<16x128xf32>
    %c10_i32_345 = arith.constant 10 : i32
    %839 = vector.broadcast %c10_i32_345 : i32 to vector<16x128xi32>
    %840 = arith.cmpi eq, %593, %839 : vector<16x128xi32>
    %cst_346 = arith.constant 0.000000e+00 : f32
    %841 = vector.broadcast %cst_346 : f32 to vector<16x128xf32>
    %842 = arith.select %840, %596, %841 : vector<16x128xi1>, vector<16x128xf32>
    %c9_i32_347 = arith.constant 9 : i32
    %843 = vector.broadcast %c9_i32_347 : i32 to vector<16x128xi32>
    %844 = arith.cmpi eq, %593, %843 : vector<16x128xi32>
    %cst_348 = arith.constant 0.000000e+00 : f32
    %845 = vector.broadcast %cst_348 : f32 to vector<16x128xf32>
    %846 = arith.select %844, %598, %845 : vector<16x128xi1>, vector<16x128xf32>
    %847 = arith.addf %842, %846 : vector<16x128xf32>
    %848 = arith.mulf %835, %847 : vector<16x128xf32>
    %849 = arith.addf %832, %848 : vector<16x128xf32>
    %c28_349 = arith.constant 28 : index
    %c0_350 = arith.constant 0 : index
    %c0_351 = arith.constant 0 : index
    %850 = vector.load %arg5[%c28_349, %c0_350, %c0_351] : memref<68x16x128xbf16, #tpu.memory_space<vmem>>, vector<1x16x128xbf16>
    %851 = vector.shape_cast %850 : vector<1x16x128xbf16> to vector<16x128xbf16>
    %852 = arith.extf %851 : vector<16x128xbf16> to vector<16x128xf32>
    %853 = arith.subf %852, %665 : vector<16x128xf32>
    %854 = math.exp %853 : vector<16x128xf32>
    %855 = arith.addf %838, %854 : vector<16x128xf32>
    %c11_i32_352 = arith.constant 11 : i32
    %856 = vector.broadcast %c11_i32_352 : i32 to vector<16x128xi32>
    %857 = arith.cmpi eq, %593, %856 : vector<16x128xi32>
    %cst_353 = arith.constant 0.000000e+00 : f32
    %858 = vector.broadcast %cst_353 : f32 to vector<16x128xf32>
    %859 = arith.select %857, %596, %858 : vector<16x128xi1>, vector<16x128xf32>
    %c10_i32_354 = arith.constant 10 : i32
    %860 = vector.broadcast %c10_i32_354 : i32 to vector<16x128xi32>
    %861 = arith.cmpi eq, %593, %860 : vector<16x128xi32>
    %cst_355 = arith.constant 0.000000e+00 : f32
    %862 = vector.broadcast %cst_355 : f32 to vector<16x128xf32>
    %863 = arith.select %861, %598, %862 : vector<16x128xi1>, vector<16x128xf32>
    %864 = arith.addf %859, %863 : vector<16x128xf32>
    %865 = arith.mulf %852, %864 : vector<16x128xf32>
    %866 = arith.addf %849, %865 : vector<16x128xf32>
    %c29_356 = arith.constant 29 : index
    %c0_357 = arith.constant 0 : index
    %c0_358 = arith.constant 0 : index
    %867 = vector.load %arg5[%c29_356, %c0_357, %c0_358] : memref<68x16x128xbf16, #tpu.memory_space<vmem>>, vector<1x16x128xbf16>
    %868 = vector.shape_cast %867 : vector<1x16x128xbf16> to vector<16x128xbf16>
    %869 = arith.extf %868 : vector<16x128xbf16> to vector<16x128xf32>
    %870 = arith.subf %869, %665 : vector<16x128xf32>
    %871 = math.exp %870 : vector<16x128xf32>
    %872 = arith.addf %855, %871 : vector<16x128xf32>
    %c12_i32_359 = arith.constant 12 : i32
    %873 = vector.broadcast %c12_i32_359 : i32 to vector<16x128xi32>
    %874 = arith.cmpi eq, %593, %873 : vector<16x128xi32>
    %cst_360 = arith.constant 0.000000e+00 : f32
    %875 = vector.broadcast %cst_360 : f32 to vector<16x128xf32>
    %876 = arith.select %874, %596, %875 : vector<16x128xi1>, vector<16x128xf32>
    %c11_i32_361 = arith.constant 11 : i32
    %877 = vector.broadcast %c11_i32_361 : i32 to vector<16x128xi32>
    %878 = arith.cmpi eq, %593, %877 : vector<16x128xi32>
    %cst_362 = arith.constant 0.000000e+00 : f32
    %879 = vector.broadcast %cst_362 : f32 to vector<16x128xf32>
    %880 = arith.select %878, %598, %879 : vector<16x128xi1>, vector<16x128xf32>
    %881 = arith.addf %876, %880 : vector<16x128xf32>
    %882 = arith.mulf %869, %881 : vector<16x128xf32>
    %883 = arith.addf %866, %882 : vector<16x128xf32>
    %c30_363 = arith.constant 30 : index
    %c0_364 = arith.constant 0 : index
    %c0_365 = arith.constant 0 : index
    %884 = vector.load %arg5[%c30_363, %c0_364, %c0_365] : memref<68x16x128xbf16, #tpu.memory_space<vmem>>, vector<1x16x128xbf16>
    %885 = vector.shape_cast %884 : vector<1x16x128xbf16> to vector<16x128xbf16>
    %886 = arith.extf %885 : vector<16x128xbf16> to vector<16x128xf32>
    %887 = arith.subf %886, %665 : vector<16x128xf32>
    %888 = math.exp %887 : vector<16x128xf32>
    %889 = arith.addf %872, %888 : vector<16x128xf32>
    %c13_i32_366 = arith.constant 13 : i32
    %890 = vector.broadcast %c13_i32_366 : i32 to vector<16x128xi32>
    %891 = arith.cmpi eq, %593, %890 : vector<16x128xi32>
    %cst_367 = arith.constant 0.000000e+00 : f32
    %892 = vector.broadcast %cst_367 : f32 to vector<16x128xf32>
    %893 = arith.select %891, %596, %892 : vector<16x128xi1>, vector<16x128xf32>
    %c12_i32_368 = arith.constant 12 : i32
    %894 = vector.broadcast %c12_i32_368 : i32 to vector<16x128xi32>
    %895 = arith.cmpi eq, %593, %894 : vector<16x128xi32>
    %cst_369 = arith.constant 0.000000e+00 : f32
    %896 = vector.broadcast %cst_369 : f32 to vector<16x128xf32>
    %897 = arith.select %895, %598, %896 : vector<16x128xi1>, vector<16x128xf32>
    %898 = arith.addf %893, %897 : vector<16x128xf32>
    %899 = arith.mulf %886, %898 : vector<16x128xf32>
    %900 = arith.addf %883, %899 : vector<16x128xf32>
    %c31_370 = arith.constant 31 : index
    %c0_371 = arith.constant 0 : index
    %c0_372 = arith.constant 0 : index
    %901 = vector.load %arg5[%c31_370, %c0_371, %c0_372] : memref<68x16x128xbf16, #tpu.memory_space<vmem>>, vector<1x16x128xbf16>
    %902 = vector.shape_cast %901 : vector<1x16x128xbf16> to vector<16x128xbf16>
    %903 = arith.extf %902 : vector<16x128xbf16> to vector<16x128xf32>
    %904 = arith.subf %903, %665 : vector<16x128xf32>
    %905 = math.exp %904 : vector<16x128xf32>
    %906 = arith.addf %889, %905 : vector<16x128xf32>
    %c14_i32_373 = arith.constant 14 : i32
    %907 = vector.broadcast %c14_i32_373 : i32 to vector<16x128xi32>
    %908 = arith.cmpi eq, %593, %907 : vector<16x128xi32>
    %cst_374 = arith.constant 0.000000e+00 : f32
    %909 = vector.broadcast %cst_374 : f32 to vector<16x128xf32>
    %910 = arith.select %908, %596, %909 : vector<16x128xi1>, vector<16x128xf32>
    %c13_i32_375 = arith.constant 13 : i32
    %911 = vector.broadcast %c13_i32_375 : i32 to vector<16x128xi32>
    %912 = arith.cmpi eq, %593, %911 : vector<16x128xi32>
    %cst_376 = arith.constant 0.000000e+00 : f32
    %913 = vector.broadcast %cst_376 : f32 to vector<16x128xf32>
    %914 = arith.select %912, %598, %913 : vector<16x128xi1>, vector<16x128xf32>
    %915 = arith.addf %910, %914 : vector<16x128xf32>
    %916 = arith.mulf %903, %915 : vector<16x128xf32>
    %917 = arith.addf %900, %916 : vector<16x128xf32>
    %c32_377 = arith.constant 32 : index
    %c0_378 = arith.constant 0 : index
    %c0_379 = arith.constant 0 : index
    %918 = vector.load %arg5[%c32_377, %c0_378, %c0_379] : memref<68x16x128xbf16, #tpu.memory_space<vmem>>, vector<1x16x128xbf16>
    %919 = vector.shape_cast %918 : vector<1x16x128xbf16> to vector<16x128xbf16>
    %920 = arith.extf %919 : vector<16x128xbf16> to vector<16x128xf32>
    %921 = arith.subf %920, %665 : vector<16x128xf32>
    %922 = math.exp %921 : vector<16x128xf32>
    %923 = arith.addf %906, %922 : vector<16x128xf32>
    %c15_i32_380 = arith.constant 15 : i32
    %924 = vector.broadcast %c15_i32_380 : i32 to vector<16x128xi32>
    %925 = arith.cmpi eq, %593, %924 : vector<16x128xi32>
    %cst_381 = arith.constant 0.000000e+00 : f32
    %926 = vector.broadcast %cst_381 : f32 to vector<16x128xf32>
    %927 = arith.select %925, %596, %926 : vector<16x128xi1>, vector<16x128xf32>
    %c14_i32_382 = arith.constant 14 : i32
    %928 = vector.broadcast %c14_i32_382 : i32 to vector<16x128xi32>
    %929 = arith.cmpi eq, %593, %928 : vector<16x128xi32>
    %cst_383 = arith.constant 0.000000e+00 : f32
    %930 = vector.broadcast %cst_383 : f32 to vector<16x128xf32>
    %931 = arith.select %929, %598, %930 : vector<16x128xi1>, vector<16x128xf32>
    %932 = arith.addf %927, %931 : vector<16x128xf32>
    %933 = arith.mulf %920, %932 : vector<16x128xf32>
    %934 = arith.addf %917, %933 : vector<16x128xf32>
    %c33_384 = arith.constant 33 : index
    %c0_385 = arith.constant 0 : index
    %c0_386 = arith.constant 0 : index
    %935 = vector.load %arg5[%c33_384, %c0_385, %c0_386] : memref<68x16x128xbf16, #tpu.memory_space<vmem>>, vector<1x16x128xbf16>
    %936 = vector.shape_cast %935 : vector<1x16x128xbf16> to vector<16x128xbf16>
    %937 = arith.extf %936 : vector<16x128xbf16> to vector<16x128xf32>
    %938 = arith.subf %937, %665 : vector<16x128xf32>
    %939 = math.exp %938 : vector<16x128xf32>
    %940 = arith.addf %923, %939 : vector<16x128xf32>
    %c16_i32_387 = arith.constant 16 : i32
    %941 = vector.broadcast %c16_i32_387 : i32 to vector<16x128xi32>
    %942 = arith.cmpi eq, %593, %941 : vector<16x128xi32>
    %cst_388 = arith.constant 0.000000e+00 : f32
    %943 = vector.broadcast %cst_388 : f32 to vector<16x128xf32>
    %944 = arith.select %942, %596, %943 : vector<16x128xi1>, vector<16x128xf32>
    %c15_i32_389 = arith.constant 15 : i32
    %945 = vector.broadcast %c15_i32_389 : i32 to vector<16x128xi32>
    %946 = arith.cmpi eq, %593, %945 : vector<16x128xi32>
    %cst_390 = arith.constant 0.000000e+00 : f32
    %947 = vector.broadcast %cst_390 : f32 to vector<16x128xf32>
    %948 = arith.select %946, %598, %947 : vector<16x128xi1>, vector<16x128xf32>
    %949 = arith.addf %944, %948 : vector<16x128xf32>
    %950 = arith.mulf %937, %949 : vector<16x128xf32>
    %951 = arith.addf %934, %950 : vector<16x128xf32>
    %952 = math.log %940 : vector<16x128xf32>
    %953 = arith.addf %952, %665 : vector<16x128xf32>
    %954 = arith.subf %953, %951 : vector<16x128xf32>
    %955 = arith.addf %591, %954 : vector<16x128xf32>
    %956 = math.floor %221 : vector<16x128xf32>
    %957 = arith.fptosi %956 : vector<16x128xf32> to vector<16x128xi32>
    %cst_391 = arith.constant 1.000000e+00 : f32
    %958 = vector.broadcast %cst_391 : f32 to vector<16x128xf32>
    %959 = arith.addf %956, %958 : vector<16x128xf32>
    %960 = arith.subf %959, %221 : vector<16x128xf32>
    %cst_392 = arith.constant 1.000000e+00 : f32
    %961 = vector.broadcast %cst_392 : f32 to vector<16x128xf32>
    %962 = arith.subf %961, %960 : vector<16x128xf32>
    %c34 = arith.constant 34 : index
    %c0_393 = arith.constant 0 : index
    %c0_394 = arith.constant 0 : index
    %963 = vector.load %arg5[%c34, %c0_393, %c0_394] : memref<68x16x128xbf16, #tpu.memory_space<vmem>>, vector<1x16x128xbf16>
    %964 = vector.shape_cast %963 : vector<1x16x128xbf16> to vector<16x128xbf16>
    %965 = arith.extf %964 : vector<16x128xbf16> to vector<16x128xf32>
    %c35 = arith.constant 35 : index
    %c0_395 = arith.constant 0 : index
    %c0_396 = arith.constant 0 : index
    %966 = vector.load %arg5[%c35, %c0_395, %c0_396] : memref<68x16x128xbf16, #tpu.memory_space<vmem>>, vector<1x16x128xbf16>
    %967 = vector.shape_cast %966 : vector<1x16x128xbf16> to vector<16x128xbf16>
    %968 = arith.extf %967 : vector<16x128xbf16> to vector<16x128xf32>
    %969 = arith.maximumf %965, %968 : vector<16x128xf32>
    %c36 = arith.constant 36 : index
    %c0_397 = arith.constant 0 : index
    %c0_398 = arith.constant 0 : index
    %970 = vector.load %arg5[%c36, %c0_397, %c0_398] : memref<68x16x128xbf16, #tpu.memory_space<vmem>>, vector<1x16x128xbf16>
    %971 = vector.shape_cast %970 : vector<1x16x128xbf16> to vector<16x128xbf16>
    %972 = arith.extf %971 : vector<16x128xbf16> to vector<16x128xf32>
    %973 = arith.maximumf %969, %972 : vector<16x128xf32>
    %c37 = arith.constant 37 : index
    %c0_399 = arith.constant 0 : index
    %c0_400 = arith.constant 0 : index
    %974 = vector.load %arg5[%c37, %c0_399, %c0_400] : memref<68x16x128xbf16, #tpu.memory_space<vmem>>, vector<1x16x128xbf16>
    %975 = vector.shape_cast %974 : vector<1x16x128xbf16> to vector<16x128xbf16>
    %976 = arith.extf %975 : vector<16x128xbf16> to vector<16x128xf32>
    %977 = arith.maximumf %973, %976 : vector<16x128xf32>
    %c38 = arith.constant 38 : index
    %c0_401 = arith.constant 0 : index
    %c0_402 = arith.constant 0 : index
    %978 = vector.load %arg5[%c38, %c0_401, %c0_402] : memref<68x16x128xbf16, #tpu.memory_space<vmem>>, vector<1x16x128xbf16>
    %979 = vector.shape_cast %978 : vector<1x16x128xbf16> to vector<16x128xbf16>
    %980 = arith.extf %979 : vector<16x128xbf16> to vector<16x128xf32>
    %981 = arith.maximumf %977, %980 : vector<16x128xf32>
    %c39 = arith.constant 39 : index
    %c0_403 = arith.constant 0 : index
    %c0_404 = arith.constant 0 : index
    %982 = vector.load %arg5[%c39, %c0_403, %c0_404] : memref<68x16x128xbf16, #tpu.memory_space<vmem>>, vector<1x16x128xbf16>
    %983 = vector.shape_cast %982 : vector<1x16x128xbf16> to vector<16x128xbf16>
    %984 = arith.extf %983 : vector<16x128xbf16> to vector<16x128xf32>
    %985 = arith.maximumf %981, %984 : vector<16x128xf32>
    %c40 = arith.constant 40 : index
    %c0_405 = arith.constant 0 : index
    %c0_406 = arith.constant 0 : index
    %986 = vector.load %arg5[%c40, %c0_405, %c0_406] : memref<68x16x128xbf16, #tpu.memory_space<vmem>>, vector<1x16x128xbf16>
    %987 = vector.shape_cast %986 : vector<1x16x128xbf16> to vector<16x128xbf16>
    %988 = arith.extf %987 : vector<16x128xbf16> to vector<16x128xf32>
    %989 = arith.maximumf %985, %988 : vector<16x128xf32>
    %c41 = arith.constant 41 : index
    %c0_407 = arith.constant 0 : index
    %c0_408 = arith.constant 0 : index
    %990 = vector.load %arg5[%c41, %c0_407, %c0_408] : memref<68x16x128xbf16, #tpu.memory_space<vmem>>, vector<1x16x128xbf16>
    %991 = vector.shape_cast %990 : vector<1x16x128xbf16> to vector<16x128xbf16>
    %992 = arith.extf %991 : vector<16x128xbf16> to vector<16x128xf32>
    %993 = arith.maximumf %989, %992 : vector<16x128xf32>
    %c42 = arith.constant 42 : index
    %c0_409 = arith.constant 0 : index
    %c0_410 = arith.constant 0 : index
    %994 = vector.load %arg5[%c42, %c0_409, %c0_410] : memref<68x16x128xbf16, #tpu.memory_space<vmem>>, vector<1x16x128xbf16>
    %995 = vector.shape_cast %994 : vector<1x16x128xbf16> to vector<16x128xbf16>
    %996 = arith.extf %995 : vector<16x128xbf16> to vector<16x128xf32>
    %997 = arith.maximumf %993, %996 : vector<16x128xf32>
    %c43 = arith.constant 43 : index
    %c0_411 = arith.constant 0 : index
    %c0_412 = arith.constant 0 : index
    %998 = vector.load %arg5[%c43, %c0_411, %c0_412] : memref<68x16x128xbf16, #tpu.memory_space<vmem>>, vector<1x16x128xbf16>
    %999 = vector.shape_cast %998 : vector<1x16x128xbf16> to vector<16x128xbf16>
    %1000 = arith.extf %999 : vector<16x128xbf16> to vector<16x128xf32>
    %1001 = arith.maximumf %997, %1000 : vector<16x128xf32>
    %c44 = arith.constant 44 : index
    %c0_413 = arith.constant 0 : index
    %c0_414 = arith.constant 0 : index
    %1002 = vector.load %arg5[%c44, %c0_413, %c0_414] : memref<68x16x128xbf16, #tpu.memory_space<vmem>>, vector<1x16x128xbf16>
    %1003 = vector.shape_cast %1002 : vector<1x16x128xbf16> to vector<16x128xbf16>
    %1004 = arith.extf %1003 : vector<16x128xbf16> to vector<16x128xf32>
    %1005 = arith.maximumf %1001, %1004 : vector<16x128xf32>
    %c45 = arith.constant 45 : index
    %c0_415 = arith.constant 0 : index
    %c0_416 = arith.constant 0 : index
    %1006 = vector.load %arg5[%c45, %c0_415, %c0_416] : memref<68x16x128xbf16, #tpu.memory_space<vmem>>, vector<1x16x128xbf16>
    %1007 = vector.shape_cast %1006 : vector<1x16x128xbf16> to vector<16x128xbf16>
    %1008 = arith.extf %1007 : vector<16x128xbf16> to vector<16x128xf32>
    %1009 = arith.maximumf %1005, %1008 : vector<16x128xf32>
    %c46 = arith.constant 46 : index
    %c0_417 = arith.constant 0 : index
    %c0_418 = arith.constant 0 : index
    %1010 = vector.load %arg5[%c46, %c0_417, %c0_418] : memref<68x16x128xbf16, #tpu.memory_space<vmem>>, vector<1x16x128xbf16>
    %1011 = vector.shape_cast %1010 : vector<1x16x128xbf16> to vector<16x128xbf16>
    %1012 = arith.extf %1011 : vector<16x128xbf16> to vector<16x128xf32>
    %1013 = arith.maximumf %1009, %1012 : vector<16x128xf32>
    %c47 = arith.constant 47 : index
    %c0_419 = arith.constant 0 : index
    %c0_420 = arith.constant 0 : index
    %1014 = vector.load %arg5[%c47, %c0_419, %c0_420] : memref<68x16x128xbf16, #tpu.memory_space<vmem>>, vector<1x16x128xbf16>
    %1015 = vector.shape_cast %1014 : vector<1x16x128xbf16> to vector<16x128xbf16>
    %1016 = arith.extf %1015 : vector<16x128xbf16> to vector<16x128xf32>
    %1017 = arith.maximumf %1013, %1016 : vector<16x128xf32>
    %c48 = arith.constant 48 : index
    %c0_421 = arith.constant 0 : index
    %c0_422 = arith.constant 0 : index
    %1018 = vector.load %arg5[%c48, %c0_421, %c0_422] : memref<68x16x128xbf16, #tpu.memory_space<vmem>>, vector<1x16x128xbf16>
    %1019 = vector.shape_cast %1018 : vector<1x16x128xbf16> to vector<16x128xbf16>
    %1020 = arith.extf %1019 : vector<16x128xbf16> to vector<16x128xf32>
    %1021 = arith.maximumf %1017, %1020 : vector<16x128xf32>
    %c49 = arith.constant 49 : index
    %c0_423 = arith.constant 0 : index
    %c0_424 = arith.constant 0 : index
    %1022 = vector.load %arg5[%c49, %c0_423, %c0_424] : memref<68x16x128xbf16, #tpu.memory_space<vmem>>, vector<1x16x128xbf16>
    %1023 = vector.shape_cast %1022 : vector<1x16x128xbf16> to vector<16x128xbf16>
    %1024 = arith.extf %1023 : vector<16x128xbf16> to vector<16x128xf32>
    %1025 = arith.maximumf %1021, %1024 : vector<16x128xf32>
    %c50 = arith.constant 50 : index
    %c0_425 = arith.constant 0 : index
    %c0_426 = arith.constant 0 : index
    %1026 = vector.load %arg5[%c50, %c0_425, %c0_426] : memref<68x16x128xbf16, #tpu.memory_space<vmem>>, vector<1x16x128xbf16>
    %1027 = vector.shape_cast %1026 : vector<1x16x128xbf16> to vector<16x128xbf16>
    %1028 = arith.extf %1027 : vector<16x128xbf16> to vector<16x128xf32>
    %1029 = arith.maximumf %1025, %1028 : vector<16x128xf32>
    %cst_427 = arith.constant 0.000000e+00 : f32
    %1030 = vector.broadcast %cst_427 : f32 to vector<16x128xf32>
    %cst_428 = arith.constant 0.000000e+00 : f32
    %1031 = vector.broadcast %cst_428 : f32 to vector<16x128xf32>
    %c34_429 = arith.constant 34 : index
    %c0_430 = arith.constant 0 : index
    %c0_431 = arith.constant 0 : index
    %1032 = vector.load %arg5[%c34_429, %c0_430, %c0_431] : memref<68x16x128xbf16, #tpu.memory_space<vmem>>, vector<1x16x128xbf16>
    %1033 = vector.shape_cast %1032 : vector<1x16x128xbf16> to vector<16x128xbf16>
    %1034 = arith.extf %1033 : vector<16x128xbf16> to vector<16x128xf32>
    %1035 = arith.subf %1034, %1029 : vector<16x128xf32>
    %1036 = math.exp %1035 : vector<16x128xf32>
    %1037 = arith.addf %1030, %1036 : vector<16x128xf32>
    %c0_i32_432 = arith.constant 0 : i32
    %1038 = vector.broadcast %c0_i32_432 : i32 to vector<16x128xi32>
    %1039 = arith.cmpi eq, %957, %1038 : vector<16x128xi32>
    %cst_433 = arith.constant 0.000000e+00 : f32
    %1040 = vector.broadcast %cst_433 : f32 to vector<16x128xf32>
    %1041 = arith.select %1039, %960, %1040 : vector<16x128xi1>, vector<16x128xf32>
    %1042 = arith.mulf %1034, %1041 : vector<16x128xf32>
    %1043 = arith.addf %1031, %1042 : vector<16x128xf32>
    %c35_434 = arith.constant 35 : index
    %c0_435 = arith.constant 0 : index
    %c0_436 = arith.constant 0 : index
    %1044 = vector.load %arg5[%c35_434, %c0_435, %c0_436] : memref<68x16x128xbf16, #tpu.memory_space<vmem>>, vector<1x16x128xbf16>
    %1045 = vector.shape_cast %1044 : vector<1x16x128xbf16> to vector<16x128xbf16>
    %1046 = arith.extf %1045 : vector<16x128xbf16> to vector<16x128xf32>
    %1047 = arith.subf %1046, %1029 : vector<16x128xf32>
    %1048 = math.exp %1047 : vector<16x128xf32>
    %1049 = arith.addf %1037, %1048 : vector<16x128xf32>
    %c1_i32_437 = arith.constant 1 : i32
    %1050 = vector.broadcast %c1_i32_437 : i32 to vector<16x128xi32>
    %1051 = arith.cmpi eq, %957, %1050 : vector<16x128xi32>
    %cst_438 = arith.constant 0.000000e+00 : f32
    %1052 = vector.broadcast %cst_438 : f32 to vector<16x128xf32>
    %1053 = arith.select %1051, %960, %1052 : vector<16x128xi1>, vector<16x128xf32>
    %c0_i32_439 = arith.constant 0 : i32
    %1054 = vector.broadcast %c0_i32_439 : i32 to vector<16x128xi32>
    %1055 = arith.cmpi eq, %957, %1054 : vector<16x128xi32>
    %cst_440 = arith.constant 0.000000e+00 : f32
    %1056 = vector.broadcast %cst_440 : f32 to vector<16x128xf32>
    %1057 = arith.select %1055, %962, %1056 : vector<16x128xi1>, vector<16x128xf32>
    %1058 = arith.addf %1053, %1057 : vector<16x128xf32>
    %1059 = arith.mulf %1046, %1058 : vector<16x128xf32>
    %1060 = arith.addf %1043, %1059 : vector<16x128xf32>
    %c36_441 = arith.constant 36 : index
    %c0_442 = arith.constant 0 : index
    %c0_443 = arith.constant 0 : index
    %1061 = vector.load %arg5[%c36_441, %c0_442, %c0_443] : memref<68x16x128xbf16, #tpu.memory_space<vmem>>, vector<1x16x128xbf16>
    %1062 = vector.shape_cast %1061 : vector<1x16x128xbf16> to vector<16x128xbf16>
    %1063 = arith.extf %1062 : vector<16x128xbf16> to vector<16x128xf32>
    %1064 = arith.subf %1063, %1029 : vector<16x128xf32>
    %1065 = math.exp %1064 : vector<16x128xf32>
    %1066 = arith.addf %1049, %1065 : vector<16x128xf32>
    %c2_i32_444 = arith.constant 2 : i32
    %1067 = vector.broadcast %c2_i32_444 : i32 to vector<16x128xi32>
    %1068 = arith.cmpi eq, %957, %1067 : vector<16x128xi32>
    %cst_445 = arith.constant 0.000000e+00 : f32
    %1069 = vector.broadcast %cst_445 : f32 to vector<16x128xf32>
    %1070 = arith.select %1068, %960, %1069 : vector<16x128xi1>, vector<16x128xf32>
    %c1_i32_446 = arith.constant 1 : i32
    %1071 = vector.broadcast %c1_i32_446 : i32 to vector<16x128xi32>
    %1072 = arith.cmpi eq, %957, %1071 : vector<16x128xi32>
    %cst_447 = arith.constant 0.000000e+00 : f32
    %1073 = vector.broadcast %cst_447 : f32 to vector<16x128xf32>
    %1074 = arith.select %1072, %962, %1073 : vector<16x128xi1>, vector<16x128xf32>
    %1075 = arith.addf %1070, %1074 : vector<16x128xf32>
    %1076 = arith.mulf %1063, %1075 : vector<16x128xf32>
    %1077 = arith.addf %1060, %1076 : vector<16x128xf32>
    %c37_448 = arith.constant 37 : index
    %c0_449 = arith.constant 0 : index
    %c0_450 = arith.constant 0 : index
    %1078 = vector.load %arg5[%c37_448, %c0_449, %c0_450] : memref<68x16x128xbf16, #tpu.memory_space<vmem>>, vector<1x16x128xbf16>
    %1079 = vector.shape_cast %1078 : vector<1x16x128xbf16> to vector<16x128xbf16>
    %1080 = arith.extf %1079 : vector<16x128xbf16> to vector<16x128xf32>
    %1081 = arith.subf %1080, %1029 : vector<16x128xf32>
    %1082 = math.exp %1081 : vector<16x128xf32>
    %1083 = arith.addf %1066, %1082 : vector<16x128xf32>
    %c3_i32_451 = arith.constant 3 : i32
    %1084 = vector.broadcast %c3_i32_451 : i32 to vector<16x128xi32>
    %1085 = arith.cmpi eq, %957, %1084 : vector<16x128xi32>
    %cst_452 = arith.constant 0.000000e+00 : f32
    %1086 = vector.broadcast %cst_452 : f32 to vector<16x128xf32>
    %1087 = arith.select %1085, %960, %1086 : vector<16x128xi1>, vector<16x128xf32>
    %c2_i32_453 = arith.constant 2 : i32
    %1088 = vector.broadcast %c2_i32_453 : i32 to vector<16x128xi32>
    %1089 = arith.cmpi eq, %957, %1088 : vector<16x128xi32>
    %cst_454 = arith.constant 0.000000e+00 : f32
    %1090 = vector.broadcast %cst_454 : f32 to vector<16x128xf32>
    %1091 = arith.select %1089, %962, %1090 : vector<16x128xi1>, vector<16x128xf32>
    %1092 = arith.addf %1087, %1091 : vector<16x128xf32>
    %1093 = arith.mulf %1080, %1092 : vector<16x128xf32>
    %1094 = arith.addf %1077, %1093 : vector<16x128xf32>
    %c38_455 = arith.constant 38 : index
    %c0_456 = arith.constant 0 : index
    %c0_457 = arith.constant 0 : index
    %1095 = vector.load %arg5[%c38_455, %c0_456, %c0_457] : memref<68x16x128xbf16, #tpu.memory_space<vmem>>, vector<1x16x128xbf16>
    %1096 = vector.shape_cast %1095 : vector<1x16x128xbf16> to vector<16x128xbf16>
    %1097 = arith.extf %1096 : vector<16x128xbf16> to vector<16x128xf32>
    %1098 = arith.subf %1097, %1029 : vector<16x128xf32>
    %1099 = math.exp %1098 : vector<16x128xf32>
    %1100 = arith.addf %1083, %1099 : vector<16x128xf32>
    %c4_i32_458 = arith.constant 4 : i32
    %1101 = vector.broadcast %c4_i32_458 : i32 to vector<16x128xi32>
    %1102 = arith.cmpi eq, %957, %1101 : vector<16x128xi32>
    %cst_459 = arith.constant 0.000000e+00 : f32
    %1103 = vector.broadcast %cst_459 : f32 to vector<16x128xf32>
    %1104 = arith.select %1102, %960, %1103 : vector<16x128xi1>, vector<16x128xf32>
    %c3_i32_460 = arith.constant 3 : i32
    %1105 = vector.broadcast %c3_i32_460 : i32 to vector<16x128xi32>
    %1106 = arith.cmpi eq, %957, %1105 : vector<16x128xi32>
    %cst_461 = arith.constant 0.000000e+00 : f32
    %1107 = vector.broadcast %cst_461 : f32 to vector<16x128xf32>
    %1108 = arith.select %1106, %962, %1107 : vector<16x128xi1>, vector<16x128xf32>
    %1109 = arith.addf %1104, %1108 : vector<16x128xf32>
    %1110 = arith.mulf %1097, %1109 : vector<16x128xf32>
    %1111 = arith.addf %1094, %1110 : vector<16x128xf32>
    %c39_462 = arith.constant 39 : index
    %c0_463 = arith.constant 0 : index
    %c0_464 = arith.constant 0 : index
    %1112 = vector.load %arg5[%c39_462, %c0_463, %c0_464] : memref<68x16x128xbf16, #tpu.memory_space<vmem>>, vector<1x16x128xbf16>
    %1113 = vector.shape_cast %1112 : vector<1x16x128xbf16> to vector<16x128xbf16>
    %1114 = arith.extf %1113 : vector<16x128xbf16> to vector<16x128xf32>
    %1115 = arith.subf %1114, %1029 : vector<16x128xf32>
    %1116 = math.exp %1115 : vector<16x128xf32>
    %1117 = arith.addf %1100, %1116 : vector<16x128xf32>
    %c5_i32_465 = arith.constant 5 : i32
    %1118 = vector.broadcast %c5_i32_465 : i32 to vector<16x128xi32>
    %1119 = arith.cmpi eq, %957, %1118 : vector<16x128xi32>
    %cst_466 = arith.constant 0.000000e+00 : f32
    %1120 = vector.broadcast %cst_466 : f32 to vector<16x128xf32>
    %1121 = arith.select %1119, %960, %1120 : vector<16x128xi1>, vector<16x128xf32>
    %c4_i32_467 = arith.constant 4 : i32
    %1122 = vector.broadcast %c4_i32_467 : i32 to vector<16x128xi32>
    %1123 = arith.cmpi eq, %957, %1122 : vector<16x128xi32>
    %cst_468 = arith.constant 0.000000e+00 : f32
    %1124 = vector.broadcast %cst_468 : f32 to vector<16x128xf32>
    %1125 = arith.select %1123, %962, %1124 : vector<16x128xi1>, vector<16x128xf32>
    %1126 = arith.addf %1121, %1125 : vector<16x128xf32>
    %1127 = arith.mulf %1114, %1126 : vector<16x128xf32>
    %1128 = arith.addf %1111, %1127 : vector<16x128xf32>
    %c40_469 = arith.constant 40 : index
    %c0_470 = arith.constant 0 : index
    %c0_471 = arith.constant 0 : index
    %1129 = vector.load %arg5[%c40_469, %c0_470, %c0_471] : memref<68x16x128xbf16, #tpu.memory_space<vmem>>, vector<1x16x128xbf16>
    %1130 = vector.shape_cast %1129 : vector<1x16x128xbf16> to vector<16x128xbf16>
    %1131 = arith.extf %1130 : vector<16x128xbf16> to vector<16x128xf32>
    %1132 = arith.subf %1131, %1029 : vector<16x128xf32>
    %1133 = math.exp %1132 : vector<16x128xf32>
    %1134 = arith.addf %1117, %1133 : vector<16x128xf32>
    %c6_i32_472 = arith.constant 6 : i32
    %1135 = vector.broadcast %c6_i32_472 : i32 to vector<16x128xi32>
    %1136 = arith.cmpi eq, %957, %1135 : vector<16x128xi32>
    %cst_473 = arith.constant 0.000000e+00 : f32
    %1137 = vector.broadcast %cst_473 : f32 to vector<16x128xf32>
    %1138 = arith.select %1136, %960, %1137 : vector<16x128xi1>, vector<16x128xf32>
    %c5_i32_474 = arith.constant 5 : i32
    %1139 = vector.broadcast %c5_i32_474 : i32 to vector<16x128xi32>
    %1140 = arith.cmpi eq, %957, %1139 : vector<16x128xi32>
    %cst_475 = arith.constant 0.000000e+00 : f32
    %1141 = vector.broadcast %cst_475 : f32 to vector<16x128xf32>
    %1142 = arith.select %1140, %962, %1141 : vector<16x128xi1>, vector<16x128xf32>
    %1143 = arith.addf %1138, %1142 : vector<16x128xf32>
    %1144 = arith.mulf %1131, %1143 : vector<16x128xf32>
    %1145 = arith.addf %1128, %1144 : vector<16x128xf32>
    %c41_476 = arith.constant 41 : index
    %c0_477 = arith.constant 0 : index
    %c0_478 = arith.constant 0 : index
    %1146 = vector.load %arg5[%c41_476, %c0_477, %c0_478] : memref<68x16x128xbf16, #tpu.memory_space<vmem>>, vector<1x16x128xbf16>
    %1147 = vector.shape_cast %1146 : vector<1x16x128xbf16> to vector<16x128xbf16>
    %1148 = arith.extf %1147 : vector<16x128xbf16> to vector<16x128xf32>
    %1149 = arith.subf %1148, %1029 : vector<16x128xf32>
    %1150 = math.exp %1149 : vector<16x128xf32>
    %1151 = arith.addf %1134, %1150 : vector<16x128xf32>
    %c7_i32_479 = arith.constant 7 : i32
    %1152 = vector.broadcast %c7_i32_479 : i32 to vector<16x128xi32>
    %1153 = arith.cmpi eq, %957, %1152 : vector<16x128xi32>
    %cst_480 = arith.constant 0.000000e+00 : f32
    %1154 = vector.broadcast %cst_480 : f32 to vector<16x128xf32>
    %1155 = arith.select %1153, %960, %1154 : vector<16x128xi1>, vector<16x128xf32>
    %c6_i32_481 = arith.constant 6 : i32
    %1156 = vector.broadcast %c6_i32_481 : i32 to vector<16x128xi32>
    %1157 = arith.cmpi eq, %957, %1156 : vector<16x128xi32>
    %cst_482 = arith.constant 0.000000e+00 : f32
    %1158 = vector.broadcast %cst_482 : f32 to vector<16x128xf32>
    %1159 = arith.select %1157, %962, %1158 : vector<16x128xi1>, vector<16x128xf32>
    %1160 = arith.addf %1155, %1159 : vector<16x128xf32>
    %1161 = arith.mulf %1148, %1160 : vector<16x128xf32>
    %1162 = arith.addf %1145, %1161 : vector<16x128xf32>
    %c42_483 = arith.constant 42 : index
    %c0_484 = arith.constant 0 : index
    %c0_485 = arith.constant 0 : index
    %1163 = vector.load %arg5[%c42_483, %c0_484, %c0_485] : memref<68x16x128xbf16, #tpu.memory_space<vmem>>, vector<1x16x128xbf16>
    %1164 = vector.shape_cast %1163 : vector<1x16x128xbf16> to vector<16x128xbf16>
    %1165 = arith.extf %1164 : vector<16x128xbf16> to vector<16x128xf32>
    %1166 = arith.subf %1165, %1029 : vector<16x128xf32>
    %1167 = math.exp %1166 : vector<16x128xf32>
    %1168 = arith.addf %1151, %1167 : vector<16x128xf32>
    %c8_i32_486 = arith.constant 8 : i32
    %1169 = vector.broadcast %c8_i32_486 : i32 to vector<16x128xi32>
    %1170 = arith.cmpi eq, %957, %1169 : vector<16x128xi32>
    %cst_487 = arith.constant 0.000000e+00 : f32
    %1171 = vector.broadcast %cst_487 : f32 to vector<16x128xf32>
    %1172 = arith.select %1170, %960, %1171 : vector<16x128xi1>, vector<16x128xf32>
    %c7_i32_488 = arith.constant 7 : i32
    %1173 = vector.broadcast %c7_i32_488 : i32 to vector<16x128xi32>
    %1174 = arith.cmpi eq, %957, %1173 : vector<16x128xi32>
    %cst_489 = arith.constant 0.000000e+00 : f32
    %1175 = vector.broadcast %cst_489 : f32 to vector<16x128xf32>
    %1176 = arith.select %1174, %962, %1175 : vector<16x128xi1>, vector<16x128xf32>
    %1177 = arith.addf %1172, %1176 : vector<16x128xf32>
    %1178 = arith.mulf %1165, %1177 : vector<16x128xf32>
    %1179 = arith.addf %1162, %1178 : vector<16x128xf32>
    %c43_490 = arith.constant 43 : index
    %c0_491 = arith.constant 0 : index
    %c0_492 = arith.constant 0 : index
    %1180 = vector.load %arg5[%c43_490, %c0_491, %c0_492] : memref<68x16x128xbf16, #tpu.memory_space<vmem>>, vector<1x16x128xbf16>
    %1181 = vector.shape_cast %1180 : vector<1x16x128xbf16> to vector<16x128xbf16>
    %1182 = arith.extf %1181 : vector<16x128xbf16> to vector<16x128xf32>
    %1183 = arith.subf %1182, %1029 : vector<16x128xf32>
    %1184 = math.exp %1183 : vector<16x128xf32>
    %1185 = arith.addf %1168, %1184 : vector<16x128xf32>
    %c9_i32_493 = arith.constant 9 : i32
    %1186 = vector.broadcast %c9_i32_493 : i32 to vector<16x128xi32>
    %1187 = arith.cmpi eq, %957, %1186 : vector<16x128xi32>
    %cst_494 = arith.constant 0.000000e+00 : f32
    %1188 = vector.broadcast %cst_494 : f32 to vector<16x128xf32>
    %1189 = arith.select %1187, %960, %1188 : vector<16x128xi1>, vector<16x128xf32>
    %c8_i32_495 = arith.constant 8 : i32
    %1190 = vector.broadcast %c8_i32_495 : i32 to vector<16x128xi32>
    %1191 = arith.cmpi eq, %957, %1190 : vector<16x128xi32>
    %cst_496 = arith.constant 0.000000e+00 : f32
    %1192 = vector.broadcast %cst_496 : f32 to vector<16x128xf32>
    %1193 = arith.select %1191, %962, %1192 : vector<16x128xi1>, vector<16x128xf32>
    %1194 = arith.addf %1189, %1193 : vector<16x128xf32>
    %1195 = arith.mulf %1182, %1194 : vector<16x128xf32>
    %1196 = arith.addf %1179, %1195 : vector<16x128xf32>
    %c44_497 = arith.constant 44 : index
    %c0_498 = arith.constant 0 : index
    %c0_499 = arith.constant 0 : index
    %1197 = vector.load %arg5[%c44_497, %c0_498, %c0_499] : memref<68x16x128xbf16, #tpu.memory_space<vmem>>, vector<1x16x128xbf16>
    %1198 = vector.shape_cast %1197 : vector<1x16x128xbf16> to vector<16x128xbf16>
    %1199 = arith.extf %1198 : vector<16x128xbf16> to vector<16x128xf32>
    %1200 = arith.subf %1199, %1029 : vector<16x128xf32>
    %1201 = math.exp %1200 : vector<16x128xf32>
    %1202 = arith.addf %1185, %1201 : vector<16x128xf32>
    %c10_i32_500 = arith.constant 10 : i32
    %1203 = vector.broadcast %c10_i32_500 : i32 to vector<16x128xi32>
    %1204 = arith.cmpi eq, %957, %1203 : vector<16x128xi32>
    %cst_501 = arith.constant 0.000000e+00 : f32
    %1205 = vector.broadcast %cst_501 : f32 to vector<16x128xf32>
    %1206 = arith.select %1204, %960, %1205 : vector<16x128xi1>, vector<16x128xf32>
    %c9_i32_502 = arith.constant 9 : i32
    %1207 = vector.broadcast %c9_i32_502 : i32 to vector<16x128xi32>
    %1208 = arith.cmpi eq, %957, %1207 : vector<16x128xi32>
    %cst_503 = arith.constant 0.000000e+00 : f32
    %1209 = vector.broadcast %cst_503 : f32 to vector<16x128xf32>
    %1210 = arith.select %1208, %962, %1209 : vector<16x128xi1>, vector<16x128xf32>
    %1211 = arith.addf %1206, %1210 : vector<16x128xf32>
    %1212 = arith.mulf %1199, %1211 : vector<16x128xf32>
    %1213 = arith.addf %1196, %1212 : vector<16x128xf32>
    %c45_504 = arith.constant 45 : index
    %c0_505 = arith.constant 0 : index
    %c0_506 = arith.constant 0 : index
    %1214 = vector.load %arg5[%c45_504, %c0_505, %c0_506] : memref<68x16x128xbf16, #tpu.memory_space<vmem>>, vector<1x16x128xbf16>
    %1215 = vector.shape_cast %1214 : vector<1x16x128xbf16> to vector<16x128xbf16>
    %1216 = arith.extf %1215 : vector<16x128xbf16> to vector<16x128xf32>
    %1217 = arith.subf %1216, %1029 : vector<16x128xf32>
    %1218 = math.exp %1217 : vector<16x128xf32>
    %1219 = arith.addf %1202, %1218 : vector<16x128xf32>
    %c11_i32_507 = arith.constant 11 : i32
    %1220 = vector.broadcast %c11_i32_507 : i32 to vector<16x128xi32>
    %1221 = arith.cmpi eq, %957, %1220 : vector<16x128xi32>
    %cst_508 = arith.constant 0.000000e+00 : f32
    %1222 = vector.broadcast %cst_508 : f32 to vector<16x128xf32>
    %1223 = arith.select %1221, %960, %1222 : vector<16x128xi1>, vector<16x128xf32>
    %c10_i32_509 = arith.constant 10 : i32
    %1224 = vector.broadcast %c10_i32_509 : i32 to vector<16x128xi32>
    %1225 = arith.cmpi eq, %957, %1224 : vector<16x128xi32>
    %cst_510 = arith.constant 0.000000e+00 : f32
    %1226 = vector.broadcast %cst_510 : f32 to vector<16x128xf32>
    %1227 = arith.select %1225, %962, %1226 : vector<16x128xi1>, vector<16x128xf32>
    %1228 = arith.addf %1223, %1227 : vector<16x128xf32>
    %1229 = arith.mulf %1216, %1228 : vector<16x128xf32>
    %1230 = arith.addf %1213, %1229 : vector<16x128xf32>
    %c46_511 = arith.constant 46 : index
    %c0_512 = arith.constant 0 : index
    %c0_513 = arith.constant 0 : index
    %1231 = vector.load %arg5[%c46_511, %c0_512, %c0_513] : memref<68x16x128xbf16, #tpu.memory_space<vmem>>, vector<1x16x128xbf16>
    %1232 = vector.shape_cast %1231 : vector<1x16x128xbf16> to vector<16x128xbf16>
    %1233 = arith.extf %1232 : vector<16x128xbf16> to vector<16x128xf32>
    %1234 = arith.subf %1233, %1029 : vector<16x128xf32>
    %1235 = math.exp %1234 : vector<16x128xf32>
    %1236 = arith.addf %1219, %1235 : vector<16x128xf32>
    %c12_i32_514 = arith.constant 12 : i32
    %1237 = vector.broadcast %c12_i32_514 : i32 to vector<16x128xi32>
    %1238 = arith.cmpi eq, %957, %1237 : vector<16x128xi32>
    %cst_515 = arith.constant 0.000000e+00 : f32
    %1239 = vector.broadcast %cst_515 : f32 to vector<16x128xf32>
    %1240 = arith.select %1238, %960, %1239 : vector<16x128xi1>, vector<16x128xf32>
    %c11_i32_516 = arith.constant 11 : i32
    %1241 = vector.broadcast %c11_i32_516 : i32 to vector<16x128xi32>
    %1242 = arith.cmpi eq, %957, %1241 : vector<16x128xi32>
    %cst_517 = arith.constant 0.000000e+00 : f32
    %1243 = vector.broadcast %cst_517 : f32 to vector<16x128xf32>
    %1244 = arith.select %1242, %962, %1243 : vector<16x128xi1>, vector<16x128xf32>
    %1245 = arith.addf %1240, %1244 : vector<16x128xf32>
    %1246 = arith.mulf %1233, %1245 : vector<16x128xf32>
    %1247 = arith.addf %1230, %1246 : vector<16x128xf32>
    %c47_518 = arith.constant 47 : index
    %c0_519 = arith.constant 0 : index
    %c0_520 = arith.constant 0 : index
    %1248 = vector.load %arg5[%c47_518, %c0_519, %c0_520] : memref<68x16x128xbf16, #tpu.memory_space<vmem>>, vector<1x16x128xbf16>
    %1249 = vector.shape_cast %1248 : vector<1x16x128xbf16> to vector<16x128xbf16>
    %1250 = arith.extf %1249 : vector<16x128xbf16> to vector<16x128xf32>
    %1251 = arith.subf %1250, %1029 : vector<16x128xf32>
    %1252 = math.exp %1251 : vector<16x128xf32>
    %1253 = arith.addf %1236, %1252 : vector<16x128xf32>
    %c13_i32_521 = arith.constant 13 : i32
    %1254 = vector.broadcast %c13_i32_521 : i32 to vector<16x128xi32>
    %1255 = arith.cmpi eq, %957, %1254 : vector<16x128xi32>
    %cst_522 = arith.constant 0.000000e+00 : f32
    %1256 = vector.broadcast %cst_522 : f32 to vector<16x128xf32>
    %1257 = arith.select %1255, %960, %1256 : vector<16x128xi1>, vector<16x128xf32>
    %c12_i32_523 = arith.constant 12 : i32
    %1258 = vector.broadcast %c12_i32_523 : i32 to vector<16x128xi32>
    %1259 = arith.cmpi eq, %957, %1258 : vector<16x128xi32>
    %cst_524 = arith.constant 0.000000e+00 : f32
    %1260 = vector.broadcast %cst_524 : f32 to vector<16x128xf32>
    %1261 = arith.select %1259, %962, %1260 : vector<16x128xi1>, vector<16x128xf32>
    %1262 = arith.addf %1257, %1261 : vector<16x128xf32>
    %1263 = arith.mulf %1250, %1262 : vector<16x128xf32>
    %1264 = arith.addf %1247, %1263 : vector<16x128xf32>
    %c48_525 = arith.constant 48 : index
    %c0_526 = arith.constant 0 : index
    %c0_527 = arith.constant 0 : index
    %1265 = vector.load %arg5[%c48_525, %c0_526, %c0_527] : memref<68x16x128xbf16, #tpu.memory_space<vmem>>, vector<1x16x128xbf16>
    %1266 = vector.shape_cast %1265 : vector<1x16x128xbf16> to vector<16x128xbf16>
    %1267 = arith.extf %1266 : vector<16x128xbf16> to vector<16x128xf32>
    %1268 = arith.subf %1267, %1029 : vector<16x128xf32>
    %1269 = math.exp %1268 : vector<16x128xf32>
    %1270 = arith.addf %1253, %1269 : vector<16x128xf32>
    %c14_i32_528 = arith.constant 14 : i32
    %1271 = vector.broadcast %c14_i32_528 : i32 to vector<16x128xi32>
    %1272 = arith.cmpi eq, %957, %1271 : vector<16x128xi32>
    %cst_529 = arith.constant 0.000000e+00 : f32
    %1273 = vector.broadcast %cst_529 : f32 to vector<16x128xf32>
    %1274 = arith.select %1272, %960, %1273 : vector<16x128xi1>, vector<16x128xf32>
    %c13_i32_530 = arith.constant 13 : i32
    %1275 = vector.broadcast %c13_i32_530 : i32 to vector<16x128xi32>
    %1276 = arith.cmpi eq, %957, %1275 : vector<16x128xi32>
    %cst_531 = arith.constant 0.000000e+00 : f32
    %1277 = vector.broadcast %cst_531 : f32 to vector<16x128xf32>
    %1278 = arith.select %1276, %962, %1277 : vector<16x128xi1>, vector<16x128xf32>
    %1279 = arith.addf %1274, %1278 : vector<16x128xf32>
    %1280 = arith.mulf %1267, %1279 : vector<16x128xf32>
    %1281 = arith.addf %1264, %1280 : vector<16x128xf32>
    %c49_532 = arith.constant 49 : index
    %c0_533 = arith.constant 0 : index
    %c0_534 = arith.constant 0 : index
    %1282 = vector.load %arg5[%c49_532, %c0_533, %c0_534] : memref<68x16x128xbf16, #tpu.memory_space<vmem>>, vector<1x16x128xbf16>
    %1283 = vector.shape_cast %1282 : vector<1x16x128xbf16> to vector<16x128xbf16>
    %1284 = arith.extf %1283 : vector<16x128xbf16> to vector<16x128xf32>
    %1285 = arith.subf %1284, %1029 : vector<16x128xf32>
    %1286 = math.exp %1285 : vector<16x128xf32>
    %1287 = arith.addf %1270, %1286 : vector<16x128xf32>
    %c15_i32_535 = arith.constant 15 : i32
    %1288 = vector.broadcast %c15_i32_535 : i32 to vector<16x128xi32>
    %1289 = arith.cmpi eq, %957, %1288 : vector<16x128xi32>
    %cst_536 = arith.constant 0.000000e+00 : f32
    %1290 = vector.broadcast %cst_536 : f32 to vector<16x128xf32>
    %1291 = arith.select %1289, %960, %1290 : vector<16x128xi1>, vector<16x128xf32>
    %c14_i32_537 = arith.constant 14 : i32
    %1292 = vector.broadcast %c14_i32_537 : i32 to vector<16x128xi32>
    %1293 = arith.cmpi eq, %957, %1292 : vector<16x128xi32>
    %cst_538 = arith.constant 0.000000e+00 : f32
    %1294 = vector.broadcast %cst_538 : f32 to vector<16x128xf32>
    %1295 = arith.select %1293, %962, %1294 : vector<16x128xi1>, vector<16x128xf32>
    %1296 = arith.addf %1291, %1295 : vector<16x128xf32>
    %1297 = arith.mulf %1284, %1296 : vector<16x128xf32>
    %1298 = arith.addf %1281, %1297 : vector<16x128xf32>
    %c50_539 = arith.constant 50 : index
    %c0_540 = arith.constant 0 : index
    %c0_541 = arith.constant 0 : index
    %1299 = vector.load %arg5[%c50_539, %c0_540, %c0_541] : memref<68x16x128xbf16, #tpu.memory_space<vmem>>, vector<1x16x128xbf16>
    %1300 = vector.shape_cast %1299 : vector<1x16x128xbf16> to vector<16x128xbf16>
    %1301 = arith.extf %1300 : vector<16x128xbf16> to vector<16x128xf32>
    %1302 = arith.subf %1301, %1029 : vector<16x128xf32>
    %1303 = math.exp %1302 : vector<16x128xf32>
    %1304 = arith.addf %1287, %1303 : vector<16x128xf32>
    %c16_i32_542 = arith.constant 16 : i32
    %1305 = vector.broadcast %c16_i32_542 : i32 to vector<16x128xi32>
    %1306 = arith.cmpi eq, %957, %1305 : vector<16x128xi32>
    %cst_543 = arith.constant 0.000000e+00 : f32
    %1307 = vector.broadcast %cst_543 : f32 to vector<16x128xf32>
    %1308 = arith.select %1306, %960, %1307 : vector<16x128xi1>, vector<16x128xf32>
    %c15_i32_544 = arith.constant 15 : i32
    %1309 = vector.broadcast %c15_i32_544 : i32 to vector<16x128xi32>
    %1310 = arith.cmpi eq, %957, %1309 : vector<16x128xi32>
    %cst_545 = arith.constant 0.000000e+00 : f32
    %1311 = vector.broadcast %cst_545 : f32 to vector<16x128xf32>
    %1312 = arith.select %1310, %962, %1311 : vector<16x128xi1>, vector<16x128xf32>
    %1313 = arith.addf %1308, %1312 : vector<16x128xf32>
    %1314 = arith.mulf %1301, %1313 : vector<16x128xf32>
    %1315 = arith.addf %1298, %1314 : vector<16x128xf32>
    %1316 = math.log %1304 : vector<16x128xf32>
    %1317 = arith.addf %1316, %1029 : vector<16x128xf32>
    %1318 = arith.subf %1317, %1315 : vector<16x128xf32>
    %1319 = arith.addf %955, %1318 : vector<16x128xf32>
    %1320 = math.floor %226 : vector<16x128xf32>
    %1321 = arith.fptosi %1320 : vector<16x128xf32> to vector<16x128xi32>
    %cst_546 = arith.constant 1.000000e+00 : f32
    %1322 = vector.broadcast %cst_546 : f32 to vector<16x128xf32>
    %1323 = arith.addf %1320, %1322 : vector<16x128xf32>
    %1324 = arith.subf %1323, %226 : vector<16x128xf32>
    %cst_547 = arith.constant 1.000000e+00 : f32
    %1325 = vector.broadcast %cst_547 : f32 to vector<16x128xf32>
    %1326 = arith.subf %1325, %1324 : vector<16x128xf32>
    %c51 = arith.constant 51 : index
    %c0_548 = arith.constant 0 : index
    %c0_549 = arith.constant 0 : index
    %1327 = vector.load %arg5[%c51, %c0_548, %c0_549] : memref<68x16x128xbf16, #tpu.memory_space<vmem>>, vector<1x16x128xbf16>
    %1328 = vector.shape_cast %1327 : vector<1x16x128xbf16> to vector<16x128xbf16>
    %1329 = arith.extf %1328 : vector<16x128xbf16> to vector<16x128xf32>
    %c52 = arith.constant 52 : index
    %c0_550 = arith.constant 0 : index
    %c0_551 = arith.constant 0 : index
    %1330 = vector.load %arg5[%c52, %c0_550, %c0_551] : memref<68x16x128xbf16, #tpu.memory_space<vmem>>, vector<1x16x128xbf16>
    %1331 = vector.shape_cast %1330 : vector<1x16x128xbf16> to vector<16x128xbf16>
    %1332 = arith.extf %1331 : vector<16x128xbf16> to vector<16x128xf32>
    %1333 = arith.maximumf %1329, %1332 : vector<16x128xf32>
    %c53 = arith.constant 53 : index
    %c0_552 = arith.constant 0 : index
    %c0_553 = arith.constant 0 : index
    %1334 = vector.load %arg5[%c53, %c0_552, %c0_553] : memref<68x16x128xbf16, #tpu.memory_space<vmem>>, vector<1x16x128xbf16>
    %1335 = vector.shape_cast %1334 : vector<1x16x128xbf16> to vector<16x128xbf16>
    %1336 = arith.extf %1335 : vector<16x128xbf16> to vector<16x128xf32>
    %1337 = arith.maximumf %1333, %1336 : vector<16x128xf32>
    %c54 = arith.constant 54 : index
    %c0_554 = arith.constant 0 : index
    %c0_555 = arith.constant 0 : index
    %1338 = vector.load %arg5[%c54, %c0_554, %c0_555] : memref<68x16x128xbf16, #tpu.memory_space<vmem>>, vector<1x16x128xbf16>
    %1339 = vector.shape_cast %1338 : vector<1x16x128xbf16> to vector<16x128xbf16>
    %1340 = arith.extf %1339 : vector<16x128xbf16> to vector<16x128xf32>
    %1341 = arith.maximumf %1337, %1340 : vector<16x128xf32>
    %c55 = arith.constant 55 : index
    %c0_556 = arith.constant 0 : index
    %c0_557 = arith.constant 0 : index
    %1342 = vector.load %arg5[%c55, %c0_556, %c0_557] : memref<68x16x128xbf16, #tpu.memory_space<vmem>>, vector<1x16x128xbf16>
    %1343 = vector.shape_cast %1342 : vector<1x16x128xbf16> to vector<16x128xbf16>
    %1344 = arith.extf %1343 : vector<16x128xbf16> to vector<16x128xf32>
    %1345 = arith.maximumf %1341, %1344 : vector<16x128xf32>
    %c56 = arith.constant 56 : index
    %c0_558 = arith.constant 0 : index
    %c0_559 = arith.constant 0 : index
    %1346 = vector.load %arg5[%c56, %c0_558, %c0_559] : memref<68x16x128xbf16, #tpu.memory_space<vmem>>, vector<1x16x128xbf16>
    %1347 = vector.shape_cast %1346 : vector<1x16x128xbf16> to vector<16x128xbf16>
    %1348 = arith.extf %1347 : vector<16x128xbf16> to vector<16x128xf32>
    %1349 = arith.maximumf %1345, %1348 : vector<16x128xf32>
    %c57 = arith.constant 57 : index
    %c0_560 = arith.constant 0 : index
    %c0_561 = arith.constant 0 : index
    %1350 = vector.load %arg5[%c57, %c0_560, %c0_561] : memref<68x16x128xbf16, #tpu.memory_space<vmem>>, vector<1x16x128xbf16>
    %1351 = vector.shape_cast %1350 : vector<1x16x128xbf16> to vector<16x128xbf16>
    %1352 = arith.extf %1351 : vector<16x128xbf16> to vector<16x128xf32>
    %1353 = arith.maximumf %1349, %1352 : vector<16x128xf32>
    %c58 = arith.constant 58 : index
    %c0_562 = arith.constant 0 : index
    %c0_563 = arith.constant 0 : index
    %1354 = vector.load %arg5[%c58, %c0_562, %c0_563] : memref<68x16x128xbf16, #tpu.memory_space<vmem>>, vector<1x16x128xbf16>
    %1355 = vector.shape_cast %1354 : vector<1x16x128xbf16> to vector<16x128xbf16>
    %1356 = arith.extf %1355 : vector<16x128xbf16> to vector<16x128xf32>
    %1357 = arith.maximumf %1353, %1356 : vector<16x128xf32>
    %c59 = arith.constant 59 : index
    %c0_564 = arith.constant 0 : index
    %c0_565 = arith.constant 0 : index
    %1358 = vector.load %arg5[%c59, %c0_564, %c0_565] : memref<68x16x128xbf16, #tpu.memory_space<vmem>>, vector<1x16x128xbf16>
    %1359 = vector.shape_cast %1358 : vector<1x16x128xbf16> to vector<16x128xbf16>
    %1360 = arith.extf %1359 : vector<16x128xbf16> to vector<16x128xf32>
    %1361 = arith.maximumf %1357, %1360 : vector<16x128xf32>
    %c60 = arith.constant 60 : index
    %c0_566 = arith.constant 0 : index
    %c0_567 = arith.constant 0 : index
    %1362 = vector.load %arg5[%c60, %c0_566, %c0_567] : memref<68x16x128xbf16, #tpu.memory_space<vmem>>, vector<1x16x128xbf16>
    %1363 = vector.shape_cast %1362 : vector<1x16x128xbf16> to vector<16x128xbf16>
    %1364 = arith.extf %1363 : vector<16x128xbf16> to vector<16x128xf32>
    %1365 = arith.maximumf %1361, %1364 : vector<16x128xf32>
    %c61 = arith.constant 61 : index
    %c0_568 = arith.constant 0 : index
    %c0_569 = arith.constant 0 : index
    %1366 = vector.load %arg5[%c61, %c0_568, %c0_569] : memref<68x16x128xbf16, #tpu.memory_space<vmem>>, vector<1x16x128xbf16>
    %1367 = vector.shape_cast %1366 : vector<1x16x128xbf16> to vector<16x128xbf16>
    %1368 = arith.extf %1367 : vector<16x128xbf16> to vector<16x128xf32>
    %1369 = arith.maximumf %1365, %1368 : vector<16x128xf32>
    %c62 = arith.constant 62 : index
    %c0_570 = arith.constant 0 : index
    %c0_571 = arith.constant 0 : index
    %1370 = vector.load %arg5[%c62, %c0_570, %c0_571] : memref<68x16x128xbf16, #tpu.memory_space<vmem>>, vector<1x16x128xbf16>
    %1371 = vector.shape_cast %1370 : vector<1x16x128xbf16> to vector<16x128xbf16>
    %1372 = arith.extf %1371 : vector<16x128xbf16> to vector<16x128xf32>
    %1373 = arith.maximumf %1369, %1372 : vector<16x128xf32>
    %c63 = arith.constant 63 : index
    %c0_572 = arith.constant 0 : index
    %c0_573 = arith.constant 0 : index
    %1374 = vector.load %arg5[%c63, %c0_572, %c0_573] : memref<68x16x128xbf16, #tpu.memory_space<vmem>>, vector<1x16x128xbf16>
    %1375 = vector.shape_cast %1374 : vector<1x16x128xbf16> to vector<16x128xbf16>
    %1376 = arith.extf %1375 : vector<16x128xbf16> to vector<16x128xf32>
    %1377 = arith.maximumf %1373, %1376 : vector<16x128xf32>
    %c64 = arith.constant 64 : index
    %c0_574 = arith.constant 0 : index
    %c0_575 = arith.constant 0 : index
    %1378 = vector.load %arg5[%c64, %c0_574, %c0_575] : memref<68x16x128xbf16, #tpu.memory_space<vmem>>, vector<1x16x128xbf16>
    %1379 = vector.shape_cast %1378 : vector<1x16x128xbf16> to vector<16x128xbf16>
    %1380 = arith.extf %1379 : vector<16x128xbf16> to vector<16x128xf32>
    %1381 = arith.maximumf %1377, %1380 : vector<16x128xf32>
    %c65 = arith.constant 65 : index
    %c0_576 = arith.constant 0 : index
    %c0_577 = arith.constant 0 : index
    %1382 = vector.load %arg5[%c65, %c0_576, %c0_577] : memref<68x16x128xbf16, #tpu.memory_space<vmem>>, vector<1x16x128xbf16>
    %1383 = vector.shape_cast %1382 : vector<1x16x128xbf16> to vector<16x128xbf16>
    %1384 = arith.extf %1383 : vector<16x128xbf16> to vector<16x128xf32>
    %1385 = arith.maximumf %1381, %1384 : vector<16x128xf32>
    %c66 = arith.constant 66 : index
    %c0_578 = arith.constant 0 : index
    %c0_579 = arith.constant 0 : index
    %1386 = vector.load %arg5[%c66, %c0_578, %c0_579] : memref<68x16x128xbf16, #tpu.memory_space<vmem>>, vector<1x16x128xbf16>
    %1387 = vector.shape_cast %1386 : vector<1x16x128xbf16> to vector<16x128xbf16>
    %1388 = arith.extf %1387 : vector<16x128xbf16> to vector<16x128xf32>
    %1389 = arith.maximumf %1385, %1388 : vector<16x128xf32>
    %c67 = arith.constant 67 : index
    %c0_580 = arith.constant 0 : index
    %c0_581 = arith.constant 0 : index
    %1390 = vector.load %arg5[%c67, %c0_580, %c0_581] : memref<68x16x128xbf16, #tpu.memory_space<vmem>>, vector<1x16x128xbf16>
    %1391 = vector.shape_cast %1390 : vector<1x16x128xbf16> to vector<16x128xbf16>
    %1392 = arith.extf %1391 : vector<16x128xbf16> to vector<16x128xf32>
    %1393 = arith.maximumf %1389, %1392 : vector<16x128xf32>
    %cst_582 = arith.constant 0.000000e+00 : f32
    %1394 = vector.broadcast %cst_582 : f32 to vector<16x128xf32>
    %cst_583 = arith.constant 0.000000e+00 : f32
    %1395 = vector.broadcast %cst_583 : f32 to vector<16x128xf32>
    %c51_584 = arith.constant 51 : index
    %c0_585 = arith.constant 0 : index
    %c0_586 = arith.constant 0 : index
    %1396 = vector.load %arg5[%c51_584, %c0_585, %c0_586] : memref<68x16x128xbf16, #tpu.memory_space<vmem>>, vector<1x16x128xbf16>
    %1397 = vector.shape_cast %1396 : vector<1x16x128xbf16> to vector<16x128xbf16>
    %1398 = arith.extf %1397 : vector<16x128xbf16> to vector<16x128xf32>
    %1399 = arith.subf %1398, %1393 : vector<16x128xf32>
    %1400 = math.exp %1399 : vector<16x128xf32>
    %1401 = arith.addf %1394, %1400 : vector<16x128xf32>
    %c0_i32_587 = arith.constant 0 : i32
    %1402 = vector.broadcast %c0_i32_587 : i32 to vector<16x128xi32>
    %1403 = arith.cmpi eq, %1321, %1402 : vector<16x128xi32>
    %cst_588 = arith.constant 0.000000e+00 : f32
    %1404 = vector.broadcast %cst_588 : f32 to vector<16x128xf32>
    %1405 = arith.select %1403, %1324, %1404 : vector<16x128xi1>, vector<16x128xf32>
    %1406 = arith.mulf %1398, %1405 : vector<16x128xf32>
    %1407 = arith.addf %1395, %1406 : vector<16x128xf32>
    %c52_589 = arith.constant 52 : index
    %c0_590 = arith.constant 0 : index
    %c0_591 = arith.constant 0 : index
    %1408 = vector.load %arg5[%c52_589, %c0_590, %c0_591] : memref<68x16x128xbf16, #tpu.memory_space<vmem>>, vector<1x16x128xbf16>
    %1409 = vector.shape_cast %1408 : vector<1x16x128xbf16> to vector<16x128xbf16>
    %1410 = arith.extf %1409 : vector<16x128xbf16> to vector<16x128xf32>
    %1411 = arith.subf %1410, %1393 : vector<16x128xf32>
    %1412 = math.exp %1411 : vector<16x128xf32>
    %1413 = arith.addf %1401, %1412 : vector<16x128xf32>
    %c1_i32_592 = arith.constant 1 : i32
    %1414 = vector.broadcast %c1_i32_592 : i32 to vector<16x128xi32>
    %1415 = arith.cmpi eq, %1321, %1414 : vector<16x128xi32>
    %cst_593 = arith.constant 0.000000e+00 : f32
    %1416 = vector.broadcast %cst_593 : f32 to vector<16x128xf32>
    %1417 = arith.select %1415, %1324, %1416 : vector<16x128xi1>, vector<16x128xf32>
    %c0_i32_594 = arith.constant 0 : i32
    %1418 = vector.broadcast %c0_i32_594 : i32 to vector<16x128xi32>
    %1419 = arith.cmpi eq, %1321, %1418 : vector<16x128xi32>
    %cst_595 = arith.constant 0.000000e+00 : f32
    %1420 = vector.broadcast %cst_595 : f32 to vector<16x128xf32>
    %1421 = arith.select %1419, %1326, %1420 : vector<16x128xi1>, vector<16x128xf32>
    %1422 = arith.addf %1417, %1421 : vector<16x128xf32>
    %1423 = arith.mulf %1410, %1422 : vector<16x128xf32>
    %1424 = arith.addf %1407, %1423 : vector<16x128xf32>
    %c53_596 = arith.constant 53 : index
    %c0_597 = arith.constant 0 : index
    %c0_598 = arith.constant 0 : index
    %1425 = vector.load %arg5[%c53_596, %c0_597, %c0_598] : memref<68x16x128xbf16, #tpu.memory_space<vmem>>, vector<1x16x128xbf16>
    %1426 = vector.shape_cast %1425 : vector<1x16x128xbf16> to vector<16x128xbf16>
    %1427 = arith.extf %1426 : vector<16x128xbf16> to vector<16x128xf32>
    %1428 = arith.subf %1427, %1393 : vector<16x128xf32>
    %1429 = math.exp %1428 : vector<16x128xf32>
    %1430 = arith.addf %1413, %1429 : vector<16x128xf32>
    %c2_i32_599 = arith.constant 2 : i32
    %1431 = vector.broadcast %c2_i32_599 : i32 to vector<16x128xi32>
    %1432 = arith.cmpi eq, %1321, %1431 : vector<16x128xi32>
    %cst_600 = arith.constant 0.000000e+00 : f32
    %1433 = vector.broadcast %cst_600 : f32 to vector<16x128xf32>
    %1434 = arith.select %1432, %1324, %1433 : vector<16x128xi1>, vector<16x128xf32>
    %c1_i32_601 = arith.constant 1 : i32
    %1435 = vector.broadcast %c1_i32_601 : i32 to vector<16x128xi32>
    %1436 = arith.cmpi eq, %1321, %1435 : vector<16x128xi32>
    %cst_602 = arith.constant 0.000000e+00 : f32
    %1437 = vector.broadcast %cst_602 : f32 to vector<16x128xf32>
    %1438 = arith.select %1436, %1326, %1437 : vector<16x128xi1>, vector<16x128xf32>
    %1439 = arith.addf %1434, %1438 : vector<16x128xf32>
    %1440 = arith.mulf %1427, %1439 : vector<16x128xf32>
    %1441 = arith.addf %1424, %1440 : vector<16x128xf32>
    %c54_603 = arith.constant 54 : index
    %c0_604 = arith.constant 0 : index
    %c0_605 = arith.constant 0 : index
    %1442 = vector.load %arg5[%c54_603, %c0_604, %c0_605] : memref<68x16x128xbf16, #tpu.memory_space<vmem>>, vector<1x16x128xbf16>
    %1443 = vector.shape_cast %1442 : vector<1x16x128xbf16> to vector<16x128xbf16>
    %1444 = arith.extf %1443 : vector<16x128xbf16> to vector<16x128xf32>
    %1445 = arith.subf %1444, %1393 : vector<16x128xf32>
    %1446 = math.exp %1445 : vector<16x128xf32>
    %1447 = arith.addf %1430, %1446 : vector<16x128xf32>
    %c3_i32_606 = arith.constant 3 : i32
    %1448 = vector.broadcast %c3_i32_606 : i32 to vector<16x128xi32>
    %1449 = arith.cmpi eq, %1321, %1448 : vector<16x128xi32>
    %cst_607 = arith.constant 0.000000e+00 : f32
    %1450 = vector.broadcast %cst_607 : f32 to vector<16x128xf32>
    %1451 = arith.select %1449, %1324, %1450 : vector<16x128xi1>, vector<16x128xf32>
    %c2_i32_608 = arith.constant 2 : i32
    %1452 = vector.broadcast %c2_i32_608 : i32 to vector<16x128xi32>
    %1453 = arith.cmpi eq, %1321, %1452 : vector<16x128xi32>
    %cst_609 = arith.constant 0.000000e+00 : f32
    %1454 = vector.broadcast %cst_609 : f32 to vector<16x128xf32>
    %1455 = arith.select %1453, %1326, %1454 : vector<16x128xi1>, vector<16x128xf32>
    %1456 = arith.addf %1451, %1455 : vector<16x128xf32>
    %1457 = arith.mulf %1444, %1456 : vector<16x128xf32>
    %1458 = arith.addf %1441, %1457 : vector<16x128xf32>
    %c55_610 = arith.constant 55 : index
    %c0_611 = arith.constant 0 : index
    %c0_612 = arith.constant 0 : index
    %1459 = vector.load %arg5[%c55_610, %c0_611, %c0_612] : memref<68x16x128xbf16, #tpu.memory_space<vmem>>, vector<1x16x128xbf16>
    %1460 = vector.shape_cast %1459 : vector<1x16x128xbf16> to vector<16x128xbf16>
    %1461 = arith.extf %1460 : vector<16x128xbf16> to vector<16x128xf32>
    %1462 = arith.subf %1461, %1393 : vector<16x128xf32>
    %1463 = math.exp %1462 : vector<16x128xf32>
    %1464 = arith.addf %1447, %1463 : vector<16x128xf32>
    %c4_i32_613 = arith.constant 4 : i32
    %1465 = vector.broadcast %c4_i32_613 : i32 to vector<16x128xi32>
    %1466 = arith.cmpi eq, %1321, %1465 : vector<16x128xi32>
    %cst_614 = arith.constant 0.000000e+00 : f32
    %1467 = vector.broadcast %cst_614 : f32 to vector<16x128xf32>
    %1468 = arith.select %1466, %1324, %1467 : vector<16x128xi1>, vector<16x128xf32>
    %c3_i32_615 = arith.constant 3 : i32
    %1469 = vector.broadcast %c3_i32_615 : i32 to vector<16x128xi32>
    %1470 = arith.cmpi eq, %1321, %1469 : vector<16x128xi32>
    %cst_616 = arith.constant 0.000000e+00 : f32
    %1471 = vector.broadcast %cst_616 : f32 to vector<16x128xf32>
    %1472 = arith.select %1470, %1326, %1471 : vector<16x128xi1>, vector<16x128xf32>
    %1473 = arith.addf %1468, %1472 : vector<16x128xf32>
    %1474 = arith.mulf %1461, %1473 : vector<16x128xf32>
    %1475 = arith.addf %1458, %1474 : vector<16x128xf32>
    %c56_617 = arith.constant 56 : index
    %c0_618 = arith.constant 0 : index
    %c0_619 = arith.constant 0 : index
    %1476 = vector.load %arg5[%c56_617, %c0_618, %c0_619] : memref<68x16x128xbf16, #tpu.memory_space<vmem>>, vector<1x16x128xbf16>
    %1477 = vector.shape_cast %1476 : vector<1x16x128xbf16> to vector<16x128xbf16>
    %1478 = arith.extf %1477 : vector<16x128xbf16> to vector<16x128xf32>
    %1479 = arith.subf %1478, %1393 : vector<16x128xf32>
    %1480 = math.exp %1479 : vector<16x128xf32>
    %1481 = arith.addf %1464, %1480 : vector<16x128xf32>
    %c5_i32_620 = arith.constant 5 : i32
    %1482 = vector.broadcast %c5_i32_620 : i32 to vector<16x128xi32>
    %1483 = arith.cmpi eq, %1321, %1482 : vector<16x128xi32>
    %cst_621 = arith.constant 0.000000e+00 : f32
    %1484 = vector.broadcast %cst_621 : f32 to vector<16x128xf32>
    %1485 = arith.select %1483, %1324, %1484 : vector<16x128xi1>, vector<16x128xf32>
    %c4_i32_622 = arith.constant 4 : i32
    %1486 = vector.broadcast %c4_i32_622 : i32 to vector<16x128xi32>
    %1487 = arith.cmpi eq, %1321, %1486 : vector<16x128xi32>
    %cst_623 = arith.constant 0.000000e+00 : f32
    %1488 = vector.broadcast %cst_623 : f32 to vector<16x128xf32>
    %1489 = arith.select %1487, %1326, %1488 : vector<16x128xi1>, vector<16x128xf32>
    %1490 = arith.addf %1485, %1489 : vector<16x128xf32>
    %1491 = arith.mulf %1478, %1490 : vector<16x128xf32>
    %1492 = arith.addf %1475, %1491 : vector<16x128xf32>
    %c57_624 = arith.constant 57 : index
    %c0_625 = arith.constant 0 : index
    %c0_626 = arith.constant 0 : index
    %1493 = vector.load %arg5[%c57_624, %c0_625, %c0_626] : memref<68x16x128xbf16, #tpu.memory_space<vmem>>, vector<1x16x128xbf16>
    %1494 = vector.shape_cast %1493 : vector<1x16x128xbf16> to vector<16x128xbf16>
    %1495 = arith.extf %1494 : vector<16x128xbf16> to vector<16x128xf32>
    %1496 = arith.subf %1495, %1393 : vector<16x128xf32>
    %1497 = math.exp %1496 : vector<16x128xf32>
    %1498 = arith.addf %1481, %1497 : vector<16x128xf32>
    %c6_i32_627 = arith.constant 6 : i32
    %1499 = vector.broadcast %c6_i32_627 : i32 to vector<16x128xi32>
    %1500 = arith.cmpi eq, %1321, %1499 : vector<16x128xi32>
    %cst_628 = arith.constant 0.000000e+00 : f32
    %1501 = vector.broadcast %cst_628 : f32 to vector<16x128xf32>
    %1502 = arith.select %1500, %1324, %1501 : vector<16x128xi1>, vector<16x128xf32>
    %c5_i32_629 = arith.constant 5 : i32
    %1503 = vector.broadcast %c5_i32_629 : i32 to vector<16x128xi32>
    %1504 = arith.cmpi eq, %1321, %1503 : vector<16x128xi32>
    %cst_630 = arith.constant 0.000000e+00 : f32
    %1505 = vector.broadcast %cst_630 : f32 to vector<16x128xf32>
    %1506 = arith.select %1504, %1326, %1505 : vector<16x128xi1>, vector<16x128xf32>
    %1507 = arith.addf %1502, %1506 : vector<16x128xf32>
    %1508 = arith.mulf %1495, %1507 : vector<16x128xf32>
    %1509 = arith.addf %1492, %1508 : vector<16x128xf32>
    %c58_631 = arith.constant 58 : index
    %c0_632 = arith.constant 0 : index
    %c0_633 = arith.constant 0 : index
    %1510 = vector.load %arg5[%c58_631, %c0_632, %c0_633] : memref<68x16x128xbf16, #tpu.memory_space<vmem>>, vector<1x16x128xbf16>
    %1511 = vector.shape_cast %1510 : vector<1x16x128xbf16> to vector<16x128xbf16>
    %1512 = arith.extf %1511 : vector<16x128xbf16> to vector<16x128xf32>
    %1513 = arith.subf %1512, %1393 : vector<16x128xf32>
    %1514 = math.exp %1513 : vector<16x128xf32>
    %1515 = arith.addf %1498, %1514 : vector<16x128xf32>
    %c7_i32_634 = arith.constant 7 : i32
    %1516 = vector.broadcast %c7_i32_634 : i32 to vector<16x128xi32>
    %1517 = arith.cmpi eq, %1321, %1516 : vector<16x128xi32>
    %cst_635 = arith.constant 0.000000e+00 : f32
    %1518 = vector.broadcast %cst_635 : f32 to vector<16x128xf32>
    %1519 = arith.select %1517, %1324, %1518 : vector<16x128xi1>, vector<16x128xf32>
    %c6_i32_636 = arith.constant 6 : i32
    %1520 = vector.broadcast %c6_i32_636 : i32 to vector<16x128xi32>
    %1521 = arith.cmpi eq, %1321, %1520 : vector<16x128xi32>
    %cst_637 = arith.constant 0.000000e+00 : f32
    %1522 = vector.broadcast %cst_637 : f32 to vector<16x128xf32>
    %1523 = arith.select %1521, %1326, %1522 : vector<16x128xi1>, vector<16x128xf32>
    %1524 = arith.addf %1519, %1523 : vector<16x128xf32>
    %1525 = arith.mulf %1512, %1524 : vector<16x128xf32>
    %1526 = arith.addf %1509, %1525 : vector<16x128xf32>
    %c59_638 = arith.constant 59 : index
    %c0_639 = arith.constant 0 : index
    %c0_640 = arith.constant 0 : index
    %1527 = vector.load %arg5[%c59_638, %c0_639, %c0_640] : memref<68x16x128xbf16, #tpu.memory_space<vmem>>, vector<1x16x128xbf16>
    %1528 = vector.shape_cast %1527 : vector<1x16x128xbf16> to vector<16x128xbf16>
    %1529 = arith.extf %1528 : vector<16x128xbf16> to vector<16x128xf32>
    %1530 = arith.subf %1529, %1393 : vector<16x128xf32>
    %1531 = math.exp %1530 : vector<16x128xf32>
    %1532 = arith.addf %1515, %1531 : vector<16x128xf32>
    %c8_i32_641 = arith.constant 8 : i32
    %1533 = vector.broadcast %c8_i32_641 : i32 to vector<16x128xi32>
    %1534 = arith.cmpi eq, %1321, %1533 : vector<16x128xi32>
    %cst_642 = arith.constant 0.000000e+00 : f32
    %1535 = vector.broadcast %cst_642 : f32 to vector<16x128xf32>
    %1536 = arith.select %1534, %1324, %1535 : vector<16x128xi1>, vector<16x128xf32>
    %c7_i32_643 = arith.constant 7 : i32
    %1537 = vector.broadcast %c7_i32_643 : i32 to vector<16x128xi32>
    %1538 = arith.cmpi eq, %1321, %1537 : vector<16x128xi32>
    %cst_644 = arith.constant 0.000000e+00 : f32
    %1539 = vector.broadcast %cst_644 : f32 to vector<16x128xf32>
    %1540 = arith.select %1538, %1326, %1539 : vector<16x128xi1>, vector<16x128xf32>
    %1541 = arith.addf %1536, %1540 : vector<16x128xf32>
    %1542 = arith.mulf %1529, %1541 : vector<16x128xf32>
    %1543 = arith.addf %1526, %1542 : vector<16x128xf32>
    %c60_645 = arith.constant 60 : index
    %c0_646 = arith.constant 0 : index
    %c0_647 = arith.constant 0 : index
    %1544 = vector.load %arg5[%c60_645, %c0_646, %c0_647] : memref<68x16x128xbf16, #tpu.memory_space<vmem>>, vector<1x16x128xbf16>
    %1545 = vector.shape_cast %1544 : vector<1x16x128xbf16> to vector<16x128xbf16>
    %1546 = arith.extf %1545 : vector<16x128xbf16> to vector<16x128xf32>
    %1547 = arith.subf %1546, %1393 : vector<16x128xf32>
    %1548 = math.exp %1547 : vector<16x128xf32>
    %1549 = arith.addf %1532, %1548 : vector<16x128xf32>
    %c9_i32_648 = arith.constant 9 : i32
    %1550 = vector.broadcast %c9_i32_648 : i32 to vector<16x128xi32>
    %1551 = arith.cmpi eq, %1321, %1550 : vector<16x128xi32>
    %cst_649 = arith.constant 0.000000e+00 : f32
    %1552 = vector.broadcast %cst_649 : f32 to vector<16x128xf32>
    %1553 = arith.select %1551, %1324, %1552 : vector<16x128xi1>, vector<16x128xf32>
    %c8_i32_650 = arith.constant 8 : i32
    %1554 = vector.broadcast %c8_i32_650 : i32 to vector<16x128xi32>
    %1555 = arith.cmpi eq, %1321, %1554 : vector<16x128xi32>
    %cst_651 = arith.constant 0.000000e+00 : f32
    %1556 = vector.broadcast %cst_651 : f32 to vector<16x128xf32>
    %1557 = arith.select %1555, %1326, %1556 : vector<16x128xi1>, vector<16x128xf32>
    %1558 = arith.addf %1553, %1557 : vector<16x128xf32>
    %1559 = arith.mulf %1546, %1558 : vector<16x128xf32>
    %1560 = arith.addf %1543, %1559 : vector<16x128xf32>
    %c61_652 = arith.constant 61 : index
    %c0_653 = arith.constant 0 : index
    %c0_654 = arith.constant 0 : index
    %1561 = vector.load %arg5[%c61_652, %c0_653, %c0_654] : memref<68x16x128xbf16, #tpu.memory_space<vmem>>, vector<1x16x128xbf16>
    %1562 = vector.shape_cast %1561 : vector<1x16x128xbf16> to vector<16x128xbf16>
    %1563 = arith.extf %1562 : vector<16x128xbf16> to vector<16x128xf32>
    %1564 = arith.subf %1563, %1393 : vector<16x128xf32>
    %1565 = math.exp %1564 : vector<16x128xf32>
    %1566 = arith.addf %1549, %1565 : vector<16x128xf32>
    %c10_i32_655 = arith.constant 10 : i32
    %1567 = vector.broadcast %c10_i32_655 : i32 to vector<16x128xi32>
    %1568 = arith.cmpi eq, %1321, %1567 : vector<16x128xi32>
    %cst_656 = arith.constant 0.000000e+00 : f32
    %1569 = vector.broadcast %cst_656 : f32 to vector<16x128xf32>
    %1570 = arith.select %1568, %1324, %1569 : vector<16x128xi1>, vector<16x128xf32>
    %c9_i32_657 = arith.constant 9 : i32
    %1571 = vector.broadcast %c9_i32_657 : i32 to vector<16x128xi32>
    %1572 = arith.cmpi eq, %1321, %1571 : vector<16x128xi32>
    %cst_658 = arith.constant 0.000000e+00 : f32
    %1573 = vector.broadcast %cst_658 : f32 to vector<16x128xf32>
    %1574 = arith.select %1572, %1326, %1573 : vector<16x128xi1>, vector<16x128xf32>
    %1575 = arith.addf %1570, %1574 : vector<16x128xf32>
    %1576 = arith.mulf %1563, %1575 : vector<16x128xf32>
    %1577 = arith.addf %1560, %1576 : vector<16x128xf32>
    %c62_659 = arith.constant 62 : index
    %c0_660 = arith.constant 0 : index
    %c0_661 = arith.constant 0 : index
    %1578 = vector.load %arg5[%c62_659, %c0_660, %c0_661] : memref<68x16x128xbf16, #tpu.memory_space<vmem>>, vector<1x16x128xbf16>
    %1579 = vector.shape_cast %1578 : vector<1x16x128xbf16> to vector<16x128xbf16>
    %1580 = arith.extf %1579 : vector<16x128xbf16> to vector<16x128xf32>
    %1581 = arith.subf %1580, %1393 : vector<16x128xf32>
    %1582 = math.exp %1581 : vector<16x128xf32>
    %1583 = arith.addf %1566, %1582 : vector<16x128xf32>
    %c11_i32_662 = arith.constant 11 : i32
    %1584 = vector.broadcast %c11_i32_662 : i32 to vector<16x128xi32>
    %1585 = arith.cmpi eq, %1321, %1584 : vector<16x128xi32>
    %cst_663 = arith.constant 0.000000e+00 : f32
    %1586 = vector.broadcast %cst_663 : f32 to vector<16x128xf32>
    %1587 = arith.select %1585, %1324, %1586 : vector<16x128xi1>, vector<16x128xf32>
    %c10_i32_664 = arith.constant 10 : i32
    %1588 = vector.broadcast %c10_i32_664 : i32 to vector<16x128xi32>
    %1589 = arith.cmpi eq, %1321, %1588 : vector<16x128xi32>
    %cst_665 = arith.constant 0.000000e+00 : f32
    %1590 = vector.broadcast %cst_665 : f32 to vector<16x128xf32>
    %1591 = arith.select %1589, %1326, %1590 : vector<16x128xi1>, vector<16x128xf32>
    %1592 = arith.addf %1587, %1591 : vector<16x128xf32>
    %1593 = arith.mulf %1580, %1592 : vector<16x128xf32>
    %1594 = arith.addf %1577, %1593 : vector<16x128xf32>
    %c63_666 = arith.constant 63 : index
    %c0_667 = arith.constant 0 : index
    %c0_668 = arith.constant 0 : index
    %1595 = vector.load %arg5[%c63_666, %c0_667, %c0_668] : memref<68x16x128xbf16, #tpu.memory_space<vmem>>, vector<1x16x128xbf16>
    %1596 = vector.shape_cast %1595 : vector<1x16x128xbf16> to vector<16x128xbf16>
    %1597 = arith.extf %1596 : vector<16x128xbf16> to vector<16x128xf32>
    %1598 = arith.subf %1597, %1393 : vector<16x128xf32>
    %1599 = math.exp %1598 : vector<16x128xf32>
    %1600 = arith.addf %1583, %1599 : vector<16x128xf32>
    %c12_i32_669 = arith.constant 12 : i32
    %1601 = vector.broadcast %c12_i32_669 : i32 to vector<16x128xi32>
    %1602 = arith.cmpi eq, %1321, %1601 : vector<16x128xi32>
    %cst_670 = arith.constant 0.000000e+00 : f32
    %1603 = vector.broadcast %cst_670 : f32 to vector<16x128xf32>
    %1604 = arith.select %1602, %1324, %1603 : vector<16x128xi1>, vector<16x128xf32>
    %c11_i32_671 = arith.constant 11 : i32
    %1605 = vector.broadcast %c11_i32_671 : i32 to vector<16x128xi32>
    %1606 = arith.cmpi eq, %1321, %1605 : vector<16x128xi32>
    %cst_672 = arith.constant 0.000000e+00 : f32
    %1607 = vector.broadcast %cst_672 : f32 to vector<16x128xf32>
    %1608 = arith.select %1606, %1326, %1607 : vector<16x128xi1>, vector<16x128xf32>
    %1609 = arith.addf %1604, %1608 : vector<16x128xf32>
    %1610 = arith.mulf %1597, %1609 : vector<16x128xf32>
    %1611 = arith.addf %1594, %1610 : vector<16x128xf32>
    %c64_673 = arith.constant 64 : index
    %c0_674 = arith.constant 0 : index
    %c0_675 = arith.constant 0 : index
    %1612 = vector.load %arg5[%c64_673, %c0_674, %c0_675] : memref<68x16x128xbf16, #tpu.memory_space<vmem>>, vector<1x16x128xbf16>
    %1613 = vector.shape_cast %1612 : vector<1x16x128xbf16> to vector<16x128xbf16>
    %1614 = arith.extf %1613 : vector<16x128xbf16> to vector<16x128xf32>
    %1615 = arith.subf %1614, %1393 : vector<16x128xf32>
    %1616 = math.exp %1615 : vector<16x128xf32>
    %1617 = arith.addf %1600, %1616 : vector<16x128xf32>
    %c13_i32_676 = arith.constant 13 : i32
    %1618 = vector.broadcast %c13_i32_676 : i32 to vector<16x128xi32>
    %1619 = arith.cmpi eq, %1321, %1618 : vector<16x128xi32>
    %cst_677 = arith.constant 0.000000e+00 : f32
    %1620 = vector.broadcast %cst_677 : f32 to vector<16x128xf32>
    %1621 = arith.select %1619, %1324, %1620 : vector<16x128xi1>, vector<16x128xf32>
    %c12_i32_678 = arith.constant 12 : i32
    %1622 = vector.broadcast %c12_i32_678 : i32 to vector<16x128xi32>
    %1623 = arith.cmpi eq, %1321, %1622 : vector<16x128xi32>
    %cst_679 = arith.constant 0.000000e+00 : f32
    %1624 = vector.broadcast %cst_679 : f32 to vector<16x128xf32>
    %1625 = arith.select %1623, %1326, %1624 : vector<16x128xi1>, vector<16x128xf32>
    %1626 = arith.addf %1621, %1625 : vector<16x128xf32>
    %1627 = arith.mulf %1614, %1626 : vector<16x128xf32>
    %1628 = arith.addf %1611, %1627 : vector<16x128xf32>
    %c65_680 = arith.constant 65 : index
    %c0_681 = arith.constant 0 : index
    %c0_682 = arith.constant 0 : index
    %1629 = vector.load %arg5[%c65_680, %c0_681, %c0_682] : memref<68x16x128xbf16, #tpu.memory_space<vmem>>, vector<1x16x128xbf16>
    %1630 = vector.shape_cast %1629 : vector<1x16x128xbf16> to vector<16x128xbf16>
    %1631 = arith.extf %1630 : vector<16x128xbf16> to vector<16x128xf32>
    %1632 = arith.subf %1631, %1393 : vector<16x128xf32>
    %1633 = math.exp %1632 : vector<16x128xf32>
    %1634 = arith.addf %1617, %1633 : vector<16x128xf32>
    %c14_i32_683 = arith.constant 14 : i32
    %1635 = vector.broadcast %c14_i32_683 : i32 to vector<16x128xi32>
    %1636 = arith.cmpi eq, %1321, %1635 : vector<16x128xi32>
    %cst_684 = arith.constant 0.000000e+00 : f32
    %1637 = vector.broadcast %cst_684 : f32 to vector<16x128xf32>
    %1638 = arith.select %1636, %1324, %1637 : vector<16x128xi1>, vector<16x128xf32>
    %c13_i32_685 = arith.constant 13 : i32
    %1639 = vector.broadcast %c13_i32_685 : i32 to vector<16x128xi32>
    %1640 = arith.cmpi eq, %1321, %1639 : vector<16x128xi32>
    %cst_686 = arith.constant 0.000000e+00 : f32
    %1641 = vector.broadcast %cst_686 : f32 to vector<16x128xf32>
    %1642 = arith.select %1640, %1326, %1641 : vector<16x128xi1>, vector<16x128xf32>
    %1643 = arith.addf %1638, %1642 : vector<16x128xf32>
    %1644 = arith.mulf %1631, %1643 : vector<16x128xf32>
    %1645 = arith.addf %1628, %1644 : vector<16x128xf32>
    %c66_687 = arith.constant 66 : index
    %c0_688 = arith.constant 0 : index
    %c0_689 = arith.constant 0 : index
    %1646 = vector.load %arg5[%c66_687, %c0_688, %c0_689] : memref<68x16x128xbf16, #tpu.memory_space<vmem>>, vector<1x16x128xbf16>
    %1647 = vector.shape_cast %1646 : vector<1x16x128xbf16> to vector<16x128xbf16>
    %1648 = arith.extf %1647 : vector<16x128xbf16> to vector<16x128xf32>
    %1649 = arith.subf %1648, %1393 : vector<16x128xf32>
    %1650 = math.exp %1649 : vector<16x128xf32>
    %1651 = arith.addf %1634, %1650 : vector<16x128xf32>
    %c15_i32_690 = arith.constant 15 : i32
    %1652 = vector.broadcast %c15_i32_690 : i32 to vector<16x128xi32>
    %1653 = arith.cmpi eq, %1321, %1652 : vector<16x128xi32>
    %cst_691 = arith.constant 0.000000e+00 : f32
    %1654 = vector.broadcast %cst_691 : f32 to vector<16x128xf32>
    %1655 = arith.select %1653, %1324, %1654 : vector<16x128xi1>, vector<16x128xf32>
    %c14_i32_692 = arith.constant 14 : i32
    %1656 = vector.broadcast %c14_i32_692 : i32 to vector<16x128xi32>
    %1657 = arith.cmpi eq, %1321, %1656 : vector<16x128xi32>
    %cst_693 = arith.constant 0.000000e+00 : f32
    %1658 = vector.broadcast %cst_693 : f32 to vector<16x128xf32>
    %1659 = arith.select %1657, %1326, %1658 : vector<16x128xi1>, vector<16x128xf32>
    %1660 = arith.addf %1655, %1659 : vector<16x128xf32>
    %1661 = arith.mulf %1648, %1660 : vector<16x128xf32>
    %1662 = arith.addf %1645, %1661 : vector<16x128xf32>
    %c67_694 = arith.constant 67 : index
    %c0_695 = arith.constant 0 : index
    %c0_696 = arith.constant 0 : index
    %1663 = vector.load %arg5[%c67_694, %c0_695, %c0_696] : memref<68x16x128xbf16, #tpu.memory_space<vmem>>, vector<1x16x128xbf16>
    %1664 = vector.shape_cast %1663 : vector<1x16x128xbf16> to vector<16x128xbf16>
    %1665 = arith.extf %1664 : vector<16x128xbf16> to vector<16x128xf32>
    %1666 = arith.subf %1665, %1393 : vector<16x128xf32>
    %1667 = math.exp %1666 : vector<16x128xf32>
    %1668 = arith.addf %1651, %1667 : vector<16x128xf32>
    %c16_i32_697 = arith.constant 16 : i32
    %1669 = vector.broadcast %c16_i32_697 : i32 to vector<16x128xi32>
    %1670 = arith.cmpi eq, %1321, %1669 : vector<16x128xi32>
    %cst_698 = arith.constant 0.000000e+00 : f32
    %1671 = vector.broadcast %cst_698 : f32 to vector<16x128xf32>
    %1672 = arith.select %1670, %1324, %1671 : vector<16x128xi1>, vector<16x128xf32>
    %c15_i32_699 = arith.constant 15 : i32
    %1673 = vector.broadcast %c15_i32_699 : i32 to vector<16x128xi32>
    %1674 = arith.cmpi eq, %1321, %1673 : vector<16x128xi32>
    %cst_700 = arith.constant 0.000000e+00 : f32
    %1675 = vector.broadcast %cst_700 : f32 to vector<16x128xf32>
    %1676 = arith.select %1674, %1326, %1675 : vector<16x128xi1>, vector<16x128xf32>
    %1677 = arith.addf %1672, %1676 : vector<16x128xf32>
    %1678 = arith.mulf %1665, %1677 : vector<16x128xf32>
    %1679 = arith.addf %1662, %1678 : vector<16x128xf32>
    %1680 = math.log %1668 : vector<16x128xf32>
    %1681 = arith.addf %1680, %1393 : vector<16x128xf32>
    %1682 = arith.subf %1681, %1679 : vector<16x128xf32>
    %1683 = arith.addf %1319, %1682 : vector<16x128xf32>
    %cst_701 = arith.constant 2.500000e-01 : f32
    %1684 = vector.broadcast %cst_701 : f32 to vector<16x128xf32>
    %1685 = arith.mulf %1683, %1684 : vector<16x128xf32>
    %c0_702 = arith.constant 0 : index
    %c0_703 = arith.constant 0 : index
    %c0_704 = arith.constant 0 : index
    %1686 = vector.load %arg7[%c0_702, %c0_703, %c0_704] : memref<1x1x1xf32, #tpu.memory_space<vmem>>, vector<1x1x1xf32>
    %1687 = vector.shape_cast %1686 : vector<1x1x1xf32> to vector<1x1xf32>
    %1688 = arith.mulf %1685, %4 : vector<16x128xf32>
    %cst_705 = arith.constant dense<0.000000e+00> : vector<128xf32>
    %1689 = vector.multi_reduction <add>, %1688, %cst_705 [0] : vector<16x128xf32> to vector<128xf32>
    %1690 = vector.shape_cast %1689 : vector<128xf32> to vector<1x128xf32>
    %cst_706 = arith.constant dense<0.000000e+00> : vector<1xf32>
    %1691 = vector.multi_reduction <add>, %1690, %cst_706 [1] : vector<1x128xf32> to vector<1xf32>
    %1692 = vector.shape_cast %1691 : vector<1xf32> to vector<1x1xf32>
    %1693 = arith.addf %1687, %1692 : vector<1x1xf32>
    %c0_707 = arith.constant 0 : index
    %c0_708 = arith.constant 0 : index
    %c0_709 = arith.constant 0 : index
    %1694 = vector.load %arg7[%c0_707, %c0_708, %c0_709] : memref<1x1x1xf32, #tpu.memory_space<vmem>>, vector<1x1x1xf32>
    %1695 = vector.shape_cast %1694 : vector<1x1x1xf32> to vector<1x1xf32>
    %1696 = vector.shape_cast %1693 : vector<1x1xf32> to vector<1x1x1xf32>
    tpu.vector_store %arg7[%c0_707, %c0_708, %c0_709], %1696 {strides = array<i32>} : memref<1x1x1xf32, #tpu.memory_space<vmem>>, vector<1x1x1xf32>,
    return
  }
  func.func @transform_0(%arg0: i32, %arg1: i32) -> (i32, i32, i32) {
    %c2_i32 = arith.constant 2 : i32
    %0 = arith.muli %arg0, %c2_i32 : i32
    %1 = arith.addi %0, %arg1 : i32
    %c0_i32 = arith.constant 0 : i32
    %c0_i32_0 = arith.constant 0 : i32
    %c0_i32_1 = arith.constant 0 : i32
    return %c0_i32, %1, %c0_i32_0 : i32, i32, i32
  }
  func.func @transform_1(%arg0: i32, %arg1: i32) -> (i32, i32, i32) {
    %c2_i32 = arith.constant 2 : i32
    %0 = arith.muli %arg0, %c2_i32 : i32
    %1 = arith.addi %0, %arg1 : i32
    %c0_i32 = arith.constant 0 : i32
    %c0_i32_0 = arith.constant 0 : i32
    %c0_i32_1 = arith.constant 0 : i32
    return %c0_i32, %1, %c0_i32_0 : i32, i32, i32
  }
  func.func @transform_2(%arg0: i32, %arg1: i32) -> (i32, i32, i32) {
    %c2_i32 = arith.constant 2 : i32
    %0 = arith.muli %arg0, %c2_i32 : i32
    %1 = arith.addi %0, %arg1 : i32
    %c0_i32 = arith.constant 0 : i32
    %c0_i32_0 = arith.constant 0 : i32
    %c0_i32_1 = arith.constant 0 : i32
    return %c0_i32, %1, %c0_i32_0 : i32, i32, i32
  }
  func.func @transform_3(%arg0: i32, %arg1: i32) -> (i32, i32, i32) {
    %c2_i32 = arith.constant 2 : i32
    %0 = arith.muli %arg0, %c2_i32 : i32
    %1 = arith.addi %0, %arg1 : i32
    %c0_i32 = arith.constant 0 : i32
    %c0_i32_0 = arith.constant 0 : i32
    %c0_i32_1 = arith.constant 0 : i32
    return %c0_i32, %1, %c0_i32_0 : i32, i32, i32
  }
  func.func @transform_4(%arg0: i32, %arg1: i32) -> (i32, i32, i32) {
    %c0_i32 = arith.constant 0 : i32
    %c0_i32_0 = arith.constant 0 : i32
    %c0_i32_1 = arith.constant 0 : i32
    return %arg0, %c0_i32, %c0_i32_0 : i32, i32, i32
  }
  func.func @transform_5(%arg0: i32, %arg1: i32) -> (i32, i32, i32) {
    %c0_i32 = arith.constant 0 : i32
    %c0_i32_0 = arith.constant 0 : i32
    %c0_i32_1 = arith.constant 0 : i32
    return %arg0, %c0_i32, %c0_i32_0 : i32, i32, i32
  }
}

</mosaic_0001>

<llo_original>
// kernel: tpu_custom_call.1
$region0: #{tpu_custom_call.1}
  #allocation0 [shape = 'u32[]', space=smem, size = 0x4, offset = 0x4, fixed_abs, tag = 'smem constant byte address 0x4 - core index']
  #allocation1 [shape = 'u32[144,128]{1,0:T(1,128)}', space=vmem, size = 0x12000, scoped, tag = 'internal scratch']
  #allocation9 [shape = 's32[]', space=sflag, size = 0x4, offset = 0, fixed_abs, tag = 'sflag constant byte address 0x0 - dummy sync flag']
  #allocation11 [shape = 's32[]', space=sflag, size = 0x4, offset = 0, fixed_abs, tag = 'sflag constant byte address 0x0 - dummy sync flag']
  #allocation13 [shape = 's32[]', space=sflag, size = 0x4, offset = 0, fixed_abs, tag = 'sflag constant byte address 0x0 - dummy sync flag']
  %s0 = inlined_call_operand.hbm [shape: f32[8,64,128], index: 0, kind: input, shape index: {}]
  %s1 = inlined_call_operand.hbm [shape: f32[2,64,128], index: 1, kind: input, shape index: {}]
  %s2 = inlined_call_operand.hbm [shape: f32[1,64,128], index: 2, kind: input, shape index: {}]
  %s3 = inlined_call_operand.hbm [shape: bf16[68,64,128], index: 3, kind: input, shape index: {}]
  %s4 = inlined_call_operand.vmem [shape: f32[2,1,1], index: 4, kind: output, shape index: {0}]
  %s5 = inlined_call_operand.vmem [shape: f32[2,1,1], index: 5, kind: output, shape index: {1}]
  %6 = xla_tuple %s4, %s5
  %s7 = sld [smem:[#allocation0]]
  $region77: #{tpu_custom_call.1} parent=0
    _
  %s9 = ssub.s32 1, %s7
  %s10 = scalar_select 0, %s9, %s7
  $region1: #{tpu_custom_call.1} parent=0
    #allocation2 [shape = 'u8[131072]{0}', space=vmem, size = 0x20000, scoped, tag = 'input window, operand 0']
    #allocation3 [shape = 's32[2]{0}', space=sflag, size = 0x8, scoped, tag = 'scoped memory for tpu_custom_call.1']
    #allocation4 [shape = 'u8[32768]{0}', space=vmem, size = 0x8000, scoped, tag = 'input window, operand 1']
    #allocation5 [shape = 's32[2]{0}', space=sflag, size = 0x8, scoped, tag = 'scoped memory for tpu_custom_call.1']
    #allocation6 [shape = 'u8[16384]{0}', space=vmem, size = 0x4000, scoped, tag = 'input window, operand 2']
    #allocation7 [shape = 'u8[557056]{0}', space=vmem, size = 0x88000, scoped, tag = 'input window, operand 3']
    #allocation8 [shape = 's32[2]{0}', space=sflag, size = 0x8, scoped, tag = 'scoped memory for tpu_custom_call.1']
    %11 = vsyncpa [#allocation3], 0
    %s12 = scalar_lea.sflag [#allocation3], 1
    %13 = vsyncpa %s12, 0
    %14 = vsyncpa [#allocation5], 0
    %s15 = scalar_lea.sflag [#allocation5], 1
    %16 = vsyncpa %s15, 0
    %17 = vsyncpa [#allocation8], 0
    %s18 = scalar_lea.sflag [#allocation8], 1
    %19 = vsyncpa %s18, 0
    loop: start=0, step=1, limit=6
    $region2: #{tpu_custom_call.1} parent=1 // loop_pre_header
      _
    $region3: #{tpu_custom_call.1} parent=1 // loop_header
      %s21 = sphi 0, %s25
      %p22 = scmp.ge.s32.totalorder %s21, 6
      %s28 = sphi 0, %s40
      %s29 = sphi 0, %s36
      %s30 = sphi 0, %s28
      %s31 = sphi 0, %s29
      %s32 = sphi 0, %s30
      %s33 = sphi 0, %s31
      %s47 = sphi 0, %s49
      %s50 = sphi 0, %s47
      %s51 = sphi 0, %s50
      %s67 = sphi 0, %s51
      %s77 = sphi 0, %s79
      %s80 = sphi 0, %s77
      %s81 = sphi 0, %s80
      %s97 = sphi 0, %s81
      %s107 = sphi 0, %s109
      %s110 = sphi 0, %s107
      %s111 = sphi 0, %s110
      %s127 = sphi 0, %s111
      %s137 = sphi 0, %s139
      %s140 = sphi 0, %s137
      %s141 = sphi 0, %s140
      %s157 = sphi 0, %s141
      %s163 = sphi 0, %s165
      %s166 = sphi 0, %s163
      %s167 = sphi 0, %s166
      %s183 = sphi 0, %s167
      %s189 = sphi 0, %s191
      %s192 = sphi 0, %s189
      %s193 = sphi 0, %s192
      %s209 = sphi 0, %s193
    $region4: #{tpu_custom_call.1} parent=1 // loop_header_branch
      %24 = sbr.rel (%p22) target = $region8
    $region5: #{tpu_custom_call.1} parent=1 // loop_body
      %s26 = ssub.s32 %s21, 1
      %s27 = ssub.s32 %s21, 2
      %s34 = sadd.s32 1, %s29
      %p35 = scmp.ge.s32.totalorder %s34, 2
      %s36 = scalar_select %p35, 0, %s34
      %s37 = sadd.s32 1, %s28
      %s38 = scalar_select %p35, %s37, %s28
      %p39 = scmp.ge.s32.totalorder %s38, 2
      %s40 = scalar_select %p39, 0, %s38
      %s41 = smul.u32 %s28, 2
      %s42 = sadd.s32 %s41, %s29
      %s43 = smul.u32 %s40, 2
      %s44 = sadd.s32 %s43, %s36
      %s45 = ssub.s32 %s42, %s44
      %p46 = scmp.eq.s32.totalorder %s45, 0
      %s48 = sadd.s32 %s47, 1
      %s49 = scalar_select %p46, %s47, %s48
      %p52 = pneg %p46
      %p53 = scmp.eq.s32.totalorder %s21, 3
      %p54 = por %p52, %p53
      %p55 = scmp.ne.s32.totalorder %s47, %s50
      %p56 = scmp.eq.s32.totalorder %s21, 0
      %p57 = por %p55, %p56
      %p58 = scmp.ne.s32.totalorder %s47, %s50
      %p59 = scmp.eq.s32.totalorder %s26, 3
      %p60 = por %p58, %p59
      %p61 = scmp.ne.s32.totalorder %s50, %s51
      %p62 = scmp.eq.s32.totalorder %s26, 0
      %p63 = por %p61, %p62
      %p64 = scmp.ne.s32.totalorder %s50, %s51
      %p65 = scmp.eq.s32.totalorder %s27, 3
      %p66 = por %p64, %p65
      %p68 = scmp.ne.s32.totalorder %s51, %s67
      %p69 = scmp.eq.s32.totalorder %s27, 0
      %p70 = por %p68, %p69
      %s71 = smul.u32 %s28, 2
      %s72 = sadd.s32 %s71, %s29
      %s73 = smul.u32 %s40, 2
      %s74 = sadd.s32 %s73, %s36
      %s75 = ssub.s32 %s72, %s74
      %p76 = scmp.eq.s32.totalorder %s75, 0
      %s78 = sadd.s32 %s77, 1
      %s79 = scalar_select %p76, %s77, %s78
      %p82 = pneg %p76
      %p83 = scmp.eq.s32.totalorder %s21, 3
      %p84 = por %p82, %p83
      %p85 = scmp.ne.s32.totalorder %s77, %s80
      %p86 = scmp.eq.s32.totalorder %s21, 0
      %p87 = por %p85, %p86
      %p88 = scmp.ne.s32.totalorder %s77, %s80
      %p89 = scmp.eq.s32.totalorder %s26, 3
      %p90 = por %p88, %p89
      %p91 = scmp.ne.s32.totalorder %s80, %s81
      %p92 = scmp.eq.s32.totalorder %s26, 0
      %p93 = por %p91, %p92
      %p94 = scmp.ne.s32.totalorder %s80, %s81
      %p95 = scmp.eq.s32.totalorder %s27, 3
      %p96 = por %p94, %p95
      %p98 = scmp.ne.s32.totalorder %s81, %s97
      %p99 = scmp.eq.s32.totalorder %s27, 0
      %p100 = por %p98, %p99
      %s101 = smul.u32 %s28, 2
      %s102 = sadd.s32 %s101, %s29
      %s103 = smul.u32 %s40, 2
      %s104 = sadd.s32 %s103, %s36
      %s105 = ssub.s32 %s102, %s104
      %p106 = scmp.eq.s32.totalorder %s105, 0
      %s108 = sadd.s32 %s107, 1
      %s109 = scalar_select %p106, %s107, %s108
      %p112 = pneg %p106
      %p113 = scmp.eq.s32.totalorder %s21, 3
      %p114 = por %p112, %p113
      %p115 = scmp.ne.s32.totalorder %s107, %s110
      %p116 = scmp.eq.s32.totalorder %s21, 0
      %p117 = por %p115, %p116
      %p118 = scmp.ne.s32.totalorder %s107, %s110
      %p119 = scmp.eq.s32.totalorder %s26, 3
      %p120 = por %p118, %p119
      %p121 = scmp.ne.s32.totalorder %s110, %s111
      %p122 = scmp.eq.s32.totalorder %s26, 0
      %p123 = por %p121, %p122
      %p124 = scmp.ne.s32.totalorder %s110, %s111
      %p125 = scmp.eq.s32.totalorder %s27, 3
      %p126 = por %p124, %p125
      %p128 = scmp.ne.s32.totalorder %s111, %s127
      %p129 = scmp.eq.s32.totalorder %s27, 0
      %p130 = por %p128, %p129
      %s131 = smul.u32 %s28, 2
      %s132 = sadd.s32 %s131, %s29
      %s133 = smul.u32 %s40, 2
      %s134 = sadd.s32 %s133, %s36
      %s135 = ssub.s32 %s132, %s134
      %p136 = scmp.eq.s32.totalorder %s135, 0
      %s138 = sadd.s32 %s137, 1
      %s139 = scalar_select %p136, %s137, %s138
      %p142 = pneg %p136
      %p143 = scmp.eq.s32.totalorder %s21, 3
      %p144 = por %p142, %p143
      %p145 = scmp.ne.s32.totalorder %s137, %s140
      %p146 = scmp.eq.s32.totalorder %s21, 0
      %p147 = por %p145, %p146
      %p148 = scmp.ne.s32.totalorder %s137, %s140
      %p149 = scmp.eq.s32.totalorder %s26, 3
      %p150 = por %p148, %p149
      %p151 = scmp.ne.s32.totalorder %s140, %s141
      %p152 = scmp.eq.s32.totalorder %s26, 0
      %p153 = por %p151, %p152
      %p154 = scmp.ne.s32.totalorder %s140, %s141
      %p155 = scmp.eq.s32.totalorder %s27, 3
      %p156 = por %p154, %p155
      %p158 = scmp.ne.s32.totalorder %s141, %s157
      %p159 = scmp.eq.s32.totalorder %s27, 0
      %p160 = por %p158, %p159
      %s161 = ssub.s32 %s28, %s40
      %p162 = scmp.eq.s32.totalorder %s161, 0
      %s164 = sadd.s32 %s163, 1
      %s165 = scalar_select %p162, %s163, %s164
      %p168 = pneg %p162
      %p169 = scmp.eq.s32.totalorder %s21, 3
      %p170 = por %p168, %p169
      %p171 = scmp.ne.s32.totalorder %s163, %s166
      %p172 = scmp.eq.s32.totalorder %s21, 0
      %p173 = por %p171, %p172
      %p174 = scmp.ne.s32.totalorder %s163, %s166
      %p175 = scmp.eq.s32.totalorder %s26, 3
      %p176 = por %p174, %p175
      %p177 = scmp.ne.s32.totalorder %s166, %s167
      %p178 = scmp.eq.s32.totalorder %s26, 0
      %p179 = por %p177, %p178
      %p180 = scmp.ne.s32.totalorder %s166, %s167
      %p181 = scmp.eq.s32.totalorder %s27, 3
      %p182 = por %p180, %p181
      %p184 = scmp.ne.s32.totalorder %s167, %s183
      %p185 = scmp.eq.s32.totalorder %s27, 0
      %p186 = por %p184, %p185
      %s187 = ssub.s32 %s28, %s40
      %p188 = scmp.eq.s32.totalorder %s187, 0
      %s190 = sadd.s32 %s189, 1
      %s191 = scalar_select %p188, %s189, %s190
      %p194 = pneg %p188
      %p195 = scmp.eq.s32.totalorder %s21, 3
      %p196 = por %p194, %p195
      %p197 = scmp.ne.s32.totalorder %s189, %s192
      %p198 = scmp.eq.s32.totalorder %s21, 0
      %p199 = por %p197, %p198
      %p200 = scmp.ne.s32.totalorder %s189, %s192
      %p201 = scmp.eq.s32.totalorder %s26, 3
      %p202 = por %p200, %p201
      %p203 = scmp.ne.s32.totalorder %s192, %s193
      %p204 = scmp.eq.s32.totalorder %s26, 0
      %p205 = por %p203, %p204
      %p206 = scmp.ne.s32.totalorder %s192, %s193
      %p207 = scmp.eq.s32.totalorder %s27, 3
      %p208 = por %p206, %p207
      %p210 = scmp.ne.s32.totalorder %s193, %s209
      %p211 = scmp.eq.s32.totalorder %s27, 0
      %p212 = por %p210, %p211
      %p213 = scmp.le.s32.totalorder 1, %s21
      %p214 = scmp.lt.s32.totalorder %s21, 5
      %p215 = pnand %p213, %p214
      %p216 = pneg %p215
      // Predicated region
      $region9: #{tpu_custom_call.1} parent=5 // pred_check
        _
      $region10: #{tpu_custom_call.1} parent=5 // pred_check_branch
        %218 = sbr.rel (%p215) target = $region12
      $region11: #{tpu_custom_call.1} parent=5 // pred_region
        %s219 = ssub.s32 %s21, 1
      $region12: #{tpu_custom_call.1} parent=5 // pred_fallthru
        _
      %p220 = scmp.lt.s32.totalorder %s21, 4
      // Predicated region
      $region13: #{tpu_custom_call.1} parent=5 // pred_check
        %p221 = pneg %p220
      $region14: #{tpu_custom_call.1} parent=5 // pred_check_branch
        %223 = sbr.rel (%p221) target = $region16
      $region15: #{tpu_custom_call.1} parent=5 // pred_region
        // Predicated region
        $region17: #{tpu_custom_call.1} parent=15 // pred_check
          %p224 = pneg %p57
        $region18: #{tpu_custom_call.1} parent=15 // pred_check_branch
          %226 = sbr.rel (%p224) target = $region20
        $region19: #{tpu_custom_call.1} parent=15 // pred_region
          #allocation10 [shape = 'u32[6]{0}', space=smem, size = 0x18, scoped, tag = 'DMA stride descriptor']
          %s227 = sand.u32 %s47, 1
          %s228 = scalar_lea.sflag [#allocation3], %s227
          %s229 = sand.u32 %s47, 1
          %s230 = smul.addr %s229, 128
          %s231 = scalar_lea.vmem [#allocation2], %s230
          %s232 = smul.u32 %s28, 2
          %s233 = sadd.s32 %s232, %s29
          %s234 = smul.u32 2, %s233
          %s236 = ssub.s32 2048, 2048
          %237 = vsyncadd %s228, %s236
          %s238 = smul.addr %s234, 128
          %s239 = scalar_lea.hbm %s0, %s238
          %s241 = sshll.u32 1, 14
          %s242 = sxor.u32 4294967295, %s241
          %s244 = sld [smem:[#allocation0]]
          %s245 = sadd.s32 2, %s244
          %s247 = sshll.u32 7, 26
          %s248 = sxor.u32 4294967295, %s247
          %s249 = sand.u32 0, %s248
          %s250 = sshll.u32 %s245, 26
          %s251 = sor.u32 %s249, %s250
          %s252 = sshll.u32 %s231, 4
          %s253 = int_to_ptr.vmem [resolvable:$true] %s252
          %259 = sst [smem:[#allocation10]] 1024
          %s260 = scalar_lea.smem [#allocation10], 1
          %261 = sst [smem:[%s260]] 256
          %s262 = scalar_lea.smem [#allocation10], 2
          %263 = sst [smem:[%s262]] 2
          %s264 = scalar_lea.smem [#allocation10], 3
          %265 = sst [smem:[%s264]] 128
          %s266 = scalar_lea.smem [#allocation10], 4
          %267 = sst [smem:[%s266]] 128
          %s268 = scalar_lea.smem [#allocation10], 5
          %269 = sst [smem:[%s268]] 8
          %271 = dma.general %s239, 2048, %s253, %s228, [#allocation9], [#allocation10], %s251, 0
        $region20: #{tpu_custom_call.1} parent=15 // pred_fallthru
          _
        // Predicated region
        $region21: #{tpu_custom_call.1} parent=15 // pred_check
          %p272 = pneg %p87
        $region22: #{tpu_custom_call.1} parent=15 // pred_check_branch
          %274 = sbr.rel (%p272) target = $region24
        $region23: #{tpu_custom_call.1} parent=15 // pred_region
          #allocation12 [shape = 'u32[6]{0}', space=smem, size = 0x18, scoped, tag = 'DMA stride descriptor']
          %s275 = sand.u32 %s21, 1
          %s276 = scalar_lea.sflag [#allocation5], %s275
          %s277 = sand.u32 %s77, 1
          %s278 = smul.addr %s277, 32
          %s279 = scalar_lea.vmem [#allocation4], %s278
          %s280 = smul.u32 %s28, 2
          %s281 = sadd.s32 %s280, %s29
          %s282 = smul.u32 2, %s281
          %s284 = ssub.s32 512, 512
          %285 = vsyncadd %s276, %s284
          %s286 = smul.addr %s282, 128
          %s287 = scalar_lea.hbm %s1, %s286
          %s289 = sshll.u32 1, 14
          %s290 = sxor.u32 4294967295, %s289
          %s292 = sld [smem:[#allocation0]]
          %s293 = sadd.s32 2, %s292
          %s295 = sshll.u32 7, 26
          %s296 = sxor.u32 4294967295, %s295
          %s297 = sand.u32 0, %s296
          %s298 = sshll.u32 %s293, 26
          %s299 = sor.u32 %s297, %s298
          %s300 = sshll.u32 %s279, 4
          %s301 = int_to_ptr.vmem [resolvable:$true] %s300
          %307 = sst [smem:[#allocation12]] 1024
          %s308 = scalar_lea.smem [#allocation12], 1
          %309 = sst [smem:[%s308]] 256
          %s310 = scalar_lea.smem [#allocation12], 2
          %311 = sst [smem:[%s310]] 2
          %s312 = scalar_lea.smem [#allocation12], 3
          %313 = sst [smem:[%s312]] 128
          %s314 = scalar_lea.smem [#allocation12], 4
          %315 = sst [smem:[%s314]] 128
          %s316 = scalar_lea.smem [#allocation12], 5
          %317 = sst [smem:[%s316]] 8
          %319 = dma.general %s287, 512, %s301, %s276, [#allocation11], [#allocation12], %s299, 0
        $region24: #{tpu_custom_call.1} parent=15 // pred_fallthru
          _
        // Predicated region
        $region25: #{tpu_custom_call.1} parent=15 // pred_check
          %p320 = pneg %p117
        $region26: #{tpu_custom_call.1} parent=15 // pred_check_branch
          %322 = sbr.rel (%p320) target = $region28
        $region27: #{tpu_custom_call.1} parent=15 // pred_region
          %s323 = sand.u32 %s21, 1
          %s324 = scalar_lea.sflag [#allocation5], %s323
          %s325 = sand.u32 %s107, 1
          %s326 = smul.addr %s325, 16
          %s327 = scalar_lea.vmem [#allocation6], %s326
          %s328 = smul.u32 %s28, 2
          %s329 = sadd.s32 %s328, %s29
          %s330 = smul.u32 2, %s329
          %s332 = ssub.s32 256, 256
          %333 = vsyncadd %s324, %s332
          %s334 = smul.addr %s330, 128
          %s335 = scalar_lea.hbm %s2, %s334
          %s336 = sshll.u32 %s327, 4
          %s337 = int_to_ptr.vmem [resolvable:$true] %s336
          %342 = dma.hbm_to_vmem [thread:$0]  %s335, 256, %s337, %s324, 128, 128, 8
        $region28: #{tpu_custom_call.1} parent=15 // pred_fallthru
          _
        // Predicated region
        $region29: #{tpu_custom_call.1} parent=15 // pred_check
          %p343 = pneg %p147
        $region30: #{tpu_custom_call.1} parent=15 // pred_check_branch
          %345 = sbr.rel (%p343) target = $region32
        $region31: #{tpu_custom_call.1} parent=15 // pred_region
          #allocation14 [shape = 'u32[6]{0}', space=smem, size = 0x18, scoped, tag = 'DMA stride descriptor']
          %s346 = sand.u32 %s137, 1
          %s347 = scalar_lea.sflag [#allocation8], %s346
          %s348 = sand.u32 %s137, 1
          %s349 = smul.addr %s348, 544
          %s350 = scalar_lea.vmem [#allocation7], %s349
          %s351 = smul.u32 %s28, 2
          %s352 = sadd.s32 %s351, %s29
          %s353 = smul.u32 2, %s352
          %s355 = ssub.s32 8704, 8704
          %356 = vsyncadd %s347, %s355
          %s357 = smul.addr %s353, 64
          %s358 = scalar_lea.hbm %s3, %s357
          %s360 = sshll.u32 1, 14
          %s361 = sxor.u32 4294967295, %s360
          %s363 = sld [smem:[#allocation0]]
          %s364 = sadd.s32 2, %s363
          %s366 = sshll.u32 7, 26
          %s367 = sxor.u32 4294967295, %s366
          %s368 = sand.u32 0, %s367
          %s369 = sshll.u32 %s364, 26
          %s370 = sor.u32 %s368, %s369
          %s371 = sshll.u32 %s350, 4
          %s372 = int_to_ptr.vmem [resolvable:$true] %s371
          %378 = sst [smem:[#allocation14]] 512
          %s379 = scalar_lea.smem [#allocation14], 1
          %380 = sst [smem:[%s379]] 128
          %s381 = scalar_lea.smem [#allocation14], 2
          %382 = sst [smem:[%s381]] 2
          %s383 = scalar_lea.smem [#allocation14], 3
          %384 = sst [smem:[%s383]] 64
          %s385 = scalar_lea.smem [#allocation14], 4
          %386 = sst [smem:[%s385]] 64
          %s387 = scalar_lea.smem [#allocation14], 5
          %388 = sst [smem:[%s387]] 4
          %390 = dma.general %s358, 8704, %s372, %s347, [#allocation13], [#allocation14], %s370, 0
        $region32: #{tpu_custom_call.1} parent=15 // pred_fallthru
          _
      $region16: #{tpu_custom_call.1} parent=5 // pred_fallthru
        _
      %p391 = scmp.le.s32.totalorder 1, %s21
      %p392 = scmp.lt.s32.totalorder %s21, 5
      %p393 = pnand %p391, %p392
      %p394 = pneg %p393
      // Predicated region
      $region33: #{tpu_custom_call.1} parent=5 // pred_check
        _
      $region34: #{tpu_custom_call.1} parent=5 // pred_check_branch
        %396 = sbr.rel (%p393) target = $region36
      $region35: #{tpu_custom_call.1} parent=5 // pred_region
        %s397 = ssub.s32 %s21, 1
        %s398 = sand.u32 %s50, 1
        %s399 = scalar_lea.sflag [#allocation3], %s398
        %s400 = sand.u32 %s50, 1
        %s401 = smul.addr %s400, 128
        %s402 = scalar_lea.vmem [#allocation2], %s401
        // Predicated region
        $region37: #{tpu_custom_call.1} parent=35 // pred_check
          %p403 = pneg %p63
        $region38: #{tpu_custom_call.1} parent=35 // pred_check_branch
          %405 = sbr.rel (%p403) target = $region40
        $region39: #{tpu_custom_call.1} parent=35 // pred_region
          %406 = dma.done %s399, 2048
        $region40: #{tpu_custom_call.1} parent=35 // pred_fallthru
          _
        %s407 = sand.u32 %s26, 1
        %s408 = scalar_lea.sflag [#allocation5], %s407
        %s409 = sand.u32 %s80, 1
        %s410 = smul.addr %s409, 32
        %s411 = scalar_lea.vmem [#allocation4], %s410
        // Predicated region
        $region41: #{tpu_custom_call.1} parent=35 // pred_check
          %p412 = pneg %p93
        $region42: #{tpu_custom_call.1} parent=35 // pred_check_branch
          %414 = sbr.rel (%p412) target = $region44
        $region43: #{tpu_custom_call.1} parent=35 // pred_region
          %415 = dma.done %s408, 512
        $region44: #{tpu_custom_call.1} parent=35 // pred_fallthru
          _
        %s416 = sand.u32 %s26, 1
        %s417 = scalar_lea.sflag [#allocation5], %s416
        %s418 = sand.u32 %s110, 1
        %s419 = smul.addr %s418, 16
        %s420 = scalar_lea.vmem [#allocation6], %s419
        // Predicated region
        $region45: #{tpu_custom_call.1} parent=35 // pred_check
          %p421 = pneg %p123
        $region46: #{tpu_custom_call.1} parent=35 // pred_check_branch
          %423 = sbr.rel (%p421) target = $region48
        $region47: #{tpu_custom_call.1} parent=35 // pred_region
          %424 = dma.done %s417, 256
        $region48: #{tpu_custom_call.1} parent=35 // pred_fallthru
          _
        %s425 = sand.u32 %s140, 1
        %s426 = scalar_lea.sflag [#allocation8], %s425
        %s427 = sand.u32 %s140, 1
        %s428 = smul.addr %s427, 544
        %s429 = scalar_lea.vmem [#allocation7], %s428
        // Predicated region
        $region49: #{tpu_custom_call.1} parent=35 // pred_check
          %p430 = pneg %p153
        $region50: #{tpu_custom_call.1} parent=35 // pred_check_branch
          %432 = sbr.rel (%p430) target = $region52
        $region51: #{tpu_custom_call.1} parent=35 // pred_region
          %433 = dma.done %s426, 8704
        $region52: #{tpu_custom_call.1} parent=35 // pred_fallthru
          _
        %s434 = sand.u32 %s50, 1
        %s435 = scalar_lea.sflag [#allocation3], %s434
        %s436 = sand.u32 %s50, 1
        %s437 = smul.addr %s436, 128
        %s438 = scalar_lea.vmem [#allocation2], %s437
        %p439 = pneg %p63
        %p440 = pneg %p60
        %s441 = sand.u32 %s26, 1
        %s442 = scalar_lea.sflag [#allocation5], %s441
        %s443 = sand.u32 %s80, 1
        %s444 = smul.addr %s443, 32
        %s445 = scalar_lea.vmem [#allocation4], %s444
        %p446 = pneg %p93
        %p447 = pneg %p90
        %s448 = sand.u32 %s26, 1
        %s449 = scalar_lea.sflag [#allocation5], %s448
        %s450 = sand.u32 %s110, 1
        %s451 = smul.addr %s450, 16
        %s452 = scalar_lea.vmem [#allocation6], %s451
        %p453 = pneg %p123
        %p454 = pneg %p120
        %s455 = sand.u32 %s140, 1
        %s456 = scalar_lea.sflag [#allocation8], %s455
        %s457 = sand.u32 %s140, 1
        %s458 = smul.addr %s457, 544
        %s459 = scalar_lea.vmem [#allocation7], %s458
        %p460 = pneg %p153
        %p461 = pneg %p150
        %p462 = pneg %p179
        %p463 = pneg %p176
        %p464 = scmp.lt.s32.totalorder %s30, 1
        %s465 = scalar_select %p464, %s30, 1
        %s466 = scalar_lea.vmem %s4, %s465
        %p467 = pneg %p205
        %p468 = pneg %p202
        %p469 = scmp.lt.s32.totalorder %s30, 1
        %s470 = scalar_select %p469, %s30, 1
        %s471 = scalar_lea.vmem %s5, %s470
        %s472 = smul.u32 %s30, 2
        %s473 = sadd.s32 %s472, %s31
        %s474 = smul.u32 2, %s473
        %s475 = smul.u32 %s30, 2
        %s476 = sadd.s32 %s475, %s31
        %s477 = smul.u32 2, %s476
        %s478 = smul.u32 %s30, 2
        %s479 = sadd.s32 %s478, %s31
        %s480 = smul.u32 2, %s479
        %s481 = smul.u32 %s30, 2
        %s482 = sadd.s32 %s481, %s31
        %s483 = smul.u32 2, %s482
        %p484 = scmp.lt.s32.totalorder %s30, 1
        %s485 = scalar_select %p484, %s30, 1
        %s486 = scalar_lea.vmem %s4, %s485
        %p487 = scmp.lt.s32.totalorder %s30, 1
        %s488 = scalar_select %p487, %s30, 1
        %s489 = scalar_lea.vmem %s5, %s488
        %p490 = scmp.eq.s32.totalorder %s31, 0
        // Predicated region
        $region53: #{tpu_custom_call.1} parent=35 // pred_check
          %p491 = pneg %p490
        $region54: #{tpu_custom_call.1} parent=35 // pred_check_branch
          %493 = sbr.rel (%p491) target = $region56
        $region55: #{tpu_custom_call.1} parent=35 // pred_region
          %vm494 = vcmask 0
          %495 = vst.msk [vmem:[%s486] sm:$0x1] %vm494, 0.0
          %496 = vst.msk [vmem:[%s489] sm:$0x1] %vm494, 0.0
        $region56: #{tpu_custom_call.1} parent=35 // pred_fallthru
          _
        %v497 = vld [vmem:[%s420] sm:$0xff]
        %v498 = vld [vmem:[%s420 + $0x8] sm:$0xff]
        %v499 = vld [vmem:[%s402] sm:$0xff]
        %v500 = vld [vmem:[%s402 + $0x8] sm:$0xff]
        %s501 = scalar_lea.vmem %s402, 16 [#allocation2]
        %v502 = vld [vmem:[%s501] sm:$0xff]
        %v503 = vld [vmem:[%s501 + $0x8] sm:$0xff]
        %s504 = scalar_lea.vmem %s402, 32 [#allocation2]
        %v505 = vld [vmem:[%s504] sm:$0xff]
        %v506 = vld [vmem:[%s504 + $0x8] sm:$0xff]
        %s507 = scalar_lea.vmem %s402, 48 [#allocation2]
        %v508 = vld [vmem:[%s507] sm:$0xff]
        %v509 = vld [vmem:[%s507 + $0x8] sm:$0xff]
        %s510 = scalar_lea.vmem %s402, 64 [#allocation2]
        %v511 = vld [vmem:[%s510] sm:$0xff]
        %v512 = vld [vmem:[%s510 + $0x8] sm:$0xff]
        %s513 = scalar_lea.vmem %s402, 80 [#allocation2]
        %v514 = vld [vmem:[%s513] sm:$0xff]
        %v515 = vld [vmem:[%s513 + $0x8] sm:$0xff]
        %s516 = scalar_lea.vmem %s402, 96 [#allocation2]
        %v517 = vld [vmem:[%s516] sm:$0xff]
        %v518 = vld [vmem:[%s516 + $0x8] sm:$0xff]
        %s519 = scalar_lea.vmem %s402, 112 [#allocation2]
        %v520 = vld [vmem:[%s519] sm:$0xff]
        %v521 = vld [vmem:[%s519 + $0x8] sm:$0xff]
        %v522 = vmul.f32 %v505, 0.5
        %v523 = vmul.f32 %v506, 0.5
        %v524 = vmul.f32 %v508, 0.5
        %v525 = vmul.f32 %v509, 0.5
        %v526 = vmul.f32 %v517, 0.5
        %v527 = vmul.f32 %v518, 0.5
        %v528 = vmul.f32 %v520, 0.5
        %v529 = vmul.f32 %v521, 0.5
        %v530 = vsub.f32 %v499, %v522
        %v531 = vsub.f32 %v500, %v523
        %v532 = vadd.f32 %v499, %v522
        %v533 = vadd.f32 %v500, %v523
        %v534 = vsub.f32 %v502, %v524
        %v535 = vsub.f32 %v503, %v525
        %v536 = vadd.f32 %v502, %v524
        %v537 = vadd.f32 %v503, %v525
        %v538 = vsub.f32 %v511, %v526
        %v539 = vsub.f32 %v512, %v527
        %v540 = vadd.f32 %v511, %v526
        %v541 = vadd.f32 %v512, %v527
        %v542 = vsub.f32 %v514, %v528
        %v543 = vsub.f32 %v515, %v529
        %v544 = vadd.f32 %v514, %v528
        %v545 = vadd.f32 %v515, %v529
        %v546 = vmin.f32 %v532, %v540
        %v547 = vmin.f32 %v533, %v541
        %v548 = vmax.f32 %v530, %v538
        %v549 = vmax.f32 %v531, %v539
        %v550 = vsub.f32 %v546, %v548
        %v551 = vsub.f32 %v547, %v549
        %v552 = vmax.f32 %v550, 0.0
        %v553 = vmax.f32 %v551, 0.0
        %v554 = vmin.f32 %v536, %v544
        %v555 = vmin.f32 %v537, %v545
        %v556 = vmax.f32 %v534, %v542
        %v557 = vmax.f32 %v535, %v543
        %v558 = vsub.f32 %v554, %v556
        %v559 = vsub.f32 %v555, %v557
        %v560 = vmax.f32 %v558, 0.0
        %v561 = vmax.f32 %v559, 0.0
        %v562 = vmul.f32 %v552, %v560
        %v563 = vmul.f32 %v553, %v561
        %v564 = vmul.f32 %v505, %v508
        %v565 = vmul.f32 %v506, %v509
        %v566 = vmul.f32 %v517, %v520
        %v567 = vmul.f32 %v518, %v521
        %v568 = vadd.f32 %v564, %v566
        %v569 = vadd.f32 %v565, %v567
        %v570 = vsub.f32 %v568, %v562
        %v571 = vsub.f32 %v569, %v563
        %v572 = vadd.f32 %v570, 1e-07
        %v573 = vadd.f32 %v571, 1e-07
        %v574 = vrcp.pop %v572
        %v575 = vrcp.pop %v573
        %v576 = vmul.f32 %v562, %v574
        %v577 = vmul.f32 %v563, %v575
        %v578 = vmax.f32 %v532, %v540
        %v579 = vmax.f32 %v533, %v541
        %v580 = vmin.f32 %v530, %v538
        %v581 = vmin.f32 %v531, %v539
        %v582 = vsub.f32 %v578, %v580
        %v583 = vsub.f32 %v579, %v581
        %v584 = vmax.f32 %v536, %v544
        %v585 = vmax.f32 %v537, %v545
        %v586 = vmin.f32 %v534, %v542
        %v587 = vmin.f32 %v535, %v543
        %v588 = vsub.f32 %v584, %v586
        %v589 = vsub.f32 %v585, %v587
        %v590 = vmul.f32 %v582, %v582
        %v591 = vmul.f32 %v583, %v583
        %v592 = vmul.f32 %v588, %v588
        %v593 = vmul.f32 %v589, %v589
        %v594 = vadd.f32 %v590, %v592
        %v595 = vadd.f32 %v591, %v593
        %v596 = vadd.f32 %v594, 1e-07
        %v597 = vadd.f32 %v595, 1e-07
        %v598 = vadd.f32 %v538, %v540
        %v599 = vadd.f32 %v539, %v541
        %v600 = vsub.f32 %v598, %v530
        %v601 = vsub.f32 %v599, %v531
        %v602 = vsub.f32 %v600, %v532
        %v603 = vsub.f32 %v601, %v533
        %v604 = vmul.f32 %v602, %v602
        %v605 = vmul.f32 %v603, %v603
        %v606 = vadd.f32 %v542, %v544
        %v607 = vadd.f32 %v543, %v545
        %v608 = vsub.f32 %v606, %v534
        %v609 = vsub.f32 %v607, %v535
        %v610 = vsub.f32 %v608, %v536
        %v611 = vsub.f32 %v609, %v537
        %v612 = vmul.f32 %v610, %v610
        %v613 = vmul.f32 %v611, %v611
        %v614 = vadd.f32 %v604, %v612
        %v615 = vadd.f32 %v605, %v613
        %v616 = vmul.f32 %v614, 0.25
        %v617 = vmul.f32 %v615, 0.25
        %v618 = vmax.f32 %v520, 1e-07
        %v619 = vmax.f32 %v521, 1e-07
        %v620 = vrcp.pop %v618
        %v621 = vrcp.pop %v619
        %v622 = vmul.f32 %v517, %v620
        %v623 = vmul.f32 %v518, %v621
        %v624 = vmax.f32 %v508, 1e-07
        %v625 = vmax.f32 %v509, 1e-07
        %v626 = vrcp.pop %v624
        %v627 = vrcp.pop %v625
        %v628 = vmul.f32 %v505, %v626
        %v629 = vmul.f32 %v506, %v627
        %vm630 = vcmp.lt.f32.partialorder %v622, 0.0
        %vm631 = vcmp.lt.f32.partialorder %v623, 0.0
        %v632 = vsel %vm630, -1.0, 1.0
        %v633 = vsel %vm631, -1.0, 1.0
        %v634 = vand.u32 2147483647, %v622
        %v635 = vand.u32 2147483647, %v623
        %vm636 = vcmp.gt.f32.partialorder %v634, 2.4142137
        %vm637 = vcmp.gt.f32.partialorder %v635, 2.4142137
        %vm638 = vcmp.gt.f32.partialorder %v634, 0.41421357
        %vm639 = vcmp.gt.f32.partialorder %v635, 0.41421357
        %v640 = vmax.f32 %v634, 1e-20
        %v641 = vmax.f32 %v635, 1e-20
        %v642 = vrcp.pop %v640
        %v643 = vrcp.pop %v641
        %v644 = vsub.f32 0.0, %v642
        %v645 = vsub.f32 0.0, %v643
        %v646 = vsub.f32 %v634, 1.0
        %v647 = vsub.f32 %v635, 1.0
        %v648 = vadd.f32 %v634, 1.0
        %v649 = vadd.f32 %v635, 1.0
        %v650 = vrcp.pop %v648
        %v651 = vrcp.pop %v649
        %v652 = vmul.f32 %v646, %v650
        %v653 = vmul.f32 %v647, %v651
        %v654 = vsel %vm638, %v652, %v634
        %v655 = vsel %vm639, %v653, %v635
        %v656 = vsel %vm636, %v644, %v654
        %v657 = vsel %vm637, %v645, %v655
        %v658 = vsel %vm638, 0.7853982, 0.0
        %v659 = vsel %vm639, 0.7853982, 0.0
        %v660 = vsel %vm636, 1.5707964, %v658
        %v661 = vsel %vm637, 1.5707964, %v659
        %v662 = vmul.f32 %v656, %v656
        %v663 = vmul.f32 %v657, %v657
        %v664 = vmul.f32 %v662, 0.080537446
        %v665 = vmul.f32 %v663, 0.080537446
        %v666 = vsub.f32 %v664, 0.13877685
        %v667 = vsub.f32 %v665, 0.13877685
        %v668 = vmul.f32 %v666, %v662
        %v669 = vmul.f32 %v667, %v663
        %v670 = vadd.f32 %v668, 0.19977711
        %v671 = vadd.f32 %v669, 0.19977711
        %v672 = vmul.f32 %v670, %v662
        %v673 = vmul.f32 %v671, %v663
        %v674 = vsub.f32 %v672, 0.3333295
        %v675 = vsub.f32 %v673, 0.3333295
        %v676 = vadd.f32 %v660, %v656
        %v677 = vadd.f32 %v661, %v657
        %v678 = vmul.f32 %v656, %v662
        %v679 = vmul.f32 %v657, %v663
        %v680 = vmul.f32 %v678, %v674
        %v681 = vmul.f32 %v679, %v675
        %v682 = vadd.f32 %v676, %v680
        %v683 = vadd.f32 %v677, %v681
        %v684 = vmul.f32 %v632, %v682
        %v685 = vmul.f32 %v633, %v683
        %vm686 = vcmp.lt.f32.partialorder %v628, 0.0
        %vm687 = vcmp.lt.f32.partialorder %v629, 0.0
        %v688 = vsel %vm686, -1.0, 1.0
        %v689 = vsel %vm687, -1.0, 1.0
        %v690 = vand.u32 2147483647, %v628
        %v691 = vand.u32 2147483647, %v629
        %vm692 = vcmp.gt.f32.partialorder %v690, 2.4142137
        %vm693 = vcmp.gt.f32.partialorder %v691, 2.4142137
        %vm694 = vcmp.gt.f32.partialorder %v690, 0.41421357
        %vm695 = vcmp.gt.f32.partialorder %v691, 0.41421357
        %v696 = vmax.f32 %v690, 1e-20
        %v697 = vmax.f32 %v691, 1e-20
        %v698 = vrcp.pop %v696
        %v699 = vrcp.pop %v697
        %v700 = vsub.f32 0.0, %v698
        %v701 = vsub.f32 0.0, %v699
        %v702 = vsub.f32 %v690, 1.0
        %v703 = vsub.f32 %v691, 1.0
        %v704 = vadd.f32 %v690, 1.0
        %v705 = vadd.f32 %v691, 1.0
        %v706 = vrcp.pop %v704
        %v707 = vrcp.pop %v705
        %v708 = vmul.f32 %v702, %v706
        %v709 = vmul.f32 %v703, %v707
        %v710 = vsel %vm694, %v708, %v690
        %v711 = vsel %vm695, %v709, %v691
        %v712 = vsel %vm692, %v700, %v710
        %v713 = vsel %vm693, %v701, %v711
        %v714 = vsel %vm694, 0.7853982, 0.0
        %v715 = vsel %vm695, 0.7853982, 0.0
        %v716 = vsel %vm692, 1.5707964, %v714
        %v717 = vsel %vm693, 1.5707964, %v715
        %v718 = vmul.f32 %v712, %v712
        %v719 = vmul.f32 %v713, %v713
        %v720 = vmul.f32 %v718, 0.080537446
        %v721 = vmul.f32 %v719, 0.080537446
        %v722 = vsub.f32 %v720, 0.13877685
        %v723 = vsub.f32 %v721, 0.13877685
        %v724 = vmul.f32 %v722, %v718
        %v725 = vmul.f32 %v723, %v719
        %v726 = vadd.f32 %v724, 0.19977711
        %v727 = vadd.f32 %v725, 0.19977711
        %v728 = vmul.f32 %v726, %v718
        %v729 = vmul.f32 %v727, %v719
        %v730 = vsub.f32 %v728, 0.3333295
        %v731 = vsub.f32 %v729, 0.3333295
        %v732 = vadd.f32 %v716, %v712
        %v733 = vadd.f32 %v717, %v713
        %v734 = vmul.f32 %v712, %v718
        %v735 = vmul.f32 %v713, %v719
        %v736 = vmul.f32 %v734, %v730
        %v737 = vmul.f32 %v735, %v731
        %v738 = vadd.f32 %v732, %v736
        %v739 = vadd.f32 %v733, %v737
        %v740 = vmul.f32 %v688, %v738
        %v741 = vmul.f32 %v689, %v739
        %v742 = vsub.f32 %v684, %v740
        %v743 = vsub.f32 %v685, %v741
        %v744 = vmul.f32 %v742, %v742
        %v745 = vmul.f32 %v743, %v743
        %v746 = vmul.f32 %v744, 0.40528473
        %v747 = vmul.f32 %v745, 0.40528473
        %v748 = vsub.f32 %v746, %v576
        %v749 = vsub.f32 %v747, %v577
        %v750 = vadd.f32 %v748, 1.0000001
        %v751 = vadd.f32 %v749, 1.0000001
        %v752 = vmax.f32 %v750, 1e-07
        %v753 = vmax.f32 %v751, 1e-07
        %v754 = vrcp.pop %v752
        %v755 = vrcp.pop %v753
        %v756 = vmul.f32 %v746, %v754
        %v757 = vmul.f32 %v747, %v755
        %v758 = vrcp.pop %v596
        %v759 = vrcp.pop %v597
        %v760 = vmul.f32 %v616, %v758
        %v761 = vmul.f32 %v617, %v759
        %v762 = vmul.f32 %v746, %v756
        %v763 = vmul.f32 %v747, %v757
        %v764 = vadd.f32 %v760, %v762
        %v765 = vadd.f32 %v761, %v763
        %v766 = vsub.f32 %v576, %v764
        %v767 = vsub.f32 %v577, %v765
        %v768 = vld [vmem:[%s486] sm:$0x1]
        %v769 = vsub.f32 1.0, %v766
        %v770 = vsub.f32 1.0, %v767
        %v771 = vmul.f32 %v769, %v497
        %v772 = vmul.f32 %v770, %v498
        %v773 = vadd.f32 %v771, %v772
        %v774 = vrot.slane %v773, 4
        %v775 = vadd.f32 %v773, %v774
        %v776 = vrot.slane %v775, 2
        %v777 = vadd.f32 %v775, %v776
        %v778 = vrot.slane %v777, 1
        %v779 = vadd.f32 %v777, %v778
        %780 = vadd.xlane.f32.xlu0 %v779
        %v781 = vpop.xlane.xlu0 %780
        %v782 = vadd.f32 %v768, %v781
        %vm783 = vcmask 0
        %784 = vst.msk [vmem:[%s486] sm:$0x1] %vm783, %v782
        %v785 = vld [vmem:[%s411] sm:$0xff]
        %v786 = vld [vmem:[%s411 + $0x8] sm:$0xff]
        %s787 = scalar_lea.vmem %s411, 16 [#allocation4]
        %v788 = vld [vmem:[%s787] sm:$0xff]
        %v789 = vld [vmem:[%s787 + $0x8] sm:$0xff]
        %v790 = vsub.f32 %v785, %v511
        %v791 = vsub.f32 %v786, %v512
        %v792 = vmax.f32 %v790, 0.0
        %v793 = vmax.f32 %v791, 0.0
        %v794 = vmin.f32 %v792, 15.99
        %v795 = vmin.f32 %v793, 15.99
        %v796 = vsub.f32 %v788, %v514
        %v797 = vsub.f32 %v789, %v515
        %v798 = vmax.f32 %v796, 0.0
        %v799 = vmax.f32 %v797, 0.0
        %v800 = vmin.f32 %v798, 15.99
        %v801 = vmin.f32 %v799, 15.99
        %v802 = vsub.f32 %v517, %v785
        %v803 = vsub.f32 %v518, %v786
        %v804 = vmax.f32 %v802, 0.0
        %v805 = vmax.f32 %v803, 0.0
        %v806 = vmin.f32 %v804, 15.99
        %v807 = vmin.f32 %v805, 15.99
        %v808 = vsub.f32 %v520, %v788
        %v809 = vsub.f32 %v521, %v789
        %v810 = vmax.f32 %v808, 0.0
        %v811 = vmax.f32 %v809, 0.0
        %v812 = vmin.f32 %v810, 15.99
        %v813 = vmin.f32 %v811, 15.99
        %v814 = vfloor.f32 %v794
        %v815 = vfloor.f32 %v795
        %v816 = vcvt.f32.s32.to.zero.pseudo %v814
        %v817 = vcvt.f32.s32.to.zero.pseudo %v815
        %v818 = vadd.f32 %v814, 1.0
        %v819 = vadd.f32 %v815, 1.0
        %v820 = vsub.f32 %v818, %v794
        %v821 = vsub.f32 %v819, %v795
        %v822 = vsub.f32 1.0, %v820
        %v823 = vsub.f32 1.0, %v821
        %v824 = vld [vmem:[%s429] sm:$0xf]
        %v825 = vld [vmem:[%s429 + $0x4] sm:$0xf]
        %v826 = vunpack.c.l.bf16 %v824
        %v827 = vunpack.c.l.bf16 %v825
        %s828 = scalar_lea.vmem %s429, 8 [#allocation7]
        %v829 = vld [vmem:[%s828] sm:$0xf]
        %v830 = vld [vmem:[%s828 + $0x4] sm:$0xf]
        %v831 = vunpack.c.l.bf16 %v829
        %v832 = vunpack.c.l.bf16 %v830
        %v833 = vmax.f32 %v826, %v831
        %v834 = vmax.f32 %v827, %v832
        %s835 = scalar_lea.vmem %s429, 16 [#allocation7]
        %v836 = vld [vmem:[%s835] sm:$0xf]
        %v837 = vld [vmem:[%s835 + $0x4] sm:$0xf]
        %v838 = vunpack.c.l.bf16 %v836
        %v839 = vunpack.c.l.bf16 %v837
        %v840 = vmax.f32 %v833, %v838
        %v841 = vmax.f32 %v834, %v839
        %s842 = scalar_lea.vmem %s429, 24 [#allocation7]
        %v843 = vld [vmem:[%s842] sm:$0xf]
        %v844 = vld [vmem:[%s842 + $0x4] sm:$0xf]
        %v845 = vunpack.c.l.bf16 %v843
        %v846 = vunpack.c.l.bf16 %v844
        %v847 = vmax.f32 %v840, %v845
        %v848 = vmax.f32 %v841, %v846
        %s849 = scalar_lea.vmem %s429, 32 [#allocation7]
        %v850 = vld [vmem:[%s849] sm:$0xf]
        %v851 = vld [vmem:[%s849 + $0x4] sm:$0xf]
        %v852 = vunpack.c.l.bf16 %v850
        %v853 = vunpack.c.l.bf16 %v851
        %v854 = vmax.f32 %v847, %v852
        %v855 = vmax.f32 %v848, %v853
        %s856 = scalar_lea.vmem %s429, 40 [#allocation7]
        %v857 = vld [vmem:[%s856] sm:$0xf]
        %v858 = vld [vmem:[%s856 + $0x4] sm:$0xf]
        %v859 = vunpack.c.l.bf16 %v857
        %v860 = vunpack.c.l.bf16 %v858
        %v861 = vmax.f32 %v854, %v859
        %v862 = vmax.f32 %v855, %v860
        %s863 = scalar_lea.vmem %s429, 48 [#allocation7]
        %v864 = vld [vmem:[%s863] sm:$0xf]
        %v865 = vld [vmem:[%s863 + $0x4] sm:$0xf]
        %v866 = vunpack.c.l.bf16 %v864
        %v867 = vunpack.c.l.bf16 %v865
        %v868 = vmax.f32 %v861, %v866
        %v869 = vmax.f32 %v862, %v867
        %s870 = scalar_lea.vmem %s429, 56 [#allocation7]
        %v871 = vld [vmem:[%s870] sm:$0xf]
        %v872 = vld [vmem:[%s870 + $0x4] sm:$0xf]
        %v873 = vunpack.c.l.bf16 %v871
        %v874 = vunpack.c.l.bf16 %v872
        %v875 = vmax.f32 %v868, %v873
        %v876 = vmax.f32 %v869, %v874
        %s877 = scalar_lea.vmem %s429, 64 [#allocation7]
        %v878 = vld [vmem:[%s877] sm:$0xf]
        %v879 = vld [vmem:[%s877 + $0x4] sm:$0xf]
        %v880 = vunpack.c.l.bf16 %v878
        %v881 = vunpack.c.l.bf16 %v879
        %v882 = vmax.f32 %v875, %v880
        %v883 = vmax.f32 %v876, %v881
        %s884 = scalar_lea.vmem %s429, 72 [#allocation7]
        %v885 = vld [vmem:[%s884] sm:$0xf]
        %v886 = vld [vmem:[%s884 + $0x4] sm:$0xf]
        %v887 = vunpack.c.l.bf16 %v885
        %v888 = vunpack.c.l.bf16 %v886
        %v889 = vmax.f32 %v882, %v887
        %v890 = vmax.f32 %v883, %v888
        %s891 = scalar_lea.vmem %s429, 80 [#allocation7]
        %v892 = vld [vmem:[%s891] sm:$0xf]
        %v893 = vld [vmem:[%s891 + $0x4] sm:$0xf]
        %v894 = vunpack.c.l.bf16 %v892
        %v895 = vunpack.c.l.bf16 %v893
        %v896 = vmax.f32 %v889, %v894
        %v897 = vmax.f32 %v890, %v895
        %s898 = scalar_lea.vmem %s429, 88 [#allocation7]
        %v899 = vld [vmem:[%s898] sm:$0xf]
        %v900 = vld [vmem:[%s898 + $0x4] sm:$0xf]
        %v901 = vunpack.c.l.bf16 %v899
        %v902 = vunpack.c.l.bf16 %v900
        %v903 = vmax.f32 %v896, %v901
        %v904 = vmax.f32 %v897, %v902
        %s905 = scalar_lea.vmem %s429, 96 [#allocation7]
        %v906 = vld [vmem:[%s905] sm:$0xf]
        %v907 = vld [vmem:[%s905 + $0x4] sm:$0xf]
        %v908 = vunpack.c.l.bf16 %v906
        %v909 = vunpack.c.l.bf16 %v907
        %v910 = vmax.f32 %v903, %v908
        %v911 = vmax.f32 %v904, %v909
        %s912 = scalar_lea.vmem %s429, 104 [#allocation7]
        %v913 = vld [vmem:[%s912] sm:$0xf]
        %v914 = vld [vmem:[%s912 + $0x4] sm:$0xf]
        %v915 = vunpack.c.l.bf16 %v913
        %v916 = vunpack.c.l.bf16 %v914
        %v917 = vmax.f32 %v910, %v915
        %v918 = vmax.f32 %v911, %v916
        %s919 = scalar_lea.vmem %s429, 112 [#allocation7]
        %v920 = vld [vmem:[%s919] sm:$0xf]
        %v921 = vld [vmem:[%s919 + $0x4] sm:$0xf]
        %v922 = vunpack.c.l.bf16 %v920
        %v923 = vunpack.c.l.bf16 %v921
        %v924 = vmax.f32 %v917, %v922
        %v925 = vmax.f32 %v918, %v923
        %s926 = scalar_lea.vmem %s429, 120 [#allocation7]
        %v927 = vld [vmem:[%s926] sm:$0xf]
        %v928 = vld [vmem:[%s926 + $0x4] sm:$0xf]
        %v929 = vunpack.c.l.bf16 %v927
        %v930 = vunpack.c.l.bf16 %v928
        %v931 = vmax.f32 %v924, %v929
        %v932 = vmax.f32 %v925, %v930
        %s933 = scalar_lea.vmem %s429, 128 [#allocation7]
        %v934 = vld [vmem:[%s933] sm:$0xf]
        %v935 = vld [vmem:[%s933 + $0x4] sm:$0xf]
        %v936 = vunpack.c.l.bf16 %v934
        %v937 = vunpack.c.l.bf16 %v935
        %v938 = vmax.f32 %v931, %v936
        %v939 = vmax.f32 %v932, %v937
        %v940 = vsub.f32 %v826, %v938
        %v941 = vsub.f32 %v827, %v939
        %v942 = vmul.f32 %v940, 1.442695
        %v943 = vpow.pop %v942
        %v944 = vmul.f32 %v941, 1.442695
        %v945 = vpow.pop %v944
        %v946 = vadd.f32 %v943, 0.0
        %v947 = vadd.f32 %v945, 0.0
        %vm948 = vcmp.eq.s32.totalorder %v816, 0
        %vm949 = vcmp.eq.s32.totalorder %v817, 0
        %v950 = vsel %vm948, %v820, 0.0
        %v951 = vsel %vm949, %v821, 0.0
        %v952 = vmul.f32 %v826, %v950
        %v953 = vmul.f32 %v827, %v951
        %v954 = vadd.f32 %v952, 0.0
        %v955 = vadd.f32 %v953, 0.0
        %v956 = vsub.f32 %v831, %v938
        %v957 = vsub.f32 %v832, %v939
        %v958 = vmul.f32 %v956, 1.442695
        %v959 = vpow.pop %v958
        %v960 = vmul.f32 %v957, 1.442695
        %v961 = vpow.pop %v960
        %v962 = vadd.f32 %v946, %v959
        %v963 = vadd.f32 %v947, %v961
        %vm964 = vcmp.eq.s32.totalorder %v816, 1
        %vm965 = vcmp.eq.s32.totalorder %v817, 1
        %v966 = vsel %vm964, %v820, 0.0
        %v967 = vsel %vm965, %v821, 0.0
        %v968 = vsel %vm948, %v822, 0.0
        %v969 = vsel %vm949, %v823, 0.0
        %v970 = vadd.f32 %v966, %v968
        %v971 = vadd.f32 %v967, %v969
        %v972 = vmul.f32 %v831, %v970
        %v973 = vmul.f32 %v832, %v971
        %v974 = vadd.f32 %v954, %v972
        %v975 = vadd.f32 %v955, %v973
        %v976 = vsub.f32 %v838, %v938
        %v977 = vsub.f32 %v839, %v939
        %v978 = vmul.f32 %v976, 1.442695
        %v979 = vpow.pop %v978
        %v980 = vmul.f32 %v977, 1.442695
        %v981 = vpow.pop %v980
        %v982 = vadd.f32 %v962, %v979
        %v983 = vadd.f32 %v963, %v981
        %vm984 = vcmp.eq.s32.totalorder %v816, 2
        %vm985 = vcmp.eq.s32.totalorder %v817, 2
        %v986 = vsel %vm984, %v820, 0.0
        %v987 = vsel %vm985, %v821, 0.0
        %v988 = vsel %vm964, %v822, 0.0
        %v989 = vsel %vm965, %v823, 0.0
        %v990 = vadd.f32 %v986, %v988
        %v991 = vadd.f32 %v987, %v989
        %v992 = vmul.f32 %v838, %v990
        %v993 = vmul.f32 %v839, %v991
        %v994 = vadd.f32 %v974, %v992
        %v995 = vadd.f32 %v975, %v993
        %v996 = vsub.f32 %v845, %v938
        %v997 = vsub.f32 %v846, %v939
        %v998 = vmul.f32 %v996, 1.442695
        %v999 = vpow.pop %v998
        %v1000 = vmul.f32 %v997, 1.442695
        %v1001 = vpow.pop %v1000
        %v1002 = vadd.f32 %v982, %v999
        %v1003 = vadd.f32 %v983, %v1001
        %vm1004 = vcmp.eq.s32.totalorder %v816, 3
        %vm1005 = vcmp.eq.s32.totalorder %v817, 3
        %v1006 = vsel %vm1004, %v820, 0.0
        %v1007 = vsel %vm1005, %v821, 0.0
        %v1008 = vsel %vm984, %v822, 0.0
        %v1009 = vsel %vm985, %v823, 0.0
        %v1010 = vadd.f32 %v1006, %v1008
        %v1011 = vadd.f32 %v1007, %v1009
        %v1012 = vmul.f32 %v845, %v1010
        %v1013 = vmul.f32 %v846, %v1011
        %v1014 = vadd.f32 %v994, %v1012
        %v1015 = vadd.f32 %v995, %v1013
        %v1016 = vsub.f32 %v852, %v938
        %v1017 = vsub.f32 %v853, %v939
        %v1018 = vmul.f32 %v1016, 1.442695
        %v1019 = vpow.pop %v1018
        %v1020 = vmul.f32 %v1017, 1.442695
        %v1021 = vpow.pop %v1020
        %v1022 = vadd.f32 %v1002, %v1019
        %v1023 = vadd.f32 %v1003, %v1021
        %vm1024 = vcmp.eq.s32.totalorder %v816, 4
        %vm1025 = vcmp.eq.s32.totalorder %v817, 4
        %v1026 = vsel %vm1024, %v820, 0.0
        %v1027 = vsel %vm1025, %v821, 0.0
        %v1028 = vsel %vm1004, %v822, 0.0
        %v1029 = vsel %vm1005, %v823, 0.0
        %v1030 = vadd.f32 %v1026, %v1028
        %v1031 = vadd.f32 %v1027, %v1029
        %v1032 = vmul.f32 %v852, %v1030
        %v1033 = vmul.f32 %v853, %v1031
        %v1034 = vadd.f32 %v1014, %v1032
        %v1035 = vadd.f32 %v1015, %v1033
        %v1036 = vsub.f32 %v859, %v938
        %v1037 = vsub.f32 %v860, %v939
        %v1038 = vmul.f32 %v1036, 1.442695
        %v1039 = vpow.pop %v1038
        %v1040 = vmul.f32 %v1037, 1.442695
        %v1041 = vpow.pop %v1040
        %v1042 = vadd.f32 %v1022, %v1039
        %v1043 = vadd.f32 %v1023, %v1041
        %vm1044 = vcmp.eq.s32.totalorder %v816, 5
        %vm1045 = vcmp.eq.s32.totalorder %v817, 5
        %v1046 = vsel %vm1044, %v820, 0.0
        %v1047 = vsel %vm1045, %v821, 0.0
        %v1048 = vsel %vm1024, %v822, 0.0
        %v1049 = vsel %vm1025, %v823, 0.0
        %v1050 = vadd.f32 %v1046, %v1048
        %v1051 = vadd.f32 %v1047, %v1049
        %v1052 = vmul.f32 %v859, %v1050
        %v1053 = vmul.f32 %v860, %v1051
        %v1054 = vadd.f32 %v1034, %v1052
        %v1055 = vadd.f32 %v1035, %v1053
        %v1056 = vsub.f32 %v866, %v938
        %v1057 = vsub.f32 %v867, %v939
        %v1058 = vmul.f32 %v1056, 1.442695
        %v1059 = vpow.pop %v1058
        %v1060 = vmul.f32 %v1057, 1.442695
        %v1061 = vpow.pop %v1060
        %v1062 = vadd.f32 %v1042, %v1059
        %v1063 = vadd.f32 %v1043, %v1061
        %vm1064 = vcmp.eq.s32.totalorder %v816, 6
        %vm1065 = vcmp.eq.s32.totalorder %v817, 6
        %v1066 = vsel %vm1064, %v820, 0.0
        %v1067 = vsel %vm1065, %v821, 0.0
        %v1068 = vsel %vm1044, %v822, 0.0
        %v1069 = vsel %vm1045, %v823, 0.0
        %v1070 = vadd.f32 %v1066, %v1068
        %v1071 = vadd.f32 %v1067, %v1069
        %v1072 = vmul.f32 %v866, %v1070
        %v1073 = vmul.f32 %v867, %v1071
        %v1074 = vadd.f32 %v1054, %v1072
        %v1075 = vadd.f32 %v1055, %v1073
        %v1076 = vsub.f32 %v873, %v938
        %v1077 = vsub.f32 %v874, %v939
        %v1078 = vmul.f32 %v1076, 1.442695
        %v1079 = vpow.pop %v1078
        %v1080 = vmul.f32 %v1077, 1.442695
        %v1081 = vpow.pop %v1080
        %v1082 = vadd.f32 %v1062, %v1079
        %v1083 = vadd.f32 %v1063, %v1081
        %vm1084 = vcmp.eq.s32.totalorder %v816, 7
        %vm1085 = vcmp.eq.s32.totalorder %v817, 7
        %v1086 = vsel %vm1084, %v820, 0.0
        %v1087 = vsel %vm1085, %v821, 0.0
        %v1088 = vsel %vm1064, %v822, 0.0
        %v1089 = vsel %vm1065, %v823, 0.0
        %v1090 = vadd.f32 %v1086, %v1088
        %v1091 = vadd.f32 %v1087, %v1089
        %v1092 = vmul.f32 %v873, %v1090
        %v1093 = vmul.f32 %v874, %v1091
        %v1094 = vadd.f32 %v1074, %v1092
        %v1095 = vadd.f32 %v1075, %v1093
        %v1096 = vsub.f32 %v880, %v938
        %v1097 = vsub.f32 %v881, %v939
        %v1098 = vmul.f32 %v1096, 1.442695
        %v1099 = vpow.pop %v1098
        %v1100 = vmul.f32 %v1097, 1.442695
        %v1101 = vpow.pop %v1100
        %v1102 = vadd.f32 %v1082, %v1099
        %v1103 = vadd.f32 %v1083, %v1101
        %vm1104 = vcmp.eq.s32.totalorder %v816, 8
        %vm1105 = vcmp.eq.s32.totalorder %v817, 8
        %v1106 = vsel %vm1104, %v820, 0.0
        %v1107 = vsel %vm1105, %v821, 0.0
        %v1108 = vsel %vm1084, %v822, 0.0
        %v1109 = vsel %vm1085, %v823, 0.0
        %v1110 = vadd.f32 %v1106, %v1108
        %v1111 = vadd.f32 %v1107, %v1109
        %v1112 = vmul.f32 %v880, %v1110
        %v1113 = vmul.f32 %v881, %v1111
        %v1114 = vadd.f32 %v1094, %v1112
        %v1115 = vadd.f32 %v1095, %v1113
        %v1116 = vsub.f32 %v887, %v938
        %v1117 = vsub.f32 %v888, %v939
        %v1118 = vmul.f32 %v1116, 1.442695
        %v1119 = vpow.pop %v1118
        %v1120 = vmul.f32 %v1117, 1.442695
        %v1121 = vpow.pop %v1120
        %v1122 = vadd.f32 %v1102, %v1119
        %v1123 = vadd.f32 %v1103, %v1121
        %vm1124 = vcmp.eq.s32.totalorder %v816, 9
        %vm1125 = vcmp.eq.s32.totalorder %v817, 9
        %v1126 = vsel %vm1124, %v820, 0.0
        %v1127 = vsel %vm1125, %v821, 0.0
        %v1128 = vsel %vm1104, %v822, 0.0
        %v1129 = vsel %vm1105, %v823, 0.0
        %v1130 = vadd.f32 %v1126, %v1128
        %v1131 = vadd.f32 %v1127, %v1129
        %v1132 = vmul.f32 %v887, %v1130
        %v1133 = vmul.f32 %v888, %v1131
        %v1134 = vadd.f32 %v1114, %v1132
        %v1135 = vadd.f32 %v1115, %v1133
        %v1136 = vsub.f32 %v894, %v938
        %v1137 = vsub.f32 %v895, %v939
        %v1138 = vmul.f32 %v1136, 1.442695
        %v1139 = vpow.pop %v1138
        %v1140 = vmul.f32 %v1137, 1.442695
        %v1141 = vpow.pop %v1140
        %v1142 = vadd.f32 %v1122, %v1139
        %v1143 = vadd.f32 %v1123, %v1141
        %vm1144 = vcmp.eq.s32.totalorder %v816, 10
        %vm1145 = vcmp.eq.s32.totalorder %v817, 10
        %v1146 = vsel %vm1144, %v820, 0.0
        %v1147 = vsel %vm1145, %v821, 0.0
        %v1148 = vsel %vm1124, %v822, 0.0
        %v1149 = vsel %vm1125, %v823, 0.0
        %v1150 = vadd.f32 %v1146, %v1148
        %v1151 = vadd.f32 %v1147, %v1149
        %v1152 = vmul.f32 %v894, %v1150
        %v1153 = vmul.f32 %v895, %v1151
        %v1154 = vadd.f32 %v1134, %v1152
        %v1155 = vadd.f32 %v1135, %v1153
        %v1156 = vsub.f32 %v901, %v938
        %v1157 = vsub.f32 %v902, %v939
        %v1158 = vmul.f32 %v1156, 1.442695
        %v1159 = vpow.pop %v1158
        %v1160 = vmul.f32 %v1157, 1.442695
        %v1161 = vpow.pop %v1160
        %v1162 = vadd.f32 %v1142, %v1159
        %v1163 = vadd.f32 %v1143, %v1161
        %vm1164 = vcmp.eq.s32.totalorder %v816, 11
        %vm1165 = vcmp.eq.s32.totalorder %v817, 11
        %v1166 = vsel %vm1164, %v820, 0.0
        %v1167 = vsel %vm1165, %v821, 0.0
        %v1168 = vsel %vm1144, %v822, 0.0
        %v1169 = vsel %vm1145, %v823, 0.0
        %v1170 = vadd.f32 %v1166, %v1168
        %v1171 = vadd.f32 %v1167, %v1169
        %v1172 = vmul.f32 %v901, %v1170
        %v1173 = vmul.f32 %v902, %v1171
        %v1174 = vadd.f32 %v1154, %v1172
        %v1175 = vadd.f32 %v1155, %v1173
        %v1176 = vsub.f32 %v908, %v938
        %v1177 = vsub.f32 %v909, %v939
        %v1178 = vmul.f32 %v1176, 1.442695
        %v1179 = vpow.pop %v1178
        %v1180 = vmul.f32 %v1177, 1.442695
        %v1181 = vpow.pop %v1180
        %v1182 = vadd.f32 %v1162, %v1179
        %v1183 = vadd.f32 %v1163, %v1181
        %vm1184 = vcmp.eq.s32.totalorder %v816, 12
        %vm1185 = vcmp.eq.s32.totalorder %v817, 12
        %v1186 = vsel %vm1184, %v820, 0.0
        %v1187 = vsel %vm1185, %v821, 0.0
        %v1188 = vsel %vm1164, %v822, 0.0
        %v1189 = vsel %vm1165, %v823, 0.0
        %v1190 = vadd.f32 %v1186, %v1188
        %v1191 = vadd.f32 %v1187, %v1189
        %v1192 = vmul.f32 %v908, %v1190
        %v1193 = vmul.f32 %v909, %v1191
        %v1194 = vadd.f32 %v1174, %v1192
        %v1195 = vadd.f32 %v1175, %v1193
        %v1196 = vsub.f32 %v915, %v938
        %v1197 = vsub.f32 %v916, %v939
        %v1198 = vmul.f32 %v1196, 1.442695
        %v1199 = vpow.pop %v1198
        %v1200 = vmul.f32 %v1197, 1.442695
        %v1201 = vpow.pop %v1200
        %v1202 = vadd.f32 %v1182, %v1199
        %v1203 = vadd.f32 %v1183, %v1201
        %vm1204 = vcmp.eq.s32.totalorder %v816, 13
        %vm1205 = vcmp.eq.s32.totalorder %v817, 13
        %v1206 = vsel %vm1204, %v820, 0.0
        %v1207 = vsel %vm1205, %v821, 0.0
        %v1208 = vsel %vm1184, %v822, 0.0
        %v1209 = vsel %vm1185, %v823, 0.0
        %v1210 = vadd.f32 %v1206, %v1208
        %v1211 = vadd.f32 %v1207, %v1209
        %v1212 = vmul.f32 %v915, %v1210
        %v1213 = vmul.f32 %v916, %v1211
        %v1214 = vadd.f32 %v1194, %v1212
        %v1215 = vadd.f32 %v1195, %v1213
        %v1216 = vsub.f32 %v922, %v938
        %v1217 = vsub.f32 %v923, %v939
        %v1218 = vmul.f32 %v1216, 1.442695
        %v1219 = vpow.pop %v1218
        %v1220 = vmul.f32 %v1217, 1.442695
        %v1221 = vpow.pop %v1220
        %v1222 = vadd.f32 %v1202, %v1219
        %v1223 = vadd.f32 %v1203, %v1221
        %vm1224 = vcmp.eq.s32.totalorder %v816, 14
        %vm1225 = vcmp.eq.s32.totalorder %v817, 14
        %v1226 = vsel %vm1224, %v820, 0.0
        %v1227 = vsel %vm1225, %v821, 0.0
        %v1228 = vsel %vm1204, %v822, 0.0
        %v1229 = vsel %vm1205, %v823, 0.0
        %v1230 = vadd.f32 %v1226, %v1228
        %v1231 = vadd.f32 %v1227, %v1229
        %v1232 = vmul.f32 %v922, %v1230
        %v1233 = vmul.f32 %v923, %v1231
        %v1234 = vadd.f32 %v1214, %v1232
        %v1235 = vadd.f32 %v1215, %v1233
        %v1236 = vsub.f32 %v929, %v938
        %v1237 = vsub.f32 %v930, %v939
        %v1238 = vmul.f32 %v1236, 1.442695
        %v1239 = vpow.pop %v1238
        %v1240 = vmul.f32 %v1237, 1.442695
        %v1241 = vpow.pop %v1240
        %v1242 = vadd.f32 %v1222, %v1239
        %v1243 = vadd.f32 %v1223, %v1241
        %vm1244 = vcmp.eq.s32.totalorder %v816, 15
        %vm1245 = vcmp.eq.s32.totalorder %v817, 15
        %v1246 = vsel %vm1244, %v820, 0.0
        %v1247 = vsel %vm1245, %v821, 0.0
        %v1248 = vsel %vm1224, %v822, 0.0
        %v1249 = vsel %vm1225, %v823, 0.0
        %v1250 = vadd.f32 %v1246, %v1248
        %v1251 = vadd.f32 %v1247, %v1249
        %v1252 = vmul.f32 %v929, %v1250
        %v1253 = vmul.f32 %v930, %v1251
        %v1254 = vadd.f32 %v1234, %v1252
        %v1255 = vadd.f32 %v1235, %v1253
        %v1256 = vsub.f32 %v936, %v938
        %v1257 = vsub.f32 %v937, %v939
        %v1258 = vmul.f32 %v1256, 1.442695
        %v1259 = vpow.pop %v1258
        %v1260 = vmul.f32 %v1257, 1.442695
        %v1261 = vpow.pop %v1260
        %v1262 = vadd.f32 %v1242, %v1259
        %v1263 = vadd.f32 %v1243, %v1261
        %vm1264 = vcmp.eq.s32.totalorder %v816, 16
        %vm1265 = vcmp.eq.s32.totalorder %v817, 16
        %v1266 = vsel %vm1264, %v820, 0.0
        %v1267 = vsel %vm1265, %v821, 0.0
        %v1268 = vsel %vm1244, %v822, 0.0
        %v1269 = vsel %vm1245, %v823, 0.0
        %v1270 = vadd.f32 %v1266, %v1268
        %v1271 = vadd.f32 %v1267, %v1269
        %v1272 = vmul.f32 %v936, %v1270
        %v1273 = vmul.f32 %v937, %v1271
        %v1274 = vadd.f32 %v1254, %v1272
        %v1275 = vadd.f32 %v1255, %v1273
        %v1276 = vlog2.pop %v1262
        %v1277 = vmul.f32 %v1276, 0.6931472
        %v1278 = vlog2.pop %v1263
        %v1279 = vmul.f32 %v1278, 0.6931472
        %v1280 = vadd.f32 %v1277, %v938
        %v1281 = vadd.f32 %v1279, %v939
        %v1282 = vsub.f32 %v1280, %v1274
        %v1283 = vsub.f32 %v1281, %v1275
        %v1284 = vadd.f32 %v1282, 0.0
        %v1285 = vadd.f32 %v1283, 0.0
        %v1286 = vfloor.f32 %v800
        %v1287 = vfloor.f32 %v801
        %v1288 = vcvt.f32.s32.to.zero.pseudo %v1286
        %v1289 = vcvt.f32.s32.to.zero.pseudo %v1287
        %v1290 = vadd.f32 %v1286, 1.0
        %v1291 = vadd.f32 %v1287, 1.0
        %v1292 = vsub.f32 %v1290, %v800
        %v1293 = vsub.f32 %v1291, %v801
        %v1294 = vsub.f32 1.0, %v1292
        %v1295 = vsub.f32 1.0, %v1293
        %s1296 = scalar_lea.vmem %s429, 136 [#allocation7]
        %v1297 = vld [vmem:[%s1296] sm:$0xf]
        %v1298 = vld [vmem:[%s1296 + $0x4] sm:$0xf]
        %v1299 = vunpack.c.l.bf16 %v1297
        %v1300 = vunpack.c.l.bf16 %v1298
        %s1301 = scalar_lea.vmem %s429, 144 [#allocation7]
        %v1302 = vld [vmem:[%s1301] sm:$0xf]
        %v1303 = vld [vmem:[%s1301 + $0x4] sm:$0xf]
        %v1304 = vunpack.c.l.bf16 %v1302
        %v1305 = vunpack.c.l.bf16 %v1303
        %v1306 = vmax.f32 %v1299, %v1304
        %v1307 = vmax.f32 %v1300, %v1305
        %s1308 = scalar_lea.vmem %s429, 152 [#allocation7]
        %v1309 = vld [vmem:[%s1308] sm:$0xf]
        %v1310 = vld [vmem:[%s1308 + $0x4] sm:$0xf]
        %v1311 = vunpack.c.l.bf16 %v1309
        %v1312 = vunpack.c.l.bf16 %v1310
        %v1313 = vmax.f32 %v1306, %v1311
        %v1314 = vmax.f32 %v1307, %v1312
        %s1315 = scalar_lea.vmem %s429, 160 [#allocation7]
        %v1316 = vld [vmem:[%s1315] sm:$0xf]
        %v1317 = vld [vmem:[%s1315 + $0x4] sm:$0xf]
        %v1318 = vunpack.c.l.bf16 %v1316
        %v1319 = vunpack.c.l.bf16 %v1317
        %v1320 = vmax.f32 %v1313, %v1318
        %v1321 = vmax.f32 %v1314, %v1319
        %s1322 = scalar_lea.vmem %s429, 168 [#allocation7]
        %v1323 = vld [vmem:[%s1322] sm:$0xf]
        %v1324 = vld [vmem:[%s1322 + $0x4] sm:$0xf]
        %v1325 = vunpack.c.l.bf16 %v1323
        %v1326 = vunpack.c.l.bf16 %v1324
        %v1327 = vmax.f32 %v1320, %v1325
        %v1328 = vmax.f32 %v1321, %v1326
        %s1329 = scalar_lea.vmem %s429, 176 [#allocation7]
        %v1330 = vld [vmem:[%s1329] sm:$0xf]
        %v1331 = vld [vmem:[%s1329 + $0x4] sm:$0xf]
        %v1332 = vunpack.c.l.bf16 %v1330
        %v1333 = vunpack.c.l.bf16 %v1331
        %v1334 = vmax.f32 %v1327, %v1332
        %v1335 = vmax.f32 %v1328, %v1333
        %s1336 = scalar_lea.vmem %s429, 184 [#allocation7]
        %v1337 = vld [vmem:[%s1336] sm:$0xf]
        %v1338 = vld [vmem:[%s1336 + $0x4] sm:$0xf]
        %v1339 = vunpack.c.l.bf16 %v1337
        %v1340 = vunpack.c.l.bf16 %v1338
        %v1341 = vmax.f32 %v1334, %v1339
        %v1342 = vmax.f32 %v1335, %v1340
        %s1343 = scalar_lea.vmem %s429, 192 [#allocation7]
        %v1344 = vld [vmem:[%s1343] sm:$0xf]
        %v1345 = vld [vmem:[%s1343 + $0x4] sm:$0xf]
        %v1346 = vunpack.c.l.bf16 %v1344
        %v1347 = vunpack.c.l.bf16 %v1345
        %v1348 = vmax.f32 %v1341, %v1346
        %v1349 = vmax.f32 %v1342, %v1347
        %s1350 = scalar_lea.vmem %s429, 200 [#allocation7]
        %v1351 = vld [vmem:[%s1350] sm:$0xf]
        %v1352 = vld [vmem:[%s1350 + $0x4] sm:$0xf]
        %v1353 = vunpack.c.l.bf16 %v1351
        %v1354 = vunpack.c.l.bf16 %v1352
        %v1355 = vmax.f32 %v1348, %v1353
        %v1356 = vmax.f32 %v1349, %v1354
        %s1357 = scalar_lea.vmem %s429, 208 [#allocation7]
        %v1358 = vld [vmem:[%s1357] sm:$0xf]
        %v1359 = vld [vmem:[%s1357 + $0x4] sm:$0xf]
        %v1360 = vunpack.c.l.bf16 %v1358
        %v1361 = vunpack.c.l.bf16 %v1359
        %v1362 = vmax.f32 %v1355, %v1360
        %v1363 = vmax.f32 %v1356, %v1361
        %s1364 = scalar_lea.vmem %s429, 216 [#allocation7]
        %v1365 = vld [vmem:[%s1364] sm:$0xf]
        %v1366 = vld [vmem:[%s1364 + $0x4] sm:$0xf]
        %v1367 = vunpack.c.l.bf16 %v1365
        %v1368 = vunpack.c.l.bf16 %v1366
        %v1369 = vmax.f32 %v1362, %v1367
        %v1370 = vmax.f32 %v1363, %v1368
        %s1371 = scalar_lea.vmem %s429, 224 [#allocation7]
        %v1372 = vld [vmem:[%s1371] sm:$0xf]
        %v1373 = vld [vmem:[%s1371 + $0x4] sm:$0xf]
        %v1374 = vunpack.c.l.bf16 %v1372
        %v1375 = vunpack.c.l.bf16 %v1373
        %v1376 = vmax.f32 %v1369, %v1374
        %v1377 = vmax.f32 %v1370, %v1375
        %s1378 = scalar_lea.vmem %s429, 232 [#allocation7]
        %v1379 = vld [vmem:[%s1378] sm:$0xf]
        %v1380 = vld [vmem:[%s1378 + $0x4] sm:$0xf]
        %v1381 = vunpack.c.l.bf16 %v1379
        %v1382 = vunpack.c.l.bf16 %v1380
        %v1383 = vmax.f32 %v1376, %v1381
        %v1384 = vmax.f32 %v1377, %v1382
        %s1385 = scalar_lea.vmem %s429, 240 [#allocation7]
        %v1386 = vld [vmem:[%s1385] sm:$0xf]
        %v1387 = vld [vmem:[%s1385 + $0x4] sm:$0xf]
        %v1388 = vunpack.c.l.bf16 %v1386
        %v1389 = vunpack.c.l.bf16 %v1387
        %v1390 = vmax.f32 %v1383, %v1388
        %v1391 = vmax.f32 %v1384, %v1389
        %s1392 = scalar_lea.vmem %s429, 248 [#allocation7]
        %v1393 = vld [vmem:[%s1392] sm:$0xf]
        %v1394 = vld [vmem:[%s1392 + $0x4] sm:$0xf]
        %v1395 = vunpack.c.l.bf16 %v1393
        %v1396 = vunpack.c.l.bf16 %v1394
        %v1397 = vmax.f32 %v1390, %v1395
        %v1398 = vmax.f32 %v1391, %v1396
        %s1399 = scalar_lea.vmem %s429, 256 [#allocation7]
        %v1400 = vld [vmem:[%s1399] sm:$0xf]
        %v1401 = vld [vmem:[%s1399 + $0x4] sm:$0xf]
        %v1402 = vunpack.c.l.bf16 %v1400
        %v1403 = vunpack.c.l.bf16 %v1401
        %v1404 = vmax.f32 %v1397, %v1402
        %v1405 = vmax.f32 %v1398, %v1403
        %s1406 = scalar_lea.vmem %s429, 264 [#allocation7]
        %v1407 = vld [vmem:[%s1406] sm:$0xf]
        %v1408 = vld [vmem:[%s1406 + $0x4] sm:$0xf]
        %v1409 = vunpack.c.l.bf16 %v1407
        %v1410 = vunpack.c.l.bf16 %v1408
        %v1411 = vmax.f32 %v1404, %v1409
        %v1412 = vmax.f32 %v1405, %v1410
        %v1413 = vsub.f32 %v1299, %v1411
        %v1414 = vsub.f32 %v1300, %v1412
        %v1415 = vmul.f32 %v1413, 1.442695
        %v1416 = vpow.pop %v1415
        %v1417 = vmul.f32 %v1414, 1.442695
        %v1418 = vpow.pop %v1417
        %v1419 = vadd.f32 %v1416, 0.0
        %v1420 = vadd.f32 %v1418, 0.0
        %vm1421 = vcmp.eq.s32.totalorder %v1288, 0
        %vm1422 = vcmp.eq.s32.totalorder %v1289, 0
        %v1423 = vsel %vm1421, %v1292, 0.0
        %v1424 = vsel %vm1422, %v1293, 0.0
        %v1425 = vmul.f32 %v1299, %v1423
        %v1426 = vmul.f32 %v1300, %v1424
        %v1427 = vadd.f32 %v1425, 0.0
        %v1428 = vadd.f32 %v1426, 0.0
        %v1429 = vsub.f32 %v1304, %v1411
        %v1430 = vsub.f32 %v1305, %v1412
        %v1431 = vmul.f32 %v1429, 1.442695
        %v1432 = vpow.pop %v1431
        %v1433 = vmul.f32 %v1430, 1.442695
        %v1434 = vpow.pop %v1433
        %v1435 = vadd.f32 %v1419, %v1432
        %v1436 = vadd.f32 %v1420, %v1434
        %vm1437 = vcmp.eq.s32.totalorder %v1288, 1
        %vm1438 = vcmp.eq.s32.totalorder %v1289, 1
        %v1439 = vsel %vm1437, %v1292, 0.0
        %v1440 = vsel %vm1438, %v1293, 0.0
        %v1441 = vsel %vm1421, %v1294, 0.0
        %v1442 = vsel %vm1422, %v1295, 0.0
        %v1443 = vadd.f32 %v1439, %v1441
        %v1444 = vadd.f32 %v1440, %v1442
        %v1445 = vmul.f32 %v1304, %v1443
        %v1446 = vmul.f32 %v1305, %v1444
        %v1447 = vadd.f32 %v1427, %v1445
        %v1448 = vadd.f32 %v1428, %v1446
        %v1449 = vsub.f32 %v1311, %v1411
        %v1450 = vsub.f32 %v1312, %v1412
        %v1451 = vmul.f32 %v1449, 1.442695
        %v1452 = vpow.pop %v1451
        %v1453 = vmul.f32 %v1450, 1.442695
        %v1454 = vpow.pop %v1453
        %v1455 = vadd.f32 %v1435, %v1452
        %v1456 = vadd.f32 %v1436, %v1454
        %vm1457 = vcmp.eq.s32.totalorder %v1288, 2
        %vm1458 = vcmp.eq.s32.totalorder %v1289, 2
        %v1459 = vsel %vm1457, %v1292, 0.0
        %v1460 = vsel %vm1458, %v1293, 0.0
        %v1461 = vsel %vm1437, %v1294, 0.0
        %v1462 = vsel %vm1438, %v1295, 0.0
        %v1463 = vadd.f32 %v1459, %v1461
        %v1464 = vadd.f32 %v1460, %v1462
        %v1465 = vmul.f32 %v1311, %v1463
        %v1466 = vmul.f32 %v1312, %v1464
        %v1467 = vadd.f32 %v1447, %v1465
        %v1468 = vadd.f32 %v1448, %v1466
        %v1469 = vsub.f32 %v1318, %v1411
        %v1470 = vsub.f32 %v1319, %v1412
        %v1471 = vmul.f32 %v1469, 1.442695
        %v1472 = vpow.pop %v1471
        %v1473 = vmul.f32 %v1470, 1.442695
        %v1474 = vpow.pop %v1473
        %v1475 = vadd.f32 %v1455, %v1472
        %v1476 = vadd.f32 %v1456, %v1474
        %vm1477 = vcmp.eq.s32.totalorder %v1288, 3
        %vm1478 = vcmp.eq.s32.totalorder %v1289, 3
        %v1479 = vsel %vm1477, %v1292, 0.0
        %v1480 = vsel %vm1478, %v1293, 0.0
        %v1481 = vsel %vm1457, %v1294, 0.0
        %v1482 = vsel %vm1458, %v1295, 0.0
        %v1483 = vadd.f32 %v1479, %v1481
        %v1484 = vadd.f32 %v1480, %v1482
        %v1485 = vmul.f32 %v1318, %v1483
        %v1486 = vmul.f32 %v1319, %v1484
        %v1487 = vadd.f32 %v1467, %v1485
        %v1488 = vadd.f32 %v1468, %v1486
        %v1489 = vsub.f32 %v1325, %v1411
        %v1490 = vsub.f32 %v1326, %v1412
        %v1491 = vmul.f32 %v1489, 1.442695
        %v1492 = vpow.pop %v1491
        %v1493 = vmul.f32 %v1490, 1.442695
        %v1494 = vpow.pop %v1493
        %v1495 = vadd.f32 %v1475, %v1492
        %v1496 = vadd.f32 %v1476, %v1494
        %vm1497 = vcmp.eq.s32.totalorder %v1288, 4
        %vm1498 = vcmp.eq.s32.totalorder %v1289, 4
        %v1499 = vsel %vm1497, %v1292, 0.0
        %v1500 = vsel %vm1498, %v1293, 0.0
        %v1501 = vsel %vm1477, %v1294, 0.0
        %v1502 = vsel %vm1478, %v1295, 0.0
        %v1503 = vadd.f32 %v1499, %v1501
        %v1504 = vadd.f32 %v1500, %v1502
        %v1505 = vmul.f32 %v1325, %v1503
        %v1506 = vmul.f32 %v1326, %v1504
        %v1507 = vadd.f32 %v1487, %v1505
        %v1508 = vadd.f32 %v1488, %v1506
        %v1509 = vsub.f32 %v1332, %v1411
        %v1510 = vsub.f32 %v1333, %v1412
        %v1511 = vmul.f32 %v1509, 1.442695
        %v1512 = vpow.pop %v1511
        %v1513 = vmul.f32 %v1510, 1.442695
        %v1514 = vpow.pop %v1513
        %v1515 = vadd.f32 %v1495, %v1512
        %v1516 = vadd.f32 %v1496, %v1514
        %vm1517 = vcmp.eq.s32.totalorder %v1288, 5
        %vm1518 = vcmp.eq.s32.totalorder %v1289, 5
        %v1519 = vsel %vm1517, %v1292, 0.0
        %v1520 = vsel %vm1518, %v1293, 0.0
        %v1521 = vsel %vm1497, %v1294, 0.0
        %v1522 = vsel %vm1498, %v1295, 0.0
        %v1523 = vadd.f32 %v1519, %v1521
        %v1524 = vadd.f32 %v1520, %v1522
        %v1525 = vmul.f32 %v1332, %v1523
        %v1526 = vmul.f32 %v1333, %v1524
        %v1527 = vadd.f32 %v1507, %v1525
        %v1528 = vadd.f32 %v1508, %v1526
        %v1529 = vsub.f32 %v1339, %v1411
        %v1530 = vsub.f32 %v1340, %v1412
        %v1531 = vmul.f32 %v1529, 1.442695
        %v1532 = vpow.pop %v1531
        %v1533 = vmul.f32 %v1530, 1.442695
        %v1534 = vpow.pop %v1533
        %v1535 = vadd.f32 %v1515, %v1532
        %v1536 = vadd.f32 %v1516, %v1534
        %vm1537 = vcmp.eq.s32.totalorder %v1288, 6
        %vm1538 = vcmp.eq.s32.totalorder %v1289, 6
        %v1539 = vsel %vm1537, %v1292, 0.0
        %v1540 = vsel %vm1538, %v1293, 0.0
        %v1541 = vsel %vm1517, %v1294, 0.0
        %v1542 = vsel %vm1518, %v1295, 0.0
        %v1543 = vadd.f32 %v1539, %v1541
        %v1544 = vadd.f32 %v1540, %v1542
        %v1545 = vmul.f32 %v1339, %v1543
        %v1546 = vmul.f32 %v1340, %v1544
        %v1547 = vadd.f32 %v1527, %v1545
        %v1548 = vadd.f32 %v1528, %v1546
        %v1549 = vsub.f32 %v1346, %v1411
        %v1550 = vsub.f32 %v1347, %v1412
        %v1551 = vmul.f32 %v1549, 1.442695
        %v1552 = vpow.pop %v1551
        %v1553 = vmul.f32 %v1550, 1.442695
        %v1554 = vpow.pop %v1553
        %v1555 = vadd.f32 %v1535, %v1552
        %v1556 = vadd.f32 %v1536, %v1554
        %vm1557 = vcmp.eq.s32.totalorder %v1288, 7
        %vm1558 = vcmp.eq.s32.totalorder %v1289, 7
        %v1559 = vsel %vm1557, %v1292, 0.0
        %v1560 = vsel %vm1558, %v1293, 0.0
        %v1561 = vsel %vm1537, %v1294, 0.0
        %v1562 = vsel %vm1538, %v1295, 0.0
        %v1563 = vadd.f32 %v1559, %v1561
        %v1564 = vadd.f32 %v1560, %v1562
        %v1565 = vmul.f32 %v1346, %v1563
        %v1566 = vmul.f32 %v1347, %v1564
        %v1567 = vadd.f32 %v1547, %v1565
        %v1568 = vadd.f32 %v1548, %v1566
        %v1569 = vsub.f32 %v1353, %v1411
        %v1570 = vsub.f32 %v1354, %v1412
        %v1571 = vmul.f32 %v1569, 1.442695
        %v1572 = vpow.pop %v1571
        %v1573 = vmul.f32 %v1570, 1.442695
        %v1574 = vpow.pop %v1573
        %v1575 = vadd.f32 %v1555, %v1572
        %v1576 = vadd.f32 %v1556, %v1574
        %vm1577 = vcmp.eq.s32.totalorder %v1288, 8
        %vm1578 = vcmp.eq.s32.totalorder %v1289, 8
        %v1579 = vsel %vm1577, %v1292, 0.0
        %v1580 = vsel %vm1578, %v1293, 0.0
        %v1581 = vsel %vm1557, %v1294, 0.0
        %v1582 = vsel %vm1558, %v1295, 0.0
        %v1583 = vadd.f32 %v1579, %v1581
        %v1584 = vadd.f32 %v1580, %v1582
        %v1585 = vmul.f32 %v1353, %v1583
        %v1586 = vmul.f32 %v1354, %v1584
        %v1587 = vadd.f32 %v1567, %v1585
        %v1588 = vadd.f32 %v1568, %v1586
        %v1589 = vsub.f32 %v1360, %v1411
        %v1590 = vsub.f32 %v1361, %v1412
        %v1591 = vmul.f32 %v1589, 1.442695
        %v1592 = vpow.pop %v1591
        %v1593 = vmul.f32 %v1590, 1.442695
        %v1594 = vpow.pop %v1593
        %v1595 = vadd.f32 %v1575, %v1592
        %v1596 = vadd.f32 %v1576, %v1594
        %vm1597 = vcmp.eq.s32.totalorder %v1288, 9
        %vm1598 = vcmp.eq.s32.totalorder %v1289, 9
        %v1599 = vsel %vm1597, %v1292, 0.0
        %v1600 = vsel %vm1598, %v1293, 0.0
        %v1601 = vsel %vm1577, %v1294, 0.0
        %v1602 = vsel %vm1578, %v1295, 0.0
        %v1603 = vadd.f32 %v1599, %v1601
        %v1604 = vadd.f32 %v1600, %v1602
        %v1605 = vmul.f32 %v1360, %v1603
        %v1606 = vmul.f32 %v1361, %v1604
        %v1607 = vadd.f32 %v1587, %v1605
        %v1608 = vadd.f32 %v1588, %v1606
        %v1609 = vsub.f32 %v1367, %v1411
        %v1610 = vsub.f32 %v1368, %v1412
        %v1611 = vmul.f32 %v1609, 1.442695
        %v1612 = vpow.pop %v1611
        %v1613 = vmul.f32 %v1610, 1.442695
        %v1614 = vpow.pop %v1613
        %v1615 = vadd.f32 %v1595, %v1612
        %v1616 = vadd.f32 %v1596, %v1614
        %vm1617 = vcmp.eq.s32.totalorder %v1288, 10
        %vm1618 = vcmp.eq.s32.totalorder %v1289, 10
        %v1619 = vsel %vm1617, %v1292, 0.0
        %v1620 = vsel %vm1618, %v1293, 0.0
        %v1621 = vsel %vm1597, %v1294, 0.0
        %v1622 = vsel %vm1598, %v1295, 0.0
        %v1623 = vadd.f32 %v1619, %v1621
        %v1624 = vadd.f32 %v1620, %v1622
        %v1625 = vmul.f32 %v1367, %v1623
        %v1626 = vmul.f32 %v1368, %v1624
        %v1627 = vadd.f32 %v1607, %v1625
        %v1628 = vadd.f32 %v1608, %v1626
        %v1629 = vsub.f32 %v1374, %v1411
        %v1630 = vsub.f32 %v1375, %v1412
        %v1631 = vmul.f32 %v1629, 1.442695
        %v1632 = vpow.pop %v1631
        %v1633 = vmul.f32 %v1630, 1.442695
        %v1634 = vpow.pop %v1633
        %v1635 = vadd.f32 %v1615, %v1632
        %v1636 = vadd.f32 %v1616, %v1634
        %vm1637 = vcmp.eq.s32.totalorder %v1288, 11
        %vm1638 = vcmp.eq.s32.totalorder %v1289, 11
        %v1639 = vsel %vm1637, %v1292, 0.0
        %v1640 = vsel %vm1638, %v1293, 0.0
        %v1641 = vsel %vm1617, %v1294, 0.0
        %v1642 = vsel %vm1618, %v1295, 0.0
        %v1643 = vadd.f32 %v1639, %v1641
        %v1644 = vadd.f32 %v1640, %v1642
        %v1645 = vmul.f32 %v1374, %v1643
        %v1646 = vmul.f32 %v1375, %v1644
        %v1647 = vadd.f32 %v1627, %v1645
        %v1648 = vadd.f32 %v1628, %v1646
        %v1649 = vsub.f32 %v1381, %v1411
        %v1650 = vsub.f32 %v1382, %v1412
        %v1651 = vmul.f32 %v1649, 1.442695
        %v1652 = vpow.pop %v1651
        %v1653 = vmul.f32 %v1650, 1.442695
        %v1654 = vpow.pop %v1653
        %v1655 = vadd.f32 %v1635, %v1652
        %v1656 = vadd.f32 %v1636, %v1654
        %vm1657 = vcmp.eq.s32.totalorder %v1288, 12
        %vm1658 = vcmp.eq.s32.totalorder %v1289, 12
        %v1659 = vsel %vm1657, %v1292, 0.0
        %v1660 = vsel %vm1658, %v1293, 0.0
        %v1661 = vsel %vm1637, %v1294, 0.0
        %v1662 = vsel %vm1638, %v1295, 0.0
        %v1663 = vadd.f32 %v1659, %v1661
        %v1664 = vadd.f32 %v1660, %v1662
        %v1665 = vmul.f32 %v1381, %v1663
        %v1666 = vmul.f32 %v1382, %v1664
        %v1667 = vadd.f32 %v1647, %v1665
        %v1668 = vadd.f32 %v1648, %v1666
        %v1669 = vsub.f32 %v1388, %v1411
        %v1670 = vsub.f32 %v1389, %v1412
        %v1671 = vmul.f32 %v1669, 1.442695
        %v1672 = vpow.pop %v1671
        %v1673 = vmul.f32 %v1670, 1.442695
        %v1674 = vpow.pop %v1673
        %v1675 = vadd.f32 %v1655, %v1672
        %v1676 = vadd.f32 %v1656, %v1674
        %vm1677 = vcmp.eq.s32.totalorder %v1288, 13
        %vm1678 = vcmp.eq.s32.totalorder %v1289, 13
        %v1679 = vsel %vm1677, %v1292, 0.0
        %v1680 = vsel %vm1678, %v1293, 0.0
        %v1681 = vsel %vm1657, %v1294, 0.0
        %v1682 = vsel %vm1658, %v1295, 0.0
        %v1683 = vadd.f32 %v1679, %v1681
        %v1684 = vadd.f32 %v1680, %v1682
        %v1685 = vmul.f32 %v1388, %v1683
        %v1686 = vmul.f32 %v1389, %v1684
        %v1687 = vadd.f32 %v1667, %v1685
        %v1688 = vadd.f32 %v1668, %v1686
        %v1689 = vsub.f32 %v1395, %v1411
        %v1690 = vsub.f32 %v1396, %v1412
        %v1691 = vmul.f32 %v1689, 1.442695
        %v1692 = vpow.pop %v1691
        %v1693 = vmul.f32 %v1690, 1.442695
        %v1694 = vpow.pop %v1693
        %v1695 = vadd.f32 %v1675, %v1692
        %v1696 = vadd.f32 %v1676, %v1694
        %vm1697 = vcmp.eq.s32.totalorder %v1288, 14
        %vm1698 = vcmp.eq.s32.totalorder %v1289, 14
        %v1699 = vsel %vm1697, %v1292, 0.0
        %v1700 = vsel %vm1698, %v1293, 0.0
        %v1701 = vsel %vm1677, %v1294, 0.0
        %v1702 = vsel %vm1678, %v1295, 0.0
        %v1703 = vadd.f32 %v1699, %v1701
        %v1704 = vadd.f32 %v1700, %v1702
        %v1705 = vmul.f32 %v1395, %v1703
        %v1706 = vmul.f32 %v1396, %v1704
        %v1707 = vadd.f32 %v1687, %v1705
        %v1708 = vadd.f32 %v1688, %v1706
        %v1709 = vsub.f32 %v1402, %v1411
        %v1710 = vsub.f32 %v1403, %v1412
        %v1711 = vmul.f32 %v1709, 1.442695
        %v1712 = vpow.pop %v1711
        %v1713 = vmul.f32 %v1710, 1.442695
        %v1714 = vpow.pop %v1713
        %v1715 = vadd.f32 %v1695, %v1712
        %v1716 = vadd.f32 %v1696, %v1714
        %vm1717 = vcmp.eq.s32.totalorder %v1288, 15
        %vm1718 = vcmp.eq.s32.totalorder %v1289, 15
        %v1719 = vsel %vm1717, %v1292, 0.0
        %v1720 = vsel %vm1718, %v1293, 0.0
        %v1721 = vsel %vm1697, %v1294, 0.0
        %v1722 = vsel %vm1698, %v1295, 0.0
        %v1723 = vadd.f32 %v1719, %v1721
        %v1724 = vadd.f32 %v1720, %v1722
        %v1725 = vmul.f32 %v1402, %v1723
        %v1726 = vmul.f32 %v1403, %v1724
        %v1727 = vadd.f32 %v1707, %v1725
        %v1728 = vadd.f32 %v1708, %v1726
        %v1729 = vsub.f32 %v1409, %v1411
        %v1730 = vsub.f32 %v1410, %v1412
        %v1731 = vmul.f32 %v1729, 1.442695
        %v1732 = vpow.pop %v1731
        %v1733 = vmul.f32 %v1730, 1.442695
        %v1734 = vpow.pop %v1733
        %v1735 = vadd.f32 %v1715, %v1732
        %v1736 = vadd.f32 %v1716, %v1734
        %vm1737 = vcmp.eq.s32.totalorder %v1288, 16
        %vm1738 = vcmp.eq.s32.totalorder %v1289, 16
        %v1739 = vsel %vm1737, %v1292, 0.0
        %v1740 = vsel %vm1738, %v1293, 0.0
        %v1741 = vsel %vm1717, %v1294, 0.0
        %v1742 = vsel %vm1718, %v1295, 0.0
        %v1743 = vadd.f32 %v1739, %v1741
        %v1744 = vadd.f32 %v1740, %v1742
        %v1745 = vmul.f32 %v1409, %v1743
        %v1746 = vmul.f32 %v1410, %v1744
        %v1747 = vadd.f32 %v1727, %v1745
        %v1748 = vadd.f32 %v1728, %v1746
        %v1749 = vlog2.pop %v1735
        %v1750 = vmul.f32 %v1749, 0.6931472
        %v1751 = vlog2.pop %v1736
        %v1752 = vmul.f32 %v1751, 0.6931472
        %v1753 = vadd.f32 %v1750, %v1411
        %v1754 = vadd.f32 %v1752, %v1412
        %v1755 = vsub.f32 %v1753, %v1747
        %v1756 = vsub.f32 %v1754, %v1748
        %v1757 = vadd.f32 %v1284, %v1755
        %v1758 = vadd.f32 %v1285, %v1756
        %v1759 = vfloor.f32 %v806
        %v1760 = vfloor.f32 %v807
        %v1761 = vcvt.f32.s32.to.zero.pseudo %v1759
        %v1762 = vcvt.f32.s32.to.zero.pseudo %v1760
        %v1763 = vadd.f32 %v1759, 1.0
        %v1764 = vadd.f32 %v1760, 1.0
        %v1765 = vsub.f32 %v1763, %v806
        %v1766 = vsub.f32 %v1764, %v807
        %v1767 = vsub.f32 1.0, %v1765
        %v1768 = vsub.f32 1.0, %v1766
        %s1769 = scalar_lea.vmem %s429, 272 [#allocation7]
        %v1770 = vld [vmem:[%s1769] sm:$0xf]
        %v1771 = vld [vmem:[%s1769 + $0x4] sm:$0xf]
        %v1772 = vunpack.c.l.bf16 %v1770
        %v1773 = vunpack.c.l.bf16 %v1771
        %s1774 = scalar_lea.vmem %s429, 280 [#allocation7]
        %v1775 = vld [vmem:[%s1774] sm:$0xf]
        %v1776 = vld [vmem:[%s1774 + $0x4] sm:$0xf]
        %v1777 = vunpack.c.l.bf16 %v1775
        %v1778 = vunpack.c.l.bf16 %v1776
        %v1779 = vmax.f32 %v1772, %v1777
        %v1780 = vmax.f32 %v1773, %v1778
        %s1781 = scalar_lea.vmem %s429, 288 [#allocation7]
        %v1782 = vld [vmem:[%s1781] sm:$0xf]
        %v1783 = vld [vmem:[%s1781 + $0x4] sm:$0xf]
        %v1784 = vunpack.c.l.bf16 %v1782
        %v1785 = vunpack.c.l.bf16 %v1783
        %v1786 = vmax.f32 %v1779, %v1784
        %v1787 = vmax.f32 %v1780, %v1785
        %s1788 = scalar_lea.vmem %s429, 296 [#allocation7]
        %v1789 = vld [vmem:[%s1788] sm:$0xf]
        %v1790 = vld [vmem:[%s1788 + $0x4] sm:$0xf]
        %v1791 = vunpack.c.l.bf16 %v1789
        %v1792 = vunpack.c.l.bf16 %v1790
        %v1793 = vmax.f32 %v1786, %v1791
        %v1794 = vmax.f32 %v1787, %v1792
        %s1795 = scalar_lea.vmem %s429, 304 [#allocation7]
        %v1796 = vld [vmem:[%s1795] sm:$0xf]
        %v1797 = vld [vmem:[%s1795 + $0x4] sm:$0xf]
        %v1798 = vunpack.c.l.bf16 %v1796
        %v1799 = vunpack.c.l.bf16 %v1797
        %v1800 = vmax.f32 %v1793, %v1798
        %v1801 = vmax.f32 %v1794, %v1799
        %s1802 = scalar_lea.vmem %s429, 312 [#allocation7]
        %v1803 = vld [vmem:[%s1802] sm:$0xf]
        %v1804 = vld [vmem:[%s1802 + $0x4] sm:$0xf]
        %v1805 = vunpack.c.l.bf16 %v1803
        %v1806 = vunpack.c.l.bf16 %v1804
        %v1807 = vmax.f32 %v1800, %v1805
        %v1808 = vmax.f32 %v1801, %v1806
        %s1809 = scalar_lea.vmem %s429, 320 [#allocation7]
        %v1810 = vld [vmem:[%s1809] sm:$0xf]
        %v1811 = vld [vmem:[%s1809 + $0x4] sm:$0xf]
        %v1812 = vunpack.c.l.bf16 %v1810
        %v1813 = vunpack.c.l.bf16 %v1811
        %v1814 = vmax.f32 %v1807, %v1812
        %v1815 = vmax.f32 %v1808, %v1813
        %s1816 = scalar_lea.vmem %s429, 328 [#allocation7]
        %v1817 = vld [vmem:[%s1816] sm:$0xf]
        %v1818 = vld [vmem:[%s1816 + $0x4] sm:$0xf]
        %v1819 = vunpack.c.l.bf16 %v1817
        %v1820 = vunpack.c.l.bf16 %v1818
        %v1821 = vmax.f32 %v1814, %v1819
        %v1822 = vmax.f32 %v1815, %v1820
        %s1823 = scalar_lea.vmem %s429, 336 [#allocation7]
        %v1824 = vld [vmem:[%s1823] sm:$0xf]
        %v1825 = vld [vmem:[%s1823 + $0x4] sm:$0xf]
        %v1826 = vunpack.c.l.bf16 %v1824
        %v1827 = vunpack.c.l.bf16 %v1825
        %v1828 = vmax.f32 %v1821, %v1826
        %v1829 = vmax.f32 %v1822, %v1827
        %s1830 = scalar_lea.vmem %s429, 344 [#allocation7]
        %v1831 = vld [vmem:[%s1830] sm:$0xf]
        %v1832 = vld [vmem:[%s1830 + $0x4] sm:$0xf]
        %v1833 = vunpack.c.l.bf16 %v1831
        %v1834 = vunpack.c.l.bf16 %v1832
        %v1835 = vmax.f32 %v1828, %v1833
        %v1836 = vmax.f32 %v1829, %v1834
        %s1837 = scalar_lea.vmem %s429, 352 [#allocation7]
        %v1838 = vld [vmem:[%s1837] sm:$0xf]
        %v1839 = vld [vmem:[%s1837 + $0x4] sm:$0xf]
        %v1840 = vunpack.c.l.bf16 %v1838
        %v1841 = vunpack.c.l.bf16 %v1839
        %v1842 = vmax.f32 %v1835, %v1840
        %v1843 = vmax.f32 %v1836, %v1841
        %s1844 = scalar_lea.vmem %s429, 360 [#allocation7]
        %v1845 = vld [vmem:[%s1844] sm:$0xf]
        %v1846 = vld [vmem:[%s1844 + $0x4] sm:$0xf]
        %v1847 = vunpack.c.l.bf16 %v1845
        %v1848 = vunpack.c.l.bf16 %v1846
        %v1849 = vmax.f32 %v1842, %v1847
        %v1850 = vmax.f32 %v1843, %v1848
        %s1851 = scalar_lea.vmem %s429, 368 [#allocation7]
        %v1852 = vld [vmem:[%s1851] sm:$0xf]
        %v1853 = vld [vmem:[%s1851 + $0x4] sm:$0xf]
        %v1854 = vunpack.c.l.bf16 %v1852
        %v1855 = vunpack.c.l.bf16 %v1853
        %v1856 = vmax.f32 %v1849, %v1854
        %v1857 = vmax.f32 %v1850, %v1855
        %s1858 = scalar_lea.vmem %s429, 376 [#allocation7]
        %v1859 = vld [vmem:[%s1858] sm:$0xf]
        %v1860 = vld [vmem:[%s1858 + $0x4] sm:$0xf]
        %v1861 = vunpack.c.l.bf16 %v1859
        %v1862 = vunpack.c.l.bf16 %v1860
        %v1863 = vmax.f32 %v1856, %v1861
        %v1864 = vmax.f32 %v1857, %v1862
        %s1865 = scalar_lea.vmem %s429, 384 [#allocation7]
        %v1866 = vld [vmem:[%s1865] sm:$0xf]
        %v1867 = vld [vmem:[%s1865 + $0x4] sm:$0xf]
        %v1868 = vunpack.c.l.bf16 %v1866
        %v1869 = vunpack.c.l.bf16 %v1867
        %v1870 = vmax.f32 %v1863, %v1868
        %v1871 = vmax.f32 %v1864, %v1869
        %s1872 = scalar_lea.vmem %s429, 392 [#allocation7]
        %v1873 = vld [vmem:[%s1872] sm:$0xf]
        %v1874 = vld [vmem:[%s1872 + $0x4] sm:$0xf]
        %v1875 = vunpack.c.l.bf16 %v1873
        %v1876 = vunpack.c.l.bf16 %v1874
        %v1877 = vmax.f32 %v1870, %v1875
        %v1878 = vmax.f32 %v1871, %v1876
        %s1879 = scalar_lea.vmem %s429, 400 [#allocation7]
        %v1880 = vld [vmem:[%s1879] sm:$0xf]
        %v1881 = vld [vmem:[%s1879 + $0x4] sm:$0xf]
        %v1882 = vunpack.c.l.bf16 %v1880
        %v1883 = vunpack.c.l.bf16 %v1881
        %v1884 = vmax.f32 %v1877, %v1882
        %v1885 = vmax.f32 %v1878, %v1883
        %v1886 = vsub.f32 %v1772, %v1884
        %v1887 = vsub.f32 %v1773, %v1885
        %v1888 = vmul.f32 %v1886, 1.442695
        %v1889 = vpow.pop %v1888
        %v1890 = vmul.f32 %v1887, 1.442695
        %v1891 = vpow.pop %v1890
        %v1892 = vadd.f32 %v1889, 0.0
        %v1893 = vadd.f32 %v1891, 0.0
        %vm1894 = vcmp.eq.s32.totalorder %v1761, 0
        %vm1895 = vcmp.eq.s32.totalorder %v1762, 0
        %v1896 = vsel %vm1894, %v1765, 0.0
        %v1897 = vsel %vm1895, %v1766, 0.0
        %v1898 = vmul.f32 %v1772, %v1896
        %v1899 = vmul.f32 %v1773, %v1897
        %v1900 = vadd.f32 %v1898, 0.0
        %v1901 = vadd.f32 %v1899, 0.0
        %v1902 = vsub.f32 %v1777, %v1884
        %v1903 = vsub.f32 %v1778, %v1885
        %v1904 = vmul.f32 %v1902, 1.442695
        %v1905 = vpow.pop %v1904
        %v1906 = vmul.f32 %v1903, 1.442695
        %v1907 = vpow.pop %v1906
        %v1908 = vadd.f32 %v1892, %v1905
        %v1909 = vadd.f32 %v1893, %v1907
        %vm1910 = vcmp.eq.s32.totalorder %v1761, 1
        %vm1911 = vcmp.eq.s32.totalorder %v1762, 1
        %v1912 = vsel %vm1910, %v1765, 0.0
        %v1913 = vsel %vm1911, %v1766, 0.0
        %v1914 = vsel %vm1894, %v1767, 0.0
        %v1915 = vsel %vm1895, %v1768, 0.0
        %v1916 = vadd.f32 %v1912, %v1914
        %v1917 = vadd.f32 %v1913, %v1915
        %v1918 = vmul.f32 %v1777, %v1916
        %v1919 = vmul.f32 %v1778, %v1917
        %v1920 = vadd.f32 %v1900, %v1918
        %v1921 = vadd.f32 %v1901, %v1919
        %v1922 = vsub.f32 %v1784, %v1884
        %v1923 = vsub.f32 %v1785, %v1885
        %v1924 = vmul.f32 %v1922, 1.442695
        %v1925 = vpow.pop %v1924
        %v1926 = vmul.f32 %v1923, 1.442695
        %v1927 = vpow.pop %v1926
        %v1928 = vadd.f32 %v1908, %v1925
        %v1929 = vadd.f32 %v1909, %v1927
        %vm1930 = vcmp.eq.s32.totalorder %v1761, 2
        %vm1931 = vcmp.eq.s32.totalorder %v1762, 2
        %v1932 = vsel %vm1930, %v1765, 0.0
        %v1933 = vsel %vm1931, %v1766, 0.0
        %v1934 = vsel %vm1910, %v1767, 0.0
        %v1935 = vsel %vm1911, %v1768, 0.0
        %v1936 = vadd.f32 %v1932, %v1934
        %v1937 = vadd.f32 %v1933, %v1935
        %v1938 = vmul.f32 %v1784, %v1936
        %v1939 = vmul.f32 %v1785, %v1937
        %v1940 = vadd.f32 %v1920, %v1938
        %v1941 = vadd.f32 %v1921, %v1939
        %v1942 = vsub.f32 %v1791, %v1884
        %v1943 = vsub.f32 %v1792, %v1885
        %v1944 = vmul.f32 %v1942, 1.442695
        %v1945 = vpow.pop %v1944
        %v1946 = vmul.f32 %v1943, 1.442695
        %v1947 = vpow.pop %v1946
        %v1948 = vadd.f32 %v1928, %v1945
        %v1949 = vadd.f32 %v1929, %v1947
        %vm1950 = vcmp.eq.s32.totalorder %v1761, 3
        %vm1951 = vcmp.eq.s32.totalorder %v1762, 3
        %v1952 = vsel %vm1950, %v1765, 0.0
        %v1953 = vsel %vm1951, %v1766, 0.0
        %v1954 = vsel %vm1930, %v1767, 0.0
        %v1955 = vsel %vm1931, %v1768, 0.0
        %v1956 = vadd.f32 %v1952, %v1954
        %v1957 = vadd.f32 %v1953, %v1955
        %v1958 = vmul.f32 %v1791, %v1956
        %v1959 = vmul.f32 %v1792, %v1957
        %v1960 = vadd.f32 %v1940, %v1958
        %v1961 = vadd.f32 %v1941, %v1959
        %v1962 = vsub.f32 %v1798, %v1884
        %v1963 = vsub.f32 %v1799, %v1885
        %v1964 = vmul.f32 %v1962, 1.442695
        %v1965 = vpow.pop %v1964
        %v1966 = vmul.f32 %v1963, 1.442695
        %v1967 = vpow.pop %v1966
        %v1968 = vadd.f32 %v1948, %v1965
        %v1969 = vadd.f32 %v1949, %v1967
        %vm1970 = vcmp.eq.s32.totalorder %v1761, 4
        %vm1971 = vcmp.eq.s32.totalorder %v1762, 4
        %v1972 = vsel %vm1970, %v1765, 0.0
        %v1973 = vsel %vm1971, %v1766, 0.0
        %v1974 = vsel %vm1950, %v1767, 0.0
        %v1975 = vsel %vm1951, %v1768, 0.0
        %v1976 = vadd.f32 %v1972, %v1974
        %v1977 = vadd.f32 %v1973, %v1975
        %v1978 = vmul.f32 %v1798, %v1976
        %v1979 = vmul.f32 %v1799, %v1977
        %v1980 = vadd.f32 %v1960, %v1978
        %v1981 = vadd.f32 %v1961, %v1979
        %v1982 = vsub.f32 %v1805, %v1884
        %v1983 = vsub.f32 %v1806, %v1885
        %v1984 = vmul.f32 %v1982, 1.442695
        %v1985 = vpow.pop %v1984
        %v1986 = vmul.f32 %v1983, 1.442695
        %v1987 = vpow.pop %v1986
        %v1988 = vadd.f32 %v1968, %v1985
        %v1989 = vadd.f32 %v1969, %v1987
        %vm1990 = vcmp.eq.s32.totalorder %v1761, 5
        %vm1991 = vcmp.eq.s32.totalorder %v1762, 5
        %v1992 = vsel %vm1990, %v1765, 0.0
        %v1993 = vsel %vm1991, %v1766, 0.0
        %v1994 = vsel %vm1970, %v1767, 0.0
        %v1995 = vsel %vm1971, %v1768, 0.0
        %v1996 = vadd.f32 %v1992, %v1994
        %v1997 = vadd.f32 %v1993, %v1995
        %v1998 = vmul.f32 %v1805, %v1996
        %v1999 = vmul.f32 %v1806, %v1997
        %v2000 = vadd.f32 %v1980, %v1998
        %v2001 = vadd.f32 %v1981, %v1999
        %v2002 = vsub.f32 %v1812, %v1884
        %v2003 = vsub.f32 %v1813, %v1885
        %v2004 = vmul.f32 %v2002, 1.442695
        %v2005 = vpow.pop %v2004
        %v2006 = vmul.f32 %v2003, 1.442695
        %v2007 = vpow.pop %v2006
        %v2008 = vadd.f32 %v1988, %v2005
        %v2009 = vadd.f32 %v1989, %v2007
        %vm2010 = vcmp.eq.s32.totalorder %v1761, 6
        %vm2011 = vcmp.eq.s32.totalorder %v1762, 6
        %v2012 = vsel %vm2010, %v1765, 0.0
        %v2013 = vsel %vm2011, %v1766, 0.0
        %v2014 = vsel %vm1990, %v1767, 0.0
        %v2015 = vsel %vm1991, %v1768, 0.0
        %v2016 = vadd.f32 %v2012, %v2014
        %v2017 = vadd.f32 %v2013, %v2015
        %v2018 = vmul.f32 %v1812, %v2016
        %v2019 = vmul.f32 %v1813, %v2017
        %v2020 = vadd.f32 %v2000, %v2018
        %v2021 = vadd.f32 %v2001, %v2019
        %v2022 = vsub.f32 %v1819, %v1884
        %v2023 = vsub.f32 %v1820, %v1885
        %v2024 = vmul.f32 %v2022, 1.442695
        %v2025 = vpow.pop %v2024
        %v2026 = vmul.f32 %v2023, 1.442695
        %v2027 = vpow.pop %v2026
        %v2028 = vadd.f32 %v2008, %v2025
        %v2029 = vadd.f32 %v2009, %v2027
        %vm2030 = vcmp.eq.s32.totalorder %v1761, 7
        %vm2031 = vcmp.eq.s32.totalorder %v1762, 7
        %v2032 = vsel %vm2030, %v1765, 0.0
        %v2033 = vsel %vm2031, %v1766, 0.0
        %v2034 = vsel %vm2010, %v1767, 0.0
        %v2035 = vsel %vm2011, %v1768, 0.0
        %v2036 = vadd.f32 %v2032, %v2034
        %v2037 = vadd.f32 %v2033, %v2035
        %v2038 = vmul.f32 %v1819, %v2036
        %v2039 = vmul.f32 %v1820, %v2037
        %v2040 = vadd.f32 %v2020, %v2038
        %v2041 = vadd.f32 %v2021, %v2039
        %v2042 = vsub.f32 %v1826, %v1884
        %v2043 = vsub.f32 %v1827, %v1885
        %v2044 = vmul.f32 %v2042, 1.442695
        %v2045 = vpow.pop %v2044
        %v2046 = vmul.f32 %v2043, 1.442695
        %v2047 = vpow.pop %v2046
        %v2048 = vadd.f32 %v2028, %v2045
        %v2049 = vadd.f32 %v2029, %v2047
        %vm2050 = vcmp.eq.s32.totalorder %v1761, 8
        %vm2051 = vcmp.eq.s32.totalorder %v1762, 8
        %v2052 = vsel %vm2050, %v1765, 0.0
        %v2053 = vsel %vm2051, %v1766, 0.0
        %v2054 = vsel %vm2030, %v1767, 0.0
        %v2055 = vsel %vm2031, %v1768, 0.0
        %v2056 = vadd.f32 %v2052, %v2054
        %v2057 = vadd.f32 %v2053, %v2055
        %v2058 = vmul.f32 %v1826, %v2056
        %v2059 = vmul.f32 %v1827, %v2057
        %v2060 = vadd.f32 %v2040, %v2058
        %v2061 = vadd.f32 %v2041, %v2059
        %v2062 = vsub.f32 %v1833, %v1884
        %v2063 = vsub.f32 %v1834, %v1885
        %v2064 = vmul.f32 %v2062, 1.442695
        %v2065 = vpow.pop %v2064
        %v2066 = vmul.f32 %v2063, 1.442695
        %v2067 = vpow.pop %v2066
        %v2068 = vadd.f32 %v2048, %v2065
        %v2069 = vadd.f32 %v2049, %v2067
        %vm2070 = vcmp.eq.s32.totalorder %v1761, 9
        %vm2071 = vcmp.eq.s32.totalorder %v1762, 9
        %v2072 = vsel %vm2070, %v1765, 0.0
        %v2073 = vsel %vm2071, %v1766, 0.0
        %v2074 = vsel %vm2050, %v1767, 0.0
        %v2075 = vsel %vm2051, %v1768, 0.0
        %v2076 = vadd.f32 %v2072, %v2074
        %v2077 = vadd.f32 %v2073, %v2075
        %v2078 = vmul.f32 %v1833, %v2076
        %v2079 = vmul.f32 %v1834, %v2077
        %v2080 = vadd.f32 %v2060, %v2078
        %v2081 = vadd.f32 %v2061, %v2079
        %v2082 = vsub.f32 %v1840, %v1884
        %v2083 = vsub.f32 %v1841, %v1885
        %v2084 = vmul.f32 %v2082, 1.442695
        %v2085 = vpow.pop %v2084
        %v2086 = vmul.f32 %v2083, 1.442695
        %v2087 = vpow.pop %v2086
        %v2088 = vadd.f32 %v2068, %v2085
        %v2089 = vadd.f32 %v2069, %v2087
        %vm2090 = vcmp.eq.s32.totalorder %v1761, 10
        %vm2091 = vcmp.eq.s32.totalorder %v1762, 10
        %v2092 = vsel %vm2090, %v1765, 0.0
        %v2093 = vsel %vm2091, %v1766, 0.0
        %v2094 = vsel %vm2070, %v1767, 0.0
        %v2095 = vsel %vm2071, %v1768, 0.0
        %v2096 = vadd.f32 %v2092, %v2094
        %v2097 = vadd.f32 %v2093, %v2095
        %v2098 = vmul.f32 %v1840, %v2096
        %v2099 = vmul.f32 %v1841, %v2097
        %v2100 = vadd.f32 %v2080, %v2098
        %v2101 = vadd.f32 %v2081, %v2099
        %v2102 = vsub.f32 %v1847, %v1884
        %v2103 = vsub.f32 %v1848, %v1885
        %v2104 = vmul.f32 %v2102, 1.442695
        %v2105 = vpow.pop %v2104
        %v2106 = vmul.f32 %v2103, 1.442695
        %v2107 = vpow.pop %v2106
        %v2108 = vadd.f32 %v2088, %v2105
        %v2109 = vadd.f32 %v2089, %v2107
        %vm2110 = vcmp.eq.s32.totalorder %v1761, 11
        %vm2111 = vcmp.eq.s32.totalorder %v1762, 11
        %v2112 = vsel %vm2110, %v1765, 0.0
        %v2113 = vsel %vm2111, %v1766, 0.0
        %v2114 = vsel %vm2090, %v1767, 0.0
        %v2115 = vsel %vm2091, %v1768, 0.0
        %v2116 = vadd.f32 %v2112, %v2114
        %v2117 = vadd.f32 %v2113, %v2115
        %v2118 = vmul.f32 %v1847, %v2116
        %v2119 = vmul.f32 %v1848, %v2117
        %v2120 = vadd.f32 %v2100, %v2118
        %v2121 = vadd.f32 %v2101, %v2119
        %v2122 = vsub.f32 %v1854, %v1884
        %v2123 = vsub.f32 %v1855, %v1885
        %v2124 = vmul.f32 %v2122, 1.442695
        %v2125 = vpow.pop %v2124
        %v2126 = vmul.f32 %v2123, 1.442695
        %v2127 = vpow.pop %v2126
        %v2128 = vadd.f32 %v2108, %v2125
        %v2129 = vadd.f32 %v2109, %v2127
        %vm2130 = vcmp.eq.s32.totalorder %v1761, 12
        %vm2131 = vcmp.eq.s32.totalorder %v1762, 12
        %v2132 = vsel %vm2130, %v1765, 0.0
        %v2133 = vsel %vm2131, %v1766, 0.0
        %v2134 = vsel %vm2110, %v1767, 0.0
        %v2135 = vsel %vm2111, %v1768, 0.0
        %v2136 = vadd.f32 %v2132, %v2134
        %v2137 = vadd.f32 %v2133, %v2135
        %v2138 = vmul.f32 %v1854, %v2136
        %v2139 = vmul.f32 %v1855, %v2137
        %v2140 = vadd.f32 %v2120, %v2138
        %v2141 = vadd.f32 %v2121, %v2139
        %v2142 = vsub.f32 %v1861, %v1884
        %v2143 = vsub.f32 %v1862, %v1885
        %v2144 = vmul.f32 %v2142, 1.442695
        %v2145 = vpow.pop %v2144
        %v2146 = vmul.f32 %v2143, 1.442695
        %v2147 = vpow.pop %v2146
        %v2148 = vadd.f32 %v2128, %v2145
        %v2149 = vadd.f32 %v2129, %v2147
        %vm2150 = vcmp.eq.s32.totalorder %v1761, 13
        %vm2151 = vcmp.eq.s32.totalorder %v1762, 13
        %v2152 = vsel %vm2150, %v1765, 0.0
        %v2153 = vsel %vm2151, %v1766, 0.0
        %v2154 = vsel %vm2130, %v1767, 0.0
        %v2155 = vsel %vm2131, %v1768, 0.0
        %v2156 = vadd.f32 %v2152, %v2154
        %v2157 = vadd.f32 %v2153, %v2155
        %v2158 = vmul.f32 %v1861, %v2156
        %v2159 = vmul.f32 %v1862, %v2157
        %v2160 = vadd.f32 %v2140, %v2158
        %v2161 = vadd.f32 %v2141, %v2159
        %v2162 = vsub.f32 %v1868, %v1884
        %v2163 = vsub.f32 %v1869, %v1885
        %v2164 = vmul.f32 %v2162, 1.442695
        %v2165 = vpow.pop %v2164
        %v2166 = vmul.f32 %v2163, 1.442695
        %v2167 = vpow.pop %v2166
        %v2168 = vadd.f32 %v2148, %v2165
        %v2169 = vadd.f32 %v2149, %v2167
        %vm2170 = vcmp.eq.s32.totalorder %v1761, 14
        %vm2171 = vcmp.eq.s32.totalorder %v1762, 14
        %v2172 = vsel %vm2170, %v1765, 0.0
        %v2173 = vsel %vm2171, %v1766, 0.0
        %v2174 = vsel %vm2150, %v1767, 0.0
        %v2175 = vsel %vm2151, %v1768, 0.0
        %v2176 = vadd.f32 %v2172, %v2174
        %v2177 = vadd.f32 %v2173, %v2175
        %v2178 = vmul.f32 %v1868, %v2176
        %v2179 = vmul.f32 %v1869, %v2177
        %v2180 = vadd.f32 %v2160, %v2178
        %v2181 = vadd.f32 %v2161, %v2179
        %v2182 = vsub.f32 %v1875, %v1884
        %v2183 = vsub.f32 %v1876, %v1885
        %v2184 = vmul.f32 %v2182, 1.442695
        %v2185 = vpow.pop %v2184
        %v2186 = vmul.f32 %v2183, 1.442695
        %v2187 = vpow.pop %v2186
        %v2188 = vadd.f32 %v2168, %v2185
        %v2189 = vadd.f32 %v2169, %v2187
        %vm2190 = vcmp.eq.s32.totalorder %v1761, 15
        %vm2191 = vcmp.eq.s32.totalorder %v1762, 15
        %v2192 = vsel %vm2190, %v1765, 0.0
        %v2193 = vsel %vm2191, %v1766, 0.0
        %v2194 = vsel %vm2170, %v1767, 0.0
        %v2195 = vsel %vm2171, %v1768, 0.0
        %v2196 = vadd.f32 %v2192, %v2194
        %v2197 = vadd.f32 %v2193, %v2195
        %v2198 = vmul.f32 %v1875, %v2196
        %v2199 = vmul.f32 %v1876, %v2197
        %v2200 = vadd.f32 %v2180, %v2198
        %v2201 = vadd.f32 %v2181, %v2199
        %v2202 = vsub.f32 %v1882, %v1884
        %v2203 = vsub.f32 %v1883, %v1885
        %v2204 = vmul.f32 %v2202, 1.442695
        %v2205 = vpow.pop %v2204
        %v2206 = vmul.f32 %v2203, 1.442695
        %v2207 = vpow.pop %v2206
        %v2208 = vadd.f32 %v2188, %v2205
        %v2209 = vadd.f32 %v2189, %v2207
        %vm2210 = vcmp.eq.s32.totalorder %v1761, 16
        %vm2211 = vcmp.eq.s32.totalorder %v1762, 16
        %v2212 = vsel %vm2210, %v1765, 0.0
        %v2213 = vsel %vm2211, %v1766, 0.0
        %v2214 = vsel %vm2190, %v1767, 0.0
        %v2215 = vsel %vm2191, %v1768, 0.0
        %v2216 = vadd.f32 %v2212, %v2214
        %v2217 = vadd.f32 %v2213, %v2215
        %v2218 = vmul.f32 %v1882, %v2216
        %v2219 = vmul.f32 %v1883, %v2217
        %v2220 = vadd.f32 %v2200, %v2218
        %v2221 = vadd.f32 %v2201, %v2219
        %v2222 = vlog2.pop %v2208
        %v2223 = vmul.f32 %v2222, 0.6931472
        %v2224 = vlog2.pop %v2209
        %v2225 = vmul.f32 %v2224, 0.6931472
        %v2226 = vadd.f32 %v2223, %v1884
        %v2227 = vadd.f32 %v2225, %v1885
        %v2228 = vsub.f32 %v2226, %v2220
        %v2229 = vsub.f32 %v2227, %v2221
        %v2230 = vadd.f32 %v1757, %v2228
        %v2231 = vadd.f32 %v1758, %v2229
        %v2232 = vfloor.f32 %v812
        %v2233 = vfloor.f32 %v813
        %v2234 = vcvt.f32.s32.to.zero.pseudo %v2232
        %v2235 = vcvt.f32.s32.to.zero.pseudo %v2233
        %v2236 = vadd.f32 %v2232, 1.0
        %v2237 = vadd.f32 %v2233, 1.0
        %v2238 = vsub.f32 %v2236, %v812
        %v2239 = vsub.f32 %v2237, %v813
        %v2240 = vsub.f32 1.0, %v2238
        %v2241 = vsub.f32 1.0, %v2239
        %s2242 = scalar_lea.vmem %s429, 408 [#allocation7]
        %v2243 = vld [vmem:[%s2242] sm:$0xf]
        %v2244 = vld [vmem:[%s2242 + $0x4] sm:$0xf]
        %v2245 = vunpack.c.l.bf16 %v2243
        %v2246 = vunpack.c.l.bf16 %v2244
        %s2247 = scalar_lea.vmem %s429, 416 [#allocation7]
        %v2248 = vld [vmem:[%s2247] sm:$0xf]
        %v2249 = vld [vmem:[%s2247 + $0x4] sm:$0xf]
        %v2250 = vunpack.c.l.bf16 %v2248
        %v2251 = vunpack.c.l.bf16 %v2249
        %v2252 = vmax.f32 %v2245, %v2250
        %v2253 = vmax.f32 %v2246, %v2251
        %s2254 = scalar_lea.vmem %s429, 424 [#allocation7]
        %v2255 = vld [vmem:[%s2254] sm:$0xf]
        %v2256 = vld [vmem:[%s2254 + $0x4] sm:$0xf]
        %v2257 = vunpack.c.l.bf16 %v2255
        %v2258 = vunpack.c.l.bf16 %v2256
        %v2259 = vmax.f32 %v2252, %v2257
        %v2260 = vmax.f32 %v2253, %v2258
        %s2261 = scalar_lea.vmem %s429, 432 [#allocation7]
        %v2262 = vld [vmem:[%s2261] sm:$0xf]
        %v2263 = vld [vmem:[%s2261 + $0x4] sm:$0xf]
        %v2264 = vunpack.c.l.bf16 %v2262
        %v2265 = vunpack.c.l.bf16 %v2263
        %v2266 = vmax.f32 %v2259, %v2264
        %v2267 = vmax.f32 %v2260, %v2265
        %s2268 = scalar_lea.vmem %s429, 440 [#allocation7]
        %v2269 = vld [vmem:[%s2268] sm:$0xf]
        %v2270 = vld [vmem:[%s2268 + $0x4] sm:$0xf]
        %v2271 = vunpack.c.l.bf16 %v2269
        %v2272 = vunpack.c.l.bf16 %v2270
        %v2273 = vmax.f32 %v2266, %v2271
        %v2274 = vmax.f32 %v2267, %v2272
        %s2275 = scalar_lea.vmem %s429, 448 [#allocation7]
        %v2276 = vld [vmem:[%s2275] sm:$0xf]
        %v2277 = vld [vmem:[%s2275 + $0x4] sm:$0xf]
        %v2278 = vunpack.c.l.bf16 %v2276
        %v2279 = vunpack.c.l.bf16 %v2277
        %v2280 = vmax.f32 %v2273, %v2278
        %v2281 = vmax.f32 %v2274, %v2279
        %s2282 = scalar_lea.vmem %s429, 456 [#allocation7]
        %v2283 = vld [vmem:[%s2282] sm:$0xf]
        %v2284 = vld [vmem:[%s2282 + $0x4] sm:$0xf]
        %v2285 = vunpack.c.l.bf16 %v2283
        %v2286 = vunpack.c.l.bf16 %v2284
        %v2287 = vmax.f32 %v2280, %v2285
        %v2288 = vmax.f32 %v2281, %v2286
        %s2289 = scalar_lea.vmem %s429, 464 [#allocation7]
        %v2290 = vld [vmem:[%s2289] sm:$0xf]
        %v2291 = vld [vmem:[%s2289 + $0x4] sm:$0xf]
        %v2292 = vunpack.c.l.bf16 %v2290
        %v2293 = vunpack.c.l.bf16 %v2291
        %v2294 = vmax.f32 %v2287, %v2292
        %v2295 = vmax.f32 %v2288, %v2293
        %s2296 = scalar_lea.vmem %s429, 472 [#allocation7]
        %v2297 = vld [vmem:[%s2296] sm:$0xf]
        %v2298 = vld [vmem:[%s2296 + $0x4] sm:$0xf]
        %v2299 = vunpack.c.l.bf16 %v2297
        %v2300 = vunpack.c.l.bf16 %v2298
        %v2301 = vmax.f32 %v2294, %v2299
        %v2302 = vmax.f32 %v2295, %v2300
        %s2303 = scalar_lea.vmem %s429, 480 [#allocation7]
        %v2304 = vld [vmem:[%s2303] sm:$0xf]
        %v2305 = vld [vmem:[%s2303 + $0x4] sm:$0xf]
        %v2306 = vunpack.c.l.bf16 %v2304
        %v2307 = vunpack.c.l.bf16 %v2305
        %v2308 = vmax.f32 %v2301, %v2306
        %v2309 = vmax.f32 %v2302, %v2307
        %s2310 = scalar_lea.vmem %s429, 488 [#allocation7]
        %v2311 = vld [vmem:[%s2310] sm:$0xf]
        %v2312 = vld [vmem:[%s2310 + $0x4] sm:$0xf]
        %v2313 = vunpack.c.l.bf16 %v2311
        %v2314 = vunpack.c.l.bf16 %v2312
        %v2315 = vmax.f32 %v2308, %v2313
        %v2316 = vmax.f32 %v2309, %v2314
        %s2317 = scalar_lea.vmem %s429, 496 [#allocation7]
        %v2318 = vld [vmem:[%s2317] sm:$0xf]
        %v2319 = vld [vmem:[%s2317 + $0x4] sm:$0xf]
        %v2320 = vunpack.c.l.bf16 %v2318
        %v2321 = vunpack.c.l.bf16 %v2319
        %v2322 = vmax.f32 %v2315, %v2320
        %v2323 = vmax.f32 %v2316, %v2321
        %s2324 = scalar_lea.vmem %s429, 504 [#allocation7]
        %v2325 = vld [vmem:[%s2324] sm:$0xf]
        %v2326 = vld [vmem:[%s2324 + $0x4] sm:$0xf]
        %v2327 = vunpack.c.l.bf16 %v2325
        %v2328 = vunpack.c.l.bf16 %v2326
        %v2329 = vmax.f32 %v2322, %v2327
        %v2330 = vmax.f32 %v2323, %v2328
        %s2331 = scalar_lea.vmem %s429, 512 [#allocation7]
        %v2332 = vld [vmem:[%s2331] sm:$0xf]
        %v2333 = vld [vmem:[%s2331 + $0x4] sm:$0xf]
        %v2334 = vunpack.c.l.bf16 %v2332
        %v2335 = vunpack.c.l.bf16 %v2333
        %v2336 = vmax.f32 %v2329, %v2334
        %v2337 = vmax.f32 %v2330, %v2335
        %s2338 = scalar_lea.vmem %s429, 520 [#allocation7]
        %v2339 = vld [vmem:[%s2338] sm:$0xf]
        %v2340 = vld [vmem:[%s2338 + $0x4] sm:$0xf]
        %v2341 = vunpack.c.l.bf16 %v2339
        %v2342 = vunpack.c.l.bf16 %v2340
        %v2343 = vmax.f32 %v2336, %v2341
        %v2344 = vmax.f32 %v2337, %v2342
        %s2345 = scalar_lea.vmem %s429, 528 [#allocation7]
        %v2346 = vld [vmem:[%s2345] sm:$0xf]
        %v2347 = vld [vmem:[%s2345 + $0x4] sm:$0xf]
        %v2348 = vunpack.c.l.bf16 %v2346
        %v2349 = vunpack.c.l.bf16 %v2347
        %v2350 = vmax.f32 %v2343, %v2348
        %v2351 = vmax.f32 %v2344, %v2349
        %s2352 = scalar_lea.vmem %s429, 536 [#allocation7]
        %v2353 = vld [vmem:[%s2352] sm:$0xf]
        %v2354 = vld [vmem:[%s2352 + $0x4] sm:$0xf]
        %v2355 = vunpack.c.l.bf16 %v2353
        %v2356 = vunpack.c.l.bf16 %v2354
        %v2357 = vmax.f32 %v2350, %v2355
        %v2358 = vmax.f32 %v2351, %v2356
        %v2359 = vsub.f32 %v2245, %v2357
        %v2360 = vsub.f32 %v2246, %v2358
        %v2361 = vmul.f32 %v2359, 1.442695
        %v2362 = vpow.pop %v2361
        %v2363 = vmul.f32 %v2360, 1.442695
        %v2364 = vpow.pop %v2363
        %v2365 = vadd.f32 %v2362, 0.0
        %v2366 = vadd.f32 %v2364, 0.0
        %vm2367 = vcmp.eq.s32.totalorder %v2234, 0
        %vm2368 = vcmp.eq.s32.totalorder %v2235, 0
        %v2369 = vsel %vm2367, %v2238, 0.0
        %v2370 = vsel %vm2368, %v2239, 0.0
        %v2371 = vmul.f32 %v2245, %v2369
        %v2372 = vmul.f32 %v2246, %v2370
        %v2373 = vadd.f32 %v2371, 0.0
        %v2374 = vadd.f32 %v2372, 0.0
        %v2375 = vsub.f32 %v2250, %v2357
        %v2376 = vsub.f32 %v2251, %v2358
        %v2377 = vmul.f32 %v2375, 1.442695
        %v2378 = vpow.pop %v2377
        %v2379 = vmul.f32 %v2376, 1.442695
        %v2380 = vpow.pop %v2379
        %v2381 = vadd.f32 %v2365, %v2378
        %v2382 = vadd.f32 %v2366, %v2380
        %vm2383 = vcmp.eq.s32.totalorder %v2234, 1
        %vm2384 = vcmp.eq.s32.totalorder %v2235, 1
        %v2385 = vsel %vm2383, %v2238, 0.0
        %v2386 = vsel %vm2384, %v2239, 0.0
        %v2387 = vsel %vm2367, %v2240, 0.0
        %v2388 = vsel %vm2368, %v2241, 0.0
        %v2389 = vadd.f32 %v2385, %v2387
        %v2390 = vadd.f32 %v2386, %v2388
        %v2391 = vmul.f32 %v2250, %v2389
        %v2392 = vmul.f32 %v2251, %v2390
        %v2393 = vadd.f32 %v2373, %v2391
        %v2394 = vadd.f32 %v2374, %v2392
        %v2395 = vsub.f32 %v2257, %v2357
        %v2396 = vsub.f32 %v2258, %v2358
        %v2397 = vmul.f32 %v2395, 1.442695
        %v2398 = vpow.pop %v2397
        %v2399 = vmul.f32 %v2396, 1.442695
        %v2400 = vpow.pop %v2399
        %v2401 = vadd.f32 %v2381, %v2398
        %v2402 = vadd.f32 %v2382, %v2400
        %vm2403 = vcmp.eq.s32.totalorder %v2234, 2
        %vm2404 = vcmp.eq.s32.totalorder %v2235, 2
        %v2405 = vsel %vm2403, %v2238, 0.0
        %v2406 = vsel %vm2404, %v2239, 0.0
        %v2407 = vsel %vm2383, %v2240, 0.0
        %v2408 = vsel %vm2384, %v2241, 0.0
        %v2409 = vadd.f32 %v2405, %v2407
        %v2410 = vadd.f32 %v2406, %v2408
        %v2411 = vmul.f32 %v2257, %v2409
        %v2412 = vmul.f32 %v2258, %v2410
        %v2413 = vadd.f32 %v2393, %v2411
        %v2414 = vadd.f32 %v2394, %v2412
        %v2415 = vsub.f32 %v2264, %v2357
        %v2416 = vsub.f32 %v2265, %v2358
        %v2417 = vmul.f32 %v2415, 1.442695
        %v2418 = vpow.pop %v2417
        %v2419 = vmul.f32 %v2416, 1.442695
        %v2420 = vpow.pop %v2419
        %v2421 = vadd.f32 %v2401, %v2418
        %v2422 = vadd.f32 %v2402, %v2420
        %vm2423 = vcmp.eq.s32.totalorder %v2234, 3
        %vm2424 = vcmp.eq.s32.totalorder %v2235, 3
        %v2425 = vsel %vm2423, %v2238, 0.0
        %v2426 = vsel %vm2424, %v2239, 0.0
        %v2427 = vsel %vm2403, %v2240, 0.0
        %v2428 = vsel %vm2404, %v2241, 0.0
        %v2429 = vadd.f32 %v2425, %v2427
        %v2430 = vadd.f32 %v2426, %v2428
        %v2431 = vmul.f32 %v2264, %v2429
        %v2432 = vmul.f32 %v2265, %v2430
        %v2433 = vadd.f32 %v2413, %v2431
        %v2434 = vadd.f32 %v2414, %v2432
        %v2435 = vsub.f32 %v2271, %v2357
        %v2436 = vsub.f32 %v2272, %v2358
        %v2437 = vmul.f32 %v2435, 1.442695
        %v2438 = vpow.pop %v2437
        %v2439 = vmul.f32 %v2436, 1.442695
        %v2440 = vpow.pop %v2439
        %v2441 = vadd.f32 %v2421, %v2438
        %v2442 = vadd.f32 %v2422, %v2440
        %vm2443 = vcmp.eq.s32.totalorder %v2234, 4
        %vm2444 = vcmp.eq.s32.totalorder %v2235, 4
        %v2445 = vsel %vm2443, %v2238, 0.0
        %v2446 = vsel %vm2444, %v2239, 0.0
        %v2447 = vsel %vm2423, %v2240, 0.0
        %v2448 = vsel %vm2424, %v2241, 0.0
        %v2449 = vadd.f32 %v2445, %v2447
        %v2450 = vadd.f32 %v2446, %v2448
        %v2451 = vmul.f32 %v2271, %v2449
        %v2452 = vmul.f32 %v2272, %v2450
        %v2453 = vadd.f32 %v2433, %v2451
        %v2454 = vadd.f32 %v2434, %v2452
        %v2455 = vsub.f32 %v2278, %v2357
        %v2456 = vsub.f32 %v2279, %v2358
        %v2457 = vmul.f32 %v2455, 1.442695
        %v2458 = vpow.pop %v2457
        %v2459 = vmul.f32 %v2456, 1.442695
        %v2460 = vpow.pop %v2459
        %v2461 = vadd.f32 %v2441, %v2458
        %v2462 = vadd.f32 %v2442, %v2460
        %vm2463 = vcmp.eq.s32.totalorder %v2234, 5
        %vm2464 = vcmp.eq.s32.totalorder %v2235, 5
        %v2465 = vsel %vm2463, %v2238, 0.0
        %v2466 = vsel %vm2464, %v2239, 0.0
        %v2467 = vsel %vm2443, %v2240, 0.0
        %v2468 = vsel %vm2444, %v2241, 0.0
        %v2469 = vadd.f32 %v2465, %v2467
        %v2470 = vadd.f32 %v2466, %v2468
        %v2471 = vmul.f32 %v2278, %v2469
        %v2472 = vmul.f32 %v2279, %v2470
        %v2473 = vadd.f32 %v2453, %v2471
        %v2474 = vadd.f32 %v2454, %v2472
        %v2475 = vsub.f32 %v2285, %v2357
        %v2476 = vsub.f32 %v2286, %v2358
        %v2477 = vmul.f32 %v2475, 1.442695
        %v2478 = vpow.pop %v2477
        %v2479 = vmul.f32 %v2476, 1.442695
        %v2480 = vpow.pop %v2479
        %v2481 = vadd.f32 %v2461, %v2478
        %v2482 = vadd.f32 %v2462, %v2480
        %vm2483 = vcmp.eq.s32.totalorder %v2234, 6
        %vm2484 = vcmp.eq.s32.totalorder %v2235, 6
        %v2485 = vsel %vm2483, %v2238, 0.0
        %v2486 = vsel %vm2484, %v2239, 0.0
        %v2487 = vsel %vm2463, %v2240, 0.0
        %v2488 = vsel %vm2464, %v2241, 0.0
        %v2489 = vadd.f32 %v2485, %v2487
        %v2490 = vadd.f32 %v2486, %v2488
        %v2491 = vmul.f32 %v2285, %v2489
        %v2492 = vmul.f32 %v2286, %v2490
        %v2493 = vadd.f32 %v2473, %v2491
        %v2494 = vadd.f32 %v2474, %v2492
        %v2495 = vsub.f32 %v2292, %v2357
        %v2496 = vsub.f32 %v2293, %v2358
        %v2497 = vmul.f32 %v2495, 1.442695
        %v2498 = vpow.pop %v2497
        %v2499 = vmul.f32 %v2496, 1.442695
        %v2500 = vpow.pop %v2499
        %v2501 = vadd.f32 %v2481, %v2498
        %v2502 = vadd.f32 %v2482, %v2500
        %vm2503 = vcmp.eq.s32.totalorder %v2234, 7
        %vm2504 = vcmp.eq.s32.totalorder %v2235, 7
        %v2505 = vsel %vm2503, %v2238, 0.0
        %v2506 = vsel %vm2504, %v2239, 0.0
        %v2507 = vsel %vm2483, %v2240, 0.0
        %v2508 = vsel %vm2484, %v2241, 0.0
        %v2509 = vadd.f32 %v2505, %v2507
        %v2510 = vadd.f32 %v2506, %v2508
        %v2511 = vmul.f32 %v2292, %v2509
        %v2512 = vmul.f32 %v2293, %v2510
        %v2513 = vadd.f32 %v2493, %v2511
        %v2514 = vadd.f32 %v2494, %v2512
        %v2515 = vsub.f32 %v2299, %v2357
        %v2516 = vsub.f32 %v2300, %v2358
        %v2517 = vmul.f32 %v2515, 1.442695
        %v2518 = vpow.pop %v2517
        %v2519 = vmul.f32 %v2516, 1.442695
        %v2520 = vpow.pop %v2519
        %v2521 = vadd.f32 %v2501, %v2518
        %v2522 = vadd.f32 %v2502, %v2520
        %vm2523 = vcmp.eq.s32.totalorder %v2234, 8
        %vm2524 = vcmp.eq.s32.totalorder %v2235, 8
        %v2525 = vsel %vm2523, %v2238, 0.0
        %v2526 = vsel %vm2524, %v2239, 0.0
        %v2527 = vsel %vm2503, %v2240, 0.0
        %v2528 = vsel %vm2504, %v2241, 0.0
        %v2529 = vadd.f32 %v2525, %v2527
        %v2530 = vadd.f32 %v2526, %v2528
        %v2531 = vmul.f32 %v2299, %v2529
        %v2532 = vmul.f32 %v2300, %v2530
        %v2533 = vadd.f32 %v2513, %v2531
        %v2534 = vadd.f32 %v2514, %v2532
        %v2535 = vsub.f32 %v2306, %v2357
        %v2536 = vsub.f32 %v2307, %v2358
        %v2537 = vmul.f32 %v2535, 1.442695
        %v2538 = vpow.pop %v2537
        %v2539 = vmul.f32 %v2536, 1.442695
        %v2540 = vpow.pop %v2539
        %v2541 = vadd.f32 %v2521, %v2538
        %v2542 = vadd.f32 %v2522, %v2540
        %vm2543 = vcmp.eq.s32.totalorder %v2234, 9
        %vm2544 = vcmp.eq.s32.totalorder %v2235, 9
        %v2545 = vsel %vm2543, %v2238, 0.0
        %v2546 = vsel %vm2544, %v2239, 0.0
        %v2547 = vsel %vm2523, %v2240, 0.0
        %v2548 = vsel %vm2524, %v2241, 0.0
        %v2549 = vadd.f32 %v2545, %v2547
        %v2550 = vadd.f32 %v2546, %v2548
        %v2551 = vmul.f32 %v2306, %v2549
        %v2552 = vmul.f32 %v2307, %v2550
        %v2553 = vadd.f32 %v2533, %v2551
        %v2554 = vadd.f32 %v2534, %v2552
        %v2555 = vsub.f32 %v2313, %v2357
        %v2556 = vsub.f32 %v2314, %v2358
        %v2557 = vmul.f32 %v2555, 1.442695
        %v2558 = vpow.pop %v2557
        %v2559 = vmul.f32 %v2556, 1.442695
        %v2560 = vpow.pop %v2559
        %v2561 = vadd.f32 %v2541, %v2558
        %v2562 = vadd.f32 %v2542, %v2560
        %vm2563 = vcmp.eq.s32.totalorder %v2234, 10
        %vm2564 = vcmp.eq.s32.totalorder %v2235, 10
        %v2565 = vsel %vm2563, %v2238, 0.0
        %v2566 = vsel %vm2564, %v2239, 0.0
        %v2567 = vsel %vm2543, %v2240, 0.0
        %v2568 = vsel %vm2544, %v2241, 0.0
        %v2569 = vadd.f32 %v2565, %v2567
        %v2570 = vadd.f32 %v2566, %v2568
        %v2571 = vmul.f32 %v2313, %v2569
        %v2572 = vmul.f32 %v2314, %v2570
        %v2573 = vadd.f32 %v2553, %v2571
        %v2574 = vadd.f32 %v2554, %v2572
        %v2575 = vsub.f32 %v2320, %v2357
        %v2576 = vsub.f32 %v2321, %v2358
        %v2577 = vmul.f32 %v2575, 1.442695
        %v2578 = vpow.pop %v2577
        %v2579 = vmul.f32 %v2576, 1.442695
        %v2580 = vpow.pop %v2579
        %v2581 = vadd.f32 %v2561, %v2578
        %v2582 = vadd.f32 %v2562, %v2580
        %vm2583 = vcmp.eq.s32.totalorder %v2234, 11
        %vm2584 = vcmp.eq.s32.totalorder %v2235, 11
        %v2585 = vsel %vm2583, %v2238, 0.0
        %v2586 = vsel %vm2584, %v2239, 0.0
        %v2587 = vsel %vm2563, %v2240, 0.0
        %v2588 = vsel %vm2564, %v2241, 0.0
        %v2589 = vadd.f32 %v2585, %v2587
        %v2590 = vadd.f32 %v2586, %v2588
        %v2591 = vmul.f32 %v2320, %v2589
        %v2592 = vmul.f32 %v2321, %v2590
        %v2593 = vadd.f32 %v2573, %v2591
        %v2594 = vadd.f32 %v2574, %v2592
        %v2595 = vsub.f32 %v2327, %v2357
        %v2596 = vsub.f32 %v2328, %v2358
        %v2597 = vmul.f32 %v2595, 1.442695
        %v2598 = vpow.pop %v2597
        %v2599 = vmul.f32 %v2596, 1.442695
        %v2600 = vpow.pop %v2599
        %v2601 = vadd.f32 %v2581, %v2598
        %v2602 = vadd.f32 %v2582, %v2600
        %vm2603 = vcmp.eq.s32.totalorder %v2234, 12
        %vm2604 = vcmp.eq.s32.totalorder %v2235, 12
        %v2605 = vsel %vm2603, %v2238, 0.0
        %v2606 = vsel %vm2604, %v2239, 0.0
        %v2607 = vsel %vm2583, %v2240, 0.0
        %v2608 = vsel %vm2584, %v2241, 0.0
        %v2609 = vadd.f32 %v2605, %v2607
        %v2610 = vadd.f32 %v2606, %v2608
        %v2611 = vmul.f32 %v2327, %v2609
        %v2612 = vmul.f32 %v2328, %v2610
        %v2613 = vadd.f32 %v2593, %v2611
        %v2614 = vadd.f32 %v2594, %v2612
        %v2615 = vsub.f32 %v2334, %v2357
        %v2616 = vsub.f32 %v2335, %v2358
        %v2617 = vmul.f32 %v2615, 1.442695
        %v2618 = vpow.pop %v2617
        %v2619 = vmul.f32 %v2616, 1.442695
        %v2620 = vpow.pop %v2619
        %v2621 = vadd.f32 %v2601, %v2618
        %v2622 = vadd.f32 %v2602, %v2620
        %vm2623 = vcmp.eq.s32.totalorder %v2234, 13
        %vm2624 = vcmp.eq.s32.totalorder %v2235, 13
        %v2625 = vsel %vm2623, %v2238, 0.0
        %v2626 = vsel %vm2624, %v2239, 0.0
        %v2627 = vsel %vm2603, %v2240, 0.0
        %v2628 = vsel %vm2604, %v2241, 0.0
        %v2629 = vadd.f32 %v2625, %v2627
        %v2630 = vadd.f32 %v2626, %v2628
        %v2631 = vmul.f32 %v2334, %v2629
        %v2632 = vmul.f32 %v2335, %v2630
        %v2633 = vadd.f32 %v2613, %v2631
        %v2634 = vadd.f32 %v2614, %v2632
        %v2635 = vsub.f32 %v2341, %v2357
        %v2636 = vsub.f32 %v2342, %v2358
        %v2637 = vmul.f32 %v2635, 1.442695
        %v2638 = vpow.pop %v2637
        %v2639 = vmul.f32 %v2636, 1.442695
        %v2640 = vpow.pop %v2639
        %v2641 = vadd.f32 %v2621, %v2638
        %v2642 = vadd.f32 %v2622, %v2640
        %vm2643 = vcmp.eq.s32.totalorder %v2234, 14
        %vm2644 = vcmp.eq.s32.totalorder %v2235, 14
        %v2645 = vsel %vm2643, %v2238, 0.0
        %v2646 = vsel %vm2644, %v2239, 0.0
        %v2647 = vsel %vm2623, %v2240, 0.0
        %v2648 = vsel %vm2624, %v2241, 0.0
        %v2649 = vadd.f32 %v2645, %v2647
        %v2650 = vadd.f32 %v2646, %v2648
        %v2651 = vmul.f32 %v2341, %v2649
        %v2652 = vmul.f32 %v2342, %v2650
        %v2653 = vadd.f32 %v2633, %v2651
        %v2654 = vadd.f32 %v2634, %v2652
        %v2655 = vsub.f32 %v2348, %v2357
        %v2656 = vsub.f32 %v2349, %v2358
        %v2657 = vmul.f32 %v2655, 1.442695
        %v2658 = vpow.pop %v2657
        %v2659 = vmul.f32 %v2656, 1.442695
        %v2660 = vpow.pop %v2659
        %v2661 = vadd.f32 %v2641, %v2658
        %v2662 = vadd.f32 %v2642, %v2660
        %vm2663 = vcmp.eq.s32.totalorder %v2234, 15
        %vm2664 = vcmp.eq.s32.totalorder %v2235, 15
        %v2665 = vsel %vm2663, %v2238, 0.0
        %v2666 = vsel %vm2664, %v2239, 0.0
        %v2667 = vsel %vm2643, %v2240, 0.0
        %v2668 = vsel %vm2644, %v2241, 0.0
        %v2669 = vadd.f32 %v2665, %v2667
        %v2670 = vadd.f32 %v2666, %v2668
        %v2671 = vmul.f32 %v2348, %v2669
        %v2672 = vmul.f32 %v2349, %v2670
        %v2673 = vadd.f32 %v2653, %v2671
        %v2674 = vadd.f32 %v2654, %v2672
        %v2675 = vsub.f32 %v2355, %v2357
        %v2676 = vsub.f32 %v2356, %v2358
        %v2677 = vmul.f32 %v2675, 1.442695
        %v2678 = vpow.pop %v2677
        %v2679 = vmul.f32 %v2676, 1.442695
        %v2680 = vpow.pop %v2679
        %v2681 = vadd.f32 %v2661, %v2678
        %v2682 = vadd.f32 %v2662, %v2680
        %vm2683 = vcmp.eq.s32.totalorder %v2234, 16
        %vm2684 = vcmp.eq.s32.totalorder %v2235, 16
        %v2685 = vsel %vm2683, %v2238, 0.0
        %v2686 = vsel %vm2684, %v2239, 0.0
        %v2687 = vsel %vm2663, %v2240, 0.0
        %v2688 = vsel %vm2664, %v2241, 0.0
        %v2689 = vadd.f32 %v2685, %v2687
        %v2690 = vadd.f32 %v2686, %v2688
        %v2691 = vmul.f32 %v2355, %v2689
        %v2692 = vmul.f32 %v2356, %v2690
        %v2693 = vadd.f32 %v2673, %v2691
        %v2694 = vadd.f32 %v2674, %v2692
        %v2695 = vlog2.pop %v2681
        %v2696 = vmul.f32 %v2695, 0.6931472
        %v2697 = vlog2.pop %v2682
        %v2698 = vmul.f32 %v2697, 0.6931472
        %v2699 = vadd.f32 %v2696, %v2357
        %v2700 = vadd.f32 %v2698, %v2358
        %v2701 = vsub.f32 %v2699, %v2693
        %v2702 = vsub.f32 %v2700, %v2694
        %v2703 = vadd.f32 %v2230, %v2701
        %v2704 = vadd.f32 %v2231, %v2702
        %v2705 = vmul.f32 %v2703, 0.25
        %v2706 = vmul.f32 %v2704, 0.25
        %v2707 = vld [vmem:[%s489] sm:$0x1]
        %v2708 = vmul.f32 %v2705, %v497
        %v2709 = vmul.f32 %v2706, %v498
        %v2710 = vadd.f32 %v2708, %v2709
        %v2711 = vrot.slane %v2710, 4
        %v2712 = vadd.f32 %v2710, %v2711
        %v2713 = vrot.slane %v2712, 2
        %v2714 = vadd.f32 %v2712, %v2713
        %v2715 = vrot.slane %v2714, 1
        %v2716 = vadd.f32 %v2714, %v2715
        %2717 = vadd.xlane.f32.xlu0 %v2716
        %v2718 = vpop.xlane.xlu0 %2717
        %v2719 = vadd.f32 %v2707, %v2718
        %2720 = vst.msk [vmem:[%s489] sm:$0x1] %vm783, %v2719
        %p2721 = scmp.lt.s32.totalorder %s30, 1
        %s2722 = scalar_select %p2721, %s30, 1
        %s2723 = scalar_lea.vmem %s4, %s2722
        %p2724 = scmp.lt.s32.totalorder %s30, 1
        %s2725 = scalar_select %p2724, %s30, 1
        %s2726 = scalar_lea.vmem %s5, %s2725
        // Predicated region
        $region57: #{tpu_custom_call.1} parent=35 // pred_check
          %p2727 = pneg %p176
        $region58: #{tpu_custom_call.1} parent=35 // pred_check_branch
          %2729 = sbr.rel (%p2727) target = $region60
        $region59: #{tpu_custom_call.1} parent=35 // pred_region
          _
        $region60: #{tpu_custom_call.1} parent=35 // pred_fallthru
          _
        // Predicated region
        $region61: #{tpu_custom_call.1} parent=35 // pred_check
          %p2730 = pneg %p202
        $region62: #{tpu_custom_call.1} parent=35 // pred_check_branch
          %2732 = sbr.rel (%p2730) target = $region64
        $region63: #{tpu_custom_call.1} parent=35 // pred_region
          _
        $region64: #{tpu_custom_call.1} parent=35 // pred_fallthru
          _
      $region36: #{tpu_custom_call.1} parent=5 // pred_fallthru
        _
      %p2733 = scmp.le.s32.totalorder 2, %s21
      // Predicated region
      $region65: #{tpu_custom_call.1} parent=5 // pred_check
        %p2734 = pneg %p2733
      $region66: #{tpu_custom_call.1} parent=5 // pred_check_branch
        %2736 = sbr.rel (%p2734) target = $region68
      $region67: #{tpu_custom_call.1} parent=5 // pred_region
        %s2737 = ssub.s32 %s21, 2
        // Predicated region
        $region69: #{tpu_custom_call.1} parent=67 // pred_check
          %p2738 = pneg %p182
        $region70: #{tpu_custom_call.1} parent=67 // pred_check_branch
          %2740 = sbr.rel (%p2738) target = $region72
        $region71: #{tpu_custom_call.1} parent=67 // pred_region
          %p2741 = scmp.lt.s32.totalorder %s32, 1
          %s2742 = scalar_select %p2741, %s32, 1
          %s2743 = scalar_lea.vmem %s4, %s2742
        $region72: #{tpu_custom_call.1} parent=67 // pred_fallthru
          _
        // Predicated region
        $region73: #{tpu_custom_call.1} parent=67 // pred_check
          %p2744 = pneg %p208
        $region74: #{tpu_custom_call.1} parent=67 // pred_check_branch
          %2746 = sbr.rel (%p2744) target = $region76
        $region75: #{tpu_custom_call.1} parent=67 // pred_region
          %p2747 = scmp.lt.s32.totalorder %s32, 1
          %s2748 = scalar_select %p2747, %s32, 1
          %s2749 = scalar_lea.vmem %s5, %s2748
        $region76: #{tpu_custom_call.1} parent=67 // pred_fallthru
          _
      $region68: #{tpu_custom_call.1} parent=5 // pred_fallthru
        _
    $region6: #{tpu_custom_call.1} parent=1 // loop_footer
      %s25 = sadd.s32 1, %s21
    $region7: #{tpu_custom_call.1} parent=1 // loop_footer_branch
      %20 = sbr.rel target = $region3
    $region8: #{tpu_custom_call.1} parent=1 // loop_exit
      _
    %2750 = vsyncpa [#allocation3], 1
    %s2751 = scalar_lea.sflag [#allocation3], 1
    %2752 = vsyncpa %s2751, 1
    %2753 = vsyncpa [#allocation5], 1
    %s2754 = scalar_lea.sflag [#allocation5], 1
    %2755 = vsyncpa %s2754, 1
    %2756 = vsyncpa [#allocation8], 1
    %s2757 = scalar_lea.sflag [#allocation8], 1
    %2758 = vsyncpa %s2757, 1

</llo_original>
